<compile_context>
chip_gen: v5e
topology: v5e:2x2
jax: 0.10.0
libtpu: 0.0.40
codegen_flags: <defaults>
</compile_context>

<pallas_src>
import functools

import jax
import jax.numpy as jnp
from jax.experimental import pallas as pl
from jax.experimental.pallas import tpu as pltpu

_EPS = 1e-5
_VMEM_LIMIT = 48 * 1024 * 1024  # <= v7x's 64 MiB physical VMEM; fine on v5e/v6e too


# ---------------------------------------------------------------------------
# In-kernel helpers
# ---------------------------------------------------------------------------
def _gn1(y, gamma, beta, eps):
    """GroupNorm(num_groups=1) over a whole per-sample (rows, C) f32 slab + affine.

    Two-pass statistics (mean, then centered variance) for numerical robustness;
    matches PyTorch's biased-variance GroupNorm because each slab is exactly one
    sample's full activation.
    """
    inv_n = 1.0 / y.size
    mean = jnp.sum(y) * inv_n
    yc = y - mean
    var = jnp.sum(yc * yc) * inv_n
    return yc * jax.lax.rsqrt(var + eps) * gamma + beta


# ---------------------------------------------------------------------------
# The single fused Bottleneck kernel
# ---------------------------------------------------------------------------
def _bottleneck_kernel(*refs, bB, s, Hs, Ws, ho, wo, has_ds, eps):
    # Input rows are in "padded-phase order": for padded-phase (p, q) (p, q in [0, s)),
    # chunk (p*s + q) holds the H/s x W/s pixels x[s*a + (p-1)%s, s*c + (q-1)%s] in
    # (a, c) row-major order.  For s == 1 this is plain row-major order.
    if has_ds:
        (x_ref, w1_ref, g1_ref, b1_ref, w2_ref, g2_ref, b2_ref,
         w3_ref, g3_ref, b3_ref, wd_ref, gd_ref, bd_ref, o_ref, pad_ref) = refs
    else:
        (x_ref, w1_ref, g1_ref, b1_ref, w2_ref, g2_ref, b2_ref,
         w3_ref, g3_ref, b3_ref, o_ref, pad_ref) = refs
        wd_ref = gd_ref = bd_ref = None

    planes = w1_ref.shape[1]
    n_ph = s * s
    rows_out = ho * wo

    # Zero the padded scratch once; the real-data regions are rewritten per sub-sample
    # at identical offsets, everything else stays zero and acts as the conv padding.
    pad_ref[...] = jnp.zeros(pad_ref.shape, pad_ref.dtype)

    # Hoist all weight / affine loads out of the per-sample loop.
    w1 = w1_ref[...]
    w3 = w3_ref[...]
    g1, b1 = g1_ref[...], b1_ref[...]
    g2, b2 = g2_ref[...], b2_ref[...]
    g3, b3 = g3_ref[...], b3_ref[...]
    w2_taps = [w2_ref[t] for t in range(9)]
    if has_ds:
        wd = wd_ref[...]
        gd, bd = gd_ref[...], bd_ref[...]

    for i in range(bB):
        xb = x_ref[i]                                               # (H*W, cin) bf16

        # ---- conv1 (1x1) + GN1 + ReLU (MXU matmul + fused epilogue) ----
        y1 = jnp.dot(xb, w1, preferred_element_type=jnp.float32)
        y1 = jnp.maximum(_gn1(y1, g1, b1, eps), 0.0)

        # ---- scatter h1 into the zero-padded, stride-phase-decomposed scratch ----
        # (Ws is a multiple of 8 here, so the reshape is layout-preserving and the
        #  stores are at 8-aligned sublane offsets -> unmasked vsts.)
        h1 = y1.astype(pad_ref.dtype).reshape(n_ph, Hs, Ws, planes)
        for p in range(s):
            for q in range(s):
                row0 = 1 if p == 0 else 0          # outer dim: any offset is fine
                col0 = 8 if q == 0 else 0          # sublane dim: keep stores aligned
                pad_ref[p * s + q, row0:row0 + Hs, col0:col0 + Ws, :] = h1[p * s + q]

        # ---- conv2 (3x3, stride s, pad 1): 9 tap matmuls from static VMEM slices ----
        acc = jnp.zeros((rows_out, planes), jnp.float32)
        for di in range(3):
            for dj in range(3):
                ph = (di % s) * s + (dj % s)
                a0 = di // s
                b0 = dj // s + (7 if (dj % s) == 0 else 0)   # undo the +8 store shift
                xs = pad_ref[ph, a0:a0 + ho, b0:b0 + wo, :]  # (ho, wo, planes) bf16
                acc = acc + jnp.dot(xs.reshape(rows_out, planes), w2_taps[di * 3 + dj],
                                    preferred_element_type=jnp.float32)
        y2 = jnp.maximum(_gn1(acc, g2, b2, eps), 0.0).astype(xb.dtype)

        # ---- conv3 (1x1) + GN3 ----
        y3 = _gn1(jnp.dot(y2, w3, preferred_element_type=jnp.float32), g3, b3, eps)

        # ---- residual branch (fused; reads the x slab already resident in VMEM) ----
        if has_ds:
            # phase chunk (1, 1) of the padded-phase order holds x[s*a, s*c] in
            # output row-major order -> the 1x1 strided downsample is one static slice.
            ds0 = ((1 % s) * s + (1 % s)) * Hs * Ws
            xd = x_ref[i, ds0:ds0 + rows_out, :]
            res = _gn1(jnp.dot(xd, wd, preferred_element_type=jnp.float32), gd, bd, eps)
        else:
            res = xb.astype(jnp.float32)           # identity (stride 1, cin == 4*planes)

        # ---- add + final ReLU, bf16 writeback ----
        o_ref[i] = jnp.maximum(y3 + res, 0.0).astype(o_ref.dtype)


# ---------------------------------------------------------------------------
# Wrapper (public interface: NCHW in, NCHW out like PyTorch; NHWC available)
# ---------------------------------------------------------------------------
def bottleneck_forward(params, x_nchw, *, stride=1, block_batch=1, layout="NCHW"):
    B, cin, H, W = x_nchw.shape
    planes = params["conv1_w"].shape[0]
    c4 = params["conv3_w"].shape[0]
    s = int(stride)
    has_ds = "ds_w" in params
    bf16 = jnp.bfloat16

    if not has_ds:
        assert s == 1 and cin == c4, \
            "identity shortcut requires stride == 1 and in_channels == 4*planes"
    if s > 1:
        assert H % s == 0 and W % s == 0, "stride must divide H and W"
    assert B % block_batch == 0, "block_batch must divide batch"
    bB = block_batch

    Hs, Ws = H // s, W // s
    ho = (H - 1) // s + 1
    wo = (W - 1) // s + 1
    assert ho == Hs and wo == Ws
    assert Ws % 8 == 0, "W/stride must be a multiple of 8 for layout-preserving reshapes"
    rows, rows_out = H * W, ho * wo
    n_ph = s * s

    # Padded phase-image scratch geometry.
    hq = max((2 // s) + ho, 1 + Hs)
    wq_need = max(8 + Ws,
                  max((dj // s) + (7 if dj % s == 0 else 0) + wo for dj in range(3)))
    wq = ((wq_need + 7) // 8) * 8

    # Rough per-grid-step VMEM budget check (double-buffered I/O + scratch + f32 slabs).
    est = (2 * bB * rows * cin * 2 + 2 * bB * rows_out * c4 * 2
           + n_ph * hq * wq * planes * 2
           + rows * planes * 4 + rows_out * (planes + 2 * c4) * 4
           + (cin * planes + 9 * planes * planes + planes * c4 + cin * c4) * 2)
    assert est < int(0.8 * _VMEM_LIMIT), (
        f"per-step working set ~{est} B exceeds the VMEM budget; reduce block_batch")
    # TODO(synk): row-tiled two-pass GN fallback instead of whole-sample residency.

    # Input layout: bf16 NHWC, flattened to phase-ordered rows.  For stride > 1 this is
    # the single remaining wrapper-side pass over x; h1 / h2 never leave VMEM.
    xh = jnp.transpose(x_nchw, (0, 2, 3, 1)).astype(bf16)           # (B, H, W, cin)
    if s == 1:
        x_ph = xh.reshape(B, rows, cin)
    else:
        x_s2d = xh.reshape(B, Hs, s, Ws, s, cin).transpose(0, 2, 4, 1, 3, 5)
        perm = jnp.array([(p - 1) % s for p in range(s)], jnp.int32)
        x_s2d = jnp.take(jnp.take(x_s2d, perm, axis=1), perm, axis=2)
        x_ph = x_s2d.reshape(B, rows, cin)

    # Weights (PyTorch OIHW -> matmul-friendly layouts, bf16 MXU operands).
    w1 = jnp.transpose(params["conv1_w"][:, :, 0, 0], (1, 0)).astype(bf16)  # (cin, planes)
    w2 = jnp.transpose(params["conv2_w"], (2, 3, 1, 0)).reshape(9, planes, planes).astype(bf16)
    w3 = jnp.transpose(params["conv3_w"][:, :, 0, 0], (1, 0)).astype(bf16)  # (planes, c4)

    def aff(name):
        return params[name].reshape(1, -1).astype(jnp.float32)

    def full_spec(shape):
        zeros = (0,) * len(shape)
        return pl.BlockSpec(shape, lambda i, _z=zeros: _z)

    args = [x_ph, w1, aff("bn1_g"), aff("bn1_b"), w2, aff("bn2_g"), aff("bn2_b"),
            w3, aff("bn3_g"), aff("bn3_b")]
    in_specs = [pl.BlockSpec((bB, rows, cin), lambda i: (i, 0, 0)),
                full_spec((cin, planes)), full_spec((1, planes)), full_spec((1, planes)),
                full_spec((9, planes, planes)), full_spec((1, planes)), full_spec((1, planes)),
                full_spec((planes, c4)), full_spec((1, c4)), full_spec((1, c4))]
    if has_ds:
        wd = jnp.transpose(params["ds_w"][:, :, 0, 0], (1, 0)).astype(bf16)  # (cin, c4)
        args += [wd, aff("ds_g"), aff("ds_b")]
        in_specs += [full_spec((cin, c4)), full_spec((1, c4)), full_spec((1, c4))]

    kernel = functools.partial(_bottleneck_kernel, bB=bB, s=s, Hs=Hs, Ws=Ws,
                               ho=ho, wo=wo, has_ds=has_ds, eps=_EPS)

    out = pl.pallas_call(
        kernel,
        out_shape=jax.ShapeDtypeStruct((B, rows_out, c4), bf16),
        grid=(B // bB,),
        in_specs=in_specs,
        out_specs=pl.BlockSpec((bB, rows_out, c4), lambda i: (i, 0, 0)),
        scratch_shapes=[pltpu.VMEM((n_ph, hq, wq, planes), bf16)],
        compiler_params=pltpu.CompilerParams(
            dimension_semantics=("parallel",),   # batch blocks shard across v7x's 2 TCs
            vmem_limit_bytes=_VMEM_LIMIT),
    )(*args)

    out_nhwc = out.reshape(B, ho, wo, c4)
    if layout == "NHWC":
        return out_nhwc
    # NCHW only for interface parity with the PyTorch module; prefer NHWC consumers so
    # this transpose can be dropped / fused downstream.
    return jnp.transpose(out_nhwc, (0, 3, 1, 2))


# ---------------------------------------------------------------------------
# Parameter init (PyTorch OIHW conv layout) + plain-XLA reference for checking
# ---------------------------------------------------------------------------
def init_bottleneck_params(key, in_channels, planes, stride, expansion=4):
    c4 = planes * expansion
    keys = jax.random.split(key, 12)

    def conv_w(k, cout, cin, ksz):
        fan_in = cin * ksz * ksz
        return jax.random.normal(k, (cout, cin, ksz, ksz), jnp.float32) * (2.0 / fan_in) ** 0.5

    def affine(kg, kb, c):
        g = 1.0 + 0.1 * jax.random.normal(kg, (c,), jnp.float32)
        b = 0.1 * jax.random.normal(kb, (c,), jnp.float32)
        return g, b

    p = {"conv1_w": conv_w(keys[0], planes, in_channels, 1),
         "conv2_w": conv_w(keys[1], planes, planes, 3),
         "conv3_w": conv_w(keys[2], c4, planes, 1)}
    p["bn1_g"], p["bn1_b"] = affine(keys[3], keys[4], planes)
    p["bn2_g"], p["bn2_b"] = affine(keys[5], keys[6], planes)
    p["bn3_g"], p["bn3_b"] = affine(keys[7], keys[8], c4)
    if stride != 1 or in_channels != c4:
        p["ds_w"] = conv_w(keys[9], c4, in_channels, 1)
        p["ds_g"], p["ds_b"] = affine(keys[10], keys[11], c4)
    return p


def reference_bottleneck(params, x_nchw, *, stride=1):
    """Plain-XLA reference with PyTorch Bottleneck semantics (conv operands rounded to
    bf16 to mirror the kernel's storage precision)."""
    f32 = jnp.float32

    def rnd(a):
        return a.astype(jnp.bfloat16).astype(f32)

    def conv(x, w, s=1, p=0):
        return jax.lax.conv_general_dilated(
            rnd(x), rnd(w), window_strides=(s, s), padding=[(p, p), (p, p)],
            dimension_numbers=("NCHW", "OIHW", "NCHW"))

    def gn(y, g, b):
        m = jnp.mean(y, axis=(1, 2, 3), keepdims=True)
        v = jnp.mean(jnp.square(y - m), axis=(1, 2, 3), keepdims=True)
        return (y - m) * jax.lax.rsqrt(v + _EPS) * g[None, :, None, None] + b[None, :, None, None]

    x = x_nchw.astype(f32)
    out = jax.nn.relu(gn(conv(x, params["conv1_w"]), params["bn1_g"], params["bn1_b"]))
    out = jax.nn.relu(gn(conv(out, params["conv2_w"], s=stride, p=1),
                         params["bn2_g"], params["bn2_b"]))
    out = gn(conv(out, params["conv3_w"]), params["bn3_g"], params["bn3_b"])
    if "ds_w" in params:
        res = gn(conv(x, params["ds_w"], s=stride), params["ds_g"], params["ds_b"])
    else:
        res = rnd(x)
    return jax.nn.relu(out + res)


if __name__ == "__main__":
    key = jax.random.PRNGKey(0)
    cases = [
        # (name, B, in_channels, planes, stride, H, W, block_batch)
        ("stride2_downsample", 2, 32, 16, 2, 16, 16, 1),   # Bottleneck(32, 16, stride=2)
        ("stride1_identity",   2, 64, 16, 1, 16, 16, 2),   # Bottleneck(64, 16, stride=1)
    ]
    for idx, (name, B, cin, planes, stride, H, W, bb) in enumerate(cases):
        params = init_bottleneck_params(jax.random.fold_in(key, 10 + idx), cin, planes, stride)
        x = jax.random.normal(jax.random.fold_in(key, 100 + idx), (B, cin, H, W), jnp.float32)

        fwd = jax.jit(functools.partial(bottleneck_forward, stride=stride, block_batch=bb))
        out = jax.block_until_ready(fwd(params, x))

        ho = (H - 1) // stride + 1
        wo = (W - 1) // stride + 1
        assert out.shape == (B, 4 * planes, ho, wo), (name, out.shape)
        out_f32 = out.astype(jnp.float32)
        assert bool(jnp.all(jnp.isfinite(out_f32))), name

        ref = reference_bottleneck(params, x, stride=stride)
        max_err = float(jnp.max(jnp.abs(out_f32 - ref)))
        assert max_err < 1e-1, f"{name}: max abs error vs reference too large: {max_err}"
    print("KERNEL_OK")
</pallas_src>

<mosaic_0001>
module attributes {stable_mosaic.version = 11 : i64} {
  func.func @_bottleneck_kernel(%arg0: i32, %arg1: memref<1x256x32xbf16, #tpu.memory_space<vmem>>, %arg2: memref<32x16xbf16, #tpu.memory_space<vmem>>, %arg3: memref<1x16xf32, #tpu.memory_space<vmem>>, %arg4: memref<1x16xf32, #tpu.memory_space<vmem>>, %arg5: memref<9x16x16xbf16, #tpu.memory_space<vmem>>, %arg6: memref<1x16xf32, #tpu.memory_space<vmem>>, %arg7: memref<1x16xf32, #tpu.memory_space<vmem>>, %arg8: memref<16x64xbf16, #tpu.memory_space<vmem>>, %arg9: memref<1x64xf32, #tpu.memory_space<vmem>>, %arg10: memref<1x64xf32, #tpu.memory_space<vmem>>, %arg11: memref<32x64xbf16, #tpu.memory_space<vmem>>, %arg12: memref<1x64xf32, #tpu.memory_space<vmem>>, %arg13: memref<1x64xf32, #tpu.memory_space<vmem>>, %arg14: memref<1x64x64xbf16, #tpu.memory_space<vmem>>, %arg15: memref<4x9x16x16xbf16, #tpu.memory_space<vmem>>) attributes {dimension_semantics = [#tpu.dimension_semantics<parallel>], iteration_bounds = array<i64: 2>, scalar_prefetch = 0 : i64, scratch_operands = 1 : i64, tpu.core_type = #tpu.core_type<tc>, window_params = [{transform_indices = @transform_0, window_bounds = array<i64: 1, 256, 32>}, {pipeline_mode = #tpu.pipeline_mode<synchronous>, transform_indices = @transform_1, window_bounds = array<i64: 32, 16>}, {pipeline_mode = #tpu.pipeline_mode<synchronous>, transform_indices = @transform_2, window_bounds = array<i64: 1, 16>}, {pipeline_mode = #tpu.pipeline_mode<synchronous>, transform_indices = @transform_3, window_bounds = array<i64: 1, 16>}, {pipeline_mode = #tpu.pipeline_mode<synchronous>, transform_indices = @transform_4, window_bounds = array<i64: 9, 16, 16>}, {pipeline_mode = #tpu.pipeline_mode<synchronous>, transform_indices = @transform_5, window_bounds = array<i64: 1, 16>}, {pipeline_mode = #tpu.pipeline_mode<synchronous>, transform_indices = @transform_6, window_bounds = array<i64: 1, 16>}, {pipeline_mode = #tpu.pipeline_mode<synchronous>, transform_indices = @transform_7, window_bounds = array<i64: 16, 64>}, {pipeline_mode = #tpu.pipeline_mode<synchronous>, transform_indices = @transform_8, window_bounds = array<i64: 1, 64>}, {pipeline_mode = #tpu.pipeline_mode<synchronous>, transform_indices = @transform_9, window_bounds = array<i64: 1, 64>}, {pipeline_mode = #tpu.pipeline_mode<synchronous>, transform_indices = @transform_10, window_bounds = array<i64: 32, 64>}, {pipeline_mode = #tpu.pipeline_mode<synchronous>, transform_indices = @transform_11, window_bounds = array<i64: 1, 64>}, {pipeline_mode = #tpu.pipeline_mode<synchronous>, transform_indices = @transform_12, window_bounds = array<i64: 1, 64>}, {transform_indices = @transform_13, window_bounds = array<i64: 1, 64, 64>}]} {
    %cst = arith.constant 0.000000e+00 : bf16
    %0 = vector.broadcast %cst : bf16 to vector<4x9x16x16xbf16>
    %c0 = arith.constant 0 : index
    %c0_0 = arith.constant 0 : index
    %c0_1 = arith.constant 0 : index
    %c0_2 = arith.constant 0 : index
    %1 = vector.load %arg15[%c0, %c0_0, %c0_1, %c0_2] : memref<4x9x16x16xbf16, #tpu.memory_space<vmem>>, vector<4x9x16x16xbf16>
    tpu.vector_store %arg15[%c0, %c0_0, %c0_1, %c0_2], %0 {strides = array<i32>} : memref<4x9x16x16xbf16, #tpu.memory_space<vmem>>, vector<4x9x16x16xbf16>,
    %c0_3 = arith.constant 0 : index
    %c0_4 = arith.constant 0 : index
    %2 = vector.load %arg2[%c0_3, %c0_4] : memref<32x16xbf16, #tpu.memory_space<vmem>>, vector<32x16xbf16>
    %c0_5 = arith.constant 0 : index
    %c0_6 = arith.constant 0 : index
    %3 = vector.load %arg8[%c0_5, %c0_6] : memref<16x64xbf16, #tpu.memory_space<vmem>>, vector<16x64xbf16>
    %c0_7 = arith.constant 0 : index
    %c0_8 = arith.constant 0 : index
    %4 = vector.load %arg3[%c0_7, %c0_8] : memref<1x16xf32, #tpu.memory_space<vmem>>, vector<1x16xf32>
    %c0_9 = arith.constant 0 : index
    %c0_10 = arith.constant 0 : index
    %5 = vector.load %arg4[%c0_9, %c0_10] : memref<1x16xf32, #tpu.memory_space<vmem>>, vector<1x16xf32>
    %c0_11 = arith.constant 0 : index
    %c0_12 = arith.constant 0 : index
    %6 = vector.load %arg6[%c0_11, %c0_12] : memref<1x16xf32, #tpu.memory_space<vmem>>, vector<1x16xf32>
    %c0_13 = arith.constant 0 : index
    %c0_14 = arith.constant 0 : index
    %7 = vector.load %arg7[%c0_13, %c0_14] : memref<1x16xf32, #tpu.memory_space<vmem>>, vector<1x16xf32>
    %c0_15 = arith.constant 0 : index
    %c0_16 = arith.constant 0 : index
    %8 = vector.load %arg9[%c0_15, %c0_16] : memref<1x64xf32, #tpu.memory_space<vmem>>, vector<1x64xf32>
    %c0_17 = arith.constant 0 : index
    %c0_18 = arith.constant 0 : index
    %9 = vector.load %arg10[%c0_17, %c0_18] : memref<1x64xf32, #tpu.memory_space<vmem>>, vector<1x64xf32>
    %c0_19 = arith.constant 0 : index
    %c0_20 = arith.constant 0 : index
    %c0_21 = arith.constant 0 : index
    %10 = vector.load %arg5[%c0_19, %c0_20, %c0_21] : memref<9x16x16xbf16, #tpu.memory_space<vmem>>, vector<1x16x16xbf16>
    %11 = vector.shape_cast %10 : vector<1x16x16xbf16> to vector<16x16xbf16>
    %c1 = arith.constant 1 : index
    %c0_22 = arith.constant 0 : index
    %c0_23 = arith.constant 0 : index
    %12 = vector.load %arg5[%c1, %c0_22, %c0_23] : memref<9x16x16xbf16, #tpu.memory_space<vmem>>, vector<1x16x16xbf16>
    %13 = vector.shape_cast %12 : vector<1x16x16xbf16> to vector<16x16xbf16>
    %c2 = arith.constant 2 : index
    %c0_24 = arith.constant 0 : index
    %c0_25 = arith.constant 0 : index
    %14 = vector.load %arg5[%c2, %c0_24, %c0_25] : memref<9x16x16xbf16, #tpu.memory_space<vmem>>, vector<1x16x16xbf16>
    %15 = vector.shape_cast %14 : vector<1x16x16xbf16> to vector<16x16xbf16>
    %c3 = arith.constant 3 : index
    %c0_26 = arith.constant 0 : index
    %c0_27 = arith.constant 0 : index
    %16 = vector.load %arg5[%c3, %c0_26, %c0_27] : memref<9x16x16xbf16, #tpu.memory_space<vmem>>, vector<1x16x16xbf16>
    %17 = vector.shape_cast %16 : vector<1x16x16xbf16> to vector<16x16xbf16>
    %c4 = arith.constant 4 : index
    %c0_28 = arith.constant 0 : index
    %c0_29 = arith.constant 0 : index
    %18 = vector.load %arg5[%c4, %c0_28, %c0_29] : memref<9x16x16xbf16, #tpu.memory_space<vmem>>, vector<1x16x16xbf16>
    %19 = vector.shape_cast %18 : vector<1x16x16xbf16> to vector<16x16xbf16>
    %c5 = arith.constant 5 : index
    %c0_30 = arith.constant 0 : index
    %c0_31 = arith.constant 0 : index
    %20 = vector.load %arg5[%c5, %c0_30, %c0_31] : memref<9x16x16xbf16, #tpu.memory_space<vmem>>, vector<1x16x16xbf16>
    %21 = vector.shape_cast %20 : vector<1x16x16xbf16> to vector<16x16xbf16>
    %c6 = arith.constant 6 : index
    %c0_32 = arith.constant 0 : index
    %c0_33 = arith.constant 0 : index
    %22 = vector.load %arg5[%c6, %c0_32, %c0_33] : memref<9x16x16xbf16, #tpu.memory_space<vmem>>, vector<1x16x16xbf16>
    %23 = vector.shape_cast %22 : vector<1x16x16xbf16> to vector<16x16xbf16>
    %c7 = arith.constant 7 : index
    %c0_34 = arith.constant 0 : index
    %c0_35 = arith.constant 0 : index
    %24 = vector.load %arg5[%c7, %c0_34, %c0_35] : memref<9x16x16xbf16, #tpu.memory_space<vmem>>, vector<1x16x16xbf16>
    %25 = vector.shape_cast %24 : vector<1x16x16xbf16> to vector<16x16xbf16>
    %c8 = arith.constant 8 : index
    %c0_36 = arith.constant 0 : index
    %c0_37 = arith.constant 0 : index
    %26 = vector.load %arg5[%c8, %c0_36, %c0_37] : memref<9x16x16xbf16, #tpu.memory_space<vmem>>, vector<1x16x16xbf16>
    %27 = vector.shape_cast %26 : vector<1x16x16xbf16> to vector<16x16xbf16>
    %c0_38 = arith.constant 0 : index
    %c0_39 = arith.constant 0 : index
    %28 = vector.load %arg11[%c0_38, %c0_39] : memref<32x64xbf16, #tpu.memory_space<vmem>>, vector<32x64xbf16>
    %c0_40 = arith.constant 0 : index
    %c0_41 = arith.constant 0 : index
    %29 = vector.load %arg12[%c0_40, %c0_41] : memref<1x64xf32, #tpu.memory_space<vmem>>, vector<1x64xf32>
    %c0_42 = arith.constant 0 : index
    %c0_43 = arith.constant 0 : index
    %30 = vector.load %arg13[%c0_42, %c0_43] : memref<1x64xf32, #tpu.memory_space<vmem>>, vector<1x64xf32>
    %c0_44 = arith.constant 0 : index
    %c0_45 = arith.constant 0 : index
    %c0_46 = arith.constant 0 : index
    %31 = vector.load %arg1[%c0_44, %c0_45, %c0_46] : memref<1x256x32xbf16, #tpu.memory_space<vmem>>, vector<1x256x32xbf16>
    %32 = vector.shape_cast %31 : vector<1x256x32xbf16> to vector<256x32xbf16>
    %cst_47 = arith.constant dense<0.000000e+00> : vector<256x16xf32>
    %33 = tpu.matmul %32, %2, %cst_47 {dimension_numbers = #tpu.dot_dimension_numbers<[1], [0], [0], [1], [0, 0, 1, 1], [], []>} : vector<256x32xbf16>, vector<32x16xbf16>, vector<256x16xf32> -> vector<256x16xf32>
    %34 = vector.shape_cast %33 : vector<256x16xf32> to vector<1x256x16xf32>
    %cst_48 = arith.constant dense<0.000000e+00> : vector<1xf32>
    %35 = vector.multi_reduction <add>, %34, %cst_48 [1, 2] : vector<1x256x16xf32> to vector<1xf32>
    %36 = vector.shape_cast %35 : vector<1xf32> to vector<1x1x1xf32>
    %37 = vector.extract %36[0, 0, 0] : f32 from vector<1x1x1xf32>
    %cst_49 = arith.constant 2.44140625E-4 : f32
    %38 = arith.mulf %37, %cst_49 : f32
    %39 = vector.broadcast %38 : f32 to vector<256x16xf32>
    %40 = arith.subf %33, %39 : vector<256x16xf32>
    %41 = arith.mulf %40, %40 : vector<256x16xf32>
    %42 = vector.shape_cast %41 : vector<256x16xf32> to vector<1x256x16xf32>
    %cst_50 = arith.constant dense<0.000000e+00> : vector<1xf32>
    %43 = vector.multi_reduction <add>, %42, %cst_50 [1, 2] : vector<1x256x16xf32> to vector<1xf32>
    %44 = vector.shape_cast %43 : vector<1xf32> to vector<1x1x1xf32>
    %45 = vector.extract %44[0, 0, 0] : f32 from vector<1x1x1xf32>
    %cst_51 = arith.constant 2.44140625E-4 : f32
    %46 = arith.mulf %45, %cst_51 : f32
    %cst_52 = arith.constant 9.99999974E-6 : f32
    %47 = arith.addf %46, %cst_52 : f32
    %48 = math.rsqrt %47 : f32
    %49 = vector.broadcast %48 : f32 to vector<256x16xf32>
    %50 = arith.mulf %40, %49 : vector<256x16xf32>
    %51 = vector.broadcast %4 : vector<1x16xf32> to vector<256x16xf32>
    %52 = arith.mulf %50, %51 : vector<256x16xf32>
    %53 = vector.broadcast %5 : vector<1x16xf32> to vector<256x16xf32>
    %54 = arith.addf %52, %53 : vector<256x16xf32>
    %cst_53 = arith.constant 0.000000e+00 : f32
    %55 = vector.broadcast %cst_53 : f32 to vector<256x16xf32>
    %56 = arith.maximumf %54, %55 : vector<256x16xf32>
    %57 = arith.truncf %56 : vector<256x16xf32> to vector<256x16xbf16>
    %58 = vector.shape_cast %57 : vector<256x16xbf16> to vector<4x8x8x16xbf16>
    %59 = vector.extract_strided_slice %58 {offsets = [0, 0, 0, 0], sizes = [1, 8, 8, 16], strides = [1, 1, 1, 1]} : vector<4x8x8x16xbf16> to vector<1x8x8x16xbf16>
    %60 = vector.shape_cast %59 : vector<1x8x8x16xbf16> to vector<8x8x16xbf16>
    %c0_54 = arith.constant 0 : index
    %c1_55 = arith.constant 1 : index
    %c8_56 = arith.constant 8 : index
    %c0_57 = arith.constant 0 : index
    %61 = vector.load %arg15[%c0_54, %c1_55, %c8_56, %c0_57] : memref<4x9x16x16xbf16, #tpu.memory_space<vmem>>, vector<1x8x8x16xbf16>
    %62 = vector.shape_cast %61 : vector<1x8x8x16xbf16> to vector<8x8x16xbf16>
    %63 = vector.shape_cast %60 : vector<8x8x16xbf16> to vector<1x8x8x16xbf16>
    tpu.vector_store %arg15[%c0_54, %c1_55, %c8_56, %c0_57], %63 {strides = array<i32>} : memref<4x9x16x16xbf16, #tpu.memory_space<vmem>>, vector<1x8x8x16xbf16>,
    %64 = vector.extract_strided_slice %58 {offsets = [1, 0, 0, 0], sizes = [1, 8, 8, 16], strides = [1, 1, 1, 1]} : vector<4x8x8x16xbf16> to vector<1x8x8x16xbf16>
    %65 = vector.shape_cast %64 : vector<1x8x8x16xbf16> to vector<8x8x16xbf16>
    %c1_58 = arith.constant 1 : index
    %c1_59 = arith.constant 1 : index
    %c0_60 = arith.constant 0 : index
    %c0_61 = arith.constant 0 : index
    %66 = vector.load %arg15[%c1_58, %c1_59, %c0_60, %c0_61] : memref<4x9x16x16xbf16, #tpu.memory_space<vmem>>, vector<1x8x8x16xbf16>
    %67 = vector.shape_cast %66 : vector<1x8x8x16xbf16> to vector<8x8x16xbf16>
    %68 = vector.shape_cast %65 : vector<8x8x16xbf16> to vector<1x8x8x16xbf16>
    tpu.vector_store %arg15[%c1_58, %c1_59, %c0_60, %c0_61], %68 {strides = array<i32>} : memref<4x9x16x16xbf16, #tpu.memory_space<vmem>>, vector<1x8x8x16xbf16>,
    %69 = vector.extract_strided_slice %58 {offsets = [2, 0, 0, 0], sizes = [1, 8, 8, 16], strides = [1, 1, 1, 1]} : vector<4x8x8x16xbf16> to vector<1x8x8x16xbf16>
    %70 = vector.shape_cast %69 : vector<1x8x8x16xbf16> to vector<8x8x16xbf16>
    %c2_62 = arith.constant 2 : index
    %c0_63 = arith.constant 0 : index
    %c8_64 = arith.constant 8 : index
    %c0_65 = arith.constant 0 : index
    %71 = vector.load %arg15[%c2_62, %c0_63, %c8_64, %c0_65] : memref<4x9x16x16xbf16, #tpu.memory_space<vmem>>, vector<1x8x8x16xbf16>
    %72 = vector.shape_cast %71 : vector<1x8x8x16xbf16> to vector<8x8x16xbf16>
    %73 = vector.shape_cast %70 : vector<8x8x16xbf16> to vector<1x8x8x16xbf16>
    tpu.vector_store %arg15[%c2_62, %c0_63, %c8_64, %c0_65], %73 {strides = array<i32>} : memref<4x9x16x16xbf16, #tpu.memory_space<vmem>>, vector<1x8x8x16xbf16>,
    %74 = vector.extract_strided_slice %58 {offsets = [3, 0, 0, 0], sizes = [1, 8, 8, 16], strides = [1, 1, 1, 1]} : vector<4x8x8x16xbf16> to vector<1x8x8x16xbf16>
    %75 = vector.shape_cast %74 : vector<1x8x8x16xbf16> to vector<8x8x16xbf16>
    %c3_66 = arith.constant 3 : index
    %c0_67 = arith.constant 0 : index
    %c0_68 = arith.constant 0 : index
    %c0_69 = arith.constant 0 : index
    %76 = vector.load %arg15[%c3_66, %c0_67, %c0_68, %c0_69] : memref<4x9x16x16xbf16, #tpu.memory_space<vmem>>, vector<1x8x8x16xbf16>
    %77 = vector.shape_cast %76 : vector<1x8x8x16xbf16> to vector<8x8x16xbf16>
    %78 = vector.shape_cast %75 : vector<8x8x16xbf16> to vector<1x8x8x16xbf16>
    tpu.vector_store %arg15[%c3_66, %c0_67, %c0_68, %c0_69], %78 {strides = array<i32>} : memref<4x9x16x16xbf16, #tpu.memory_space<vmem>>, vector<1x8x8x16xbf16>,
    %cst_70 = arith.constant 0.000000e+00 : f32
    %79 = vector.broadcast %cst_70 : f32 to vector<64x16xf32>
    %c0_71 = arith.constant 0 : index
    %c0_72 = arith.constant 0 : index
    %c7_73 = arith.constant 7 : index
    %c0_74 = arith.constant 0 : index
    %80 = vector.load %arg15[%c0_71, %c0_72, %c7_73, %c0_74] : memref<4x9x16x16xbf16, #tpu.memory_space<vmem>>, vector<1x8x8x16xbf16>
    %81 = vector.shape_cast %80 : vector<1x8x8x16xbf16> to vector<8x8x16xbf16>
    %82 = vector.shape_cast %81 : vector<8x8x16xbf16> to vector<64x16xbf16>
    %cst_75 = arith.constant dense<0.000000e+00> : vector<64x16xf32>
    %83 = tpu.matmul %82, %11, %cst_75 {dimension_numbers = #tpu.dot_dimension_numbers<[1], [0], [0], [1], [0, 0, 1, 1], [], []>} : vector<64x16xbf16>, vector<16x16xbf16>, vector<64x16xf32> -> vector<64x16xf32>
    %84 = arith.addf %79, %83 : vector<64x16xf32>
    %c1_76 = arith.constant 1 : index
    %c0_77 = arith.constant 0 : index
    %c0_78 = arith.constant 0 : index
    %c0_79 = arith.constant 0 : index
    %85 = vector.load %arg15[%c1_76, %c0_77, %c0_78, %c0_79] : memref<4x9x16x16xbf16, #tpu.memory_space<vmem>>, vector<1x8x8x16xbf16>
    %86 = vector.shape_cast %85 : vector<1x8x8x16xbf16> to vector<8x8x16xbf16>
    %87 = vector.shape_cast %86 : vector<8x8x16xbf16> to vector<64x16xbf16>
    %cst_80 = arith.constant dense<0.000000e+00> : vector<64x16xf32>
    %88 = tpu.matmul %87, %13, %cst_80 {dimension_numbers = #tpu.dot_dimension_numbers<[1], [0], [0], [1], [0, 0, 1, 1], [], []>} : vector<64x16xbf16>, vector<16x16xbf16>, vector<64x16xf32> -> vector<64x16xf32>
    %89 = arith.addf %84, %88 : vector<64x16xf32>
    %c0_81 = arith.constant 0 : index
    %c0_82 = arith.constant 0 : index
    %c8_83 = arith.constant 8 : index
    %c0_84 = arith.constant 0 : index
    %90 = vector.load %arg15[%c0_81, %c0_82, %c8_83, %c0_84] : memref<4x9x16x16xbf16, #tpu.memory_space<vmem>>, vector<1x8x8x16xbf16>
    %91 = vector.shape_cast %90 : vector<1x8x8x16xbf16> to vector<8x8x16xbf16>
    %92 = vector.shape_cast %91 : vector<8x8x16xbf16> to vector<64x16xbf16>
    %cst_85 = arith.constant dense<0.000000e+00> : vector<64x16xf32>
    %93 = tpu.matmul %92, %15, %cst_85 {dimension_numbers = #tpu.dot_dimension_numbers<[1], [0], [0], [1], [0, 0, 1, 1], [], []>} : vector<64x16xbf16>, vector<16x16xbf16>, vector<64x16xf32> -> vector<64x16xf32>
    %94 = arith.addf %89, %93 : vector<64x16xf32>
    %c2_86 = arith.constant 2 : index
    %c0_87 = arith.constant 0 : index
    %c7_88 = arith.constant 7 : index
    %c0_89 = arith.constant 0 : index
    %95 = vector.load %arg15[%c2_86, %c0_87, %c7_88, %c0_89] : memref<4x9x16x16xbf16, #tpu.memory_space<vmem>>, vector<1x8x8x16xbf16>
    %96 = vector.shape_cast %95 : vector<1x8x8x16xbf16> to vector<8x8x16xbf16>
    %97 = vector.shape_cast %96 : vector<8x8x16xbf16> to vector<64x16xbf16>
    %cst_90 = arith.constant dense<0.000000e+00> : vector<64x16xf32>
    %98 = tpu.matmul %97, %17, %cst_90 {dimension_numbers = #tpu.dot_dimension_numbers<[1], [0], [0], [1], [0, 0, 1, 1], [], []>} : vector<64x16xbf16>, vector<16x16xbf16>, vector<64x16xf32> -> vector<64x16xf32>
    %99 = arith.addf %94, %98 : vector<64x16xf32>
    %c3_91 = arith.constant 3 : index
    %c0_92 = arith.constant 0 : index
    %c0_93 = arith.constant 0 : index
    %c0_94 = arith.constant 0 : index
    %100 = vector.load %arg15[%c3_91, %c0_92, %c0_93, %c0_94] : memref<4x9x16x16xbf16, #tpu.memory_space<vmem>>, vector<1x8x8x16xbf16>
    %101 = vector.shape_cast %100 : vector<1x8x8x16xbf16> to vector<8x8x16xbf16>
    %102 = vector.shape_cast %101 : vector<8x8x16xbf16> to vector<64x16xbf16>
    %cst_95 = arith.constant dense<0.000000e+00> : vector<64x16xf32>
    %103 = tpu.matmul %102, %19, %cst_95 {dimension_numbers = #tpu.dot_dimension_numbers<[1], [0], [0], [1], [0, 0, 1, 1], [], []>} : vector<64x16xbf16>, vector<16x16xbf16>, vector<64x16xf32> -> vector<64x16xf32>
    %104 = arith.addf %99, %103 : vector<64x16xf32>
    %c2_96 = arith.constant 2 : index
    %c0_97 = arith.constant 0 : index
    %c8_98 = arith.constant 8 : index
    %c0_99 = arith.constant 0 : index
    %105 = vector.load %arg15[%c2_96, %c0_97, %c8_98, %c0_99] : memref<4x9x16x16xbf16, #tpu.memory_space<vmem>>, vector<1x8x8x16xbf16>
    %106 = vector.shape_cast %105 : vector<1x8x8x16xbf16> to vector<8x8x16xbf16>
    %107 = vector.shape_cast %106 : vector<8x8x16xbf16> to vector<64x16xbf16>
    %cst_100 = arith.constant dense<0.000000e+00> : vector<64x16xf32>
    %108 = tpu.matmul %107, %21, %cst_100 {dimension_numbers = #tpu.dot_dimension_numbers<[1], [0], [0], [1], [0, 0, 1, 1], [], []>} : vector<64x16xbf16>, vector<16x16xbf16>, vector<64x16xf32> -> vector<64x16xf32>
    %109 = arith.addf %104, %108 : vector<64x16xf32>
    %c0_101 = arith.constant 0 : index
    %c1_102 = arith.constant 1 : index
    %c7_103 = arith.constant 7 : index
    %c0_104 = arith.constant 0 : index
    %110 = vector.load %arg15[%c0_101, %c1_102, %c7_103, %c0_104] : memref<4x9x16x16xbf16, #tpu.memory_space<vmem>>, vector<1x8x8x16xbf16>
    %111 = vector.shape_cast %110 : vector<1x8x8x16xbf16> to vector<8x8x16xbf16>
    %112 = vector.shape_cast %111 : vector<8x8x16xbf16> to vector<64x16xbf16>
    %cst_105 = arith.constant dense<0.000000e+00> : vector<64x16xf32>
    %113 = tpu.matmul %112, %23, %cst_105 {dimension_numbers = #tpu.dot_dimension_numbers<[1], [0], [0], [1], [0, 0, 1, 1], [], []>} : vector<64x16xbf16>, vector<16x16xbf16>, vector<64x16xf32> -> vector<64x16xf32>
    %114 = arith.addf %109, %113 : vector<64x16xf32>
    %c1_106 = arith.constant 1 : index
    %c1_107 = arith.constant 1 : index
    %c0_108 = arith.constant 0 : index
    %c0_109 = arith.constant 0 : index
    %115 = vector.load %arg15[%c1_106, %c1_107, %c0_108, %c0_109] : memref<4x9x16x16xbf16, #tpu.memory_space<vmem>>, vector<1x8x8x16xbf16>
    %116 = vector.shape_cast %115 : vector<1x8x8x16xbf16> to vector<8x8x16xbf16>
    %117 = vector.shape_cast %116 : vector<8x8x16xbf16> to vector<64x16xbf16>
    %cst_110 = arith.constant dense<0.000000e+00> : vector<64x16xf32>
    %118 = tpu.matmul %117, %25, %cst_110 {dimension_numbers = #tpu.dot_dimension_numbers<[1], [0], [0], [1], [0, 0, 1, 1], [], []>} : vector<64x16xbf16>, vector<16x16xbf16>, vector<64x16xf32> -> vector<64x16xf32>
    %119 = arith.addf %114, %118 : vector<64x16xf32>
    %c0_111 = arith.constant 0 : index
    %c1_112 = arith.constant 1 : index
    %c8_113 = arith.constant 8 : index
    %c0_114 = arith.constant 0 : index
    %120 = vector.load %arg15[%c0_111, %c1_112, %c8_113, %c0_114] : memref<4x9x16x16xbf16, #tpu.memory_space<vmem>>, vector<1x8x8x16xbf16>
    %121 = vector.shape_cast %120 : vector<1x8x8x16xbf16> to vector<8x8x16xbf16>
    %122 = vector.shape_cast %121 : vector<8x8x16xbf16> to vector<64x16xbf16>
    %cst_115 = arith.constant dense<0.000000e+00> : vector<64x16xf32>
    %123 = tpu.matmul %122, %27, %cst_115 {dimension_numbers = #tpu.dot_dimension_numbers<[1], [0], [0], [1], [0, 0, 1, 1], [], []>} : vector<64x16xbf16>, vector<16x16xbf16>, vector<64x16xf32> -> vector<64x16xf32>
    %124 = arith.addf %119, %123 : vector<64x16xf32>
    %125 = vector.shape_cast %124 : vector<64x16xf32> to vector<1x64x16xf32>
    %cst_116 = arith.constant dense<0.000000e+00> : vector<1xf32>
    %126 = vector.multi_reduction <add>, %125, %cst_116 [1, 2] : vector<1x64x16xf32> to vector<1xf32>
    %127 = vector.shape_cast %126 : vector<1xf32> to vector<1x1x1xf32>
    %128 = vector.extract %127[0, 0, 0] : f32 from vector<1x1x1xf32>
    %cst_117 = arith.constant 9.765625E-4 : f32
    %129 = arith.mulf %128, %cst_117 : f32
    %130 = vector.broadcast %129 : f32 to vector<64x16xf32>
    %131 = arith.subf %124, %130 : vector<64x16xf32>
    %132 = arith.mulf %131, %131 : vector<64x16xf32>
    %133 = vector.shape_cast %132 : vector<64x16xf32> to vector<1x64x16xf32>
    %cst_118 = arith.constant dense<0.000000e+00> : vector<1xf32>
    %134 = vector.multi_reduction <add>, %133, %cst_118 [1, 2] : vector<1x64x16xf32> to vector<1xf32>
    %135 = vector.shape_cast %134 : vector<1xf32> to vector<1x1x1xf32>
    %136 = vector.extract %135[0, 0, 0] : f32 from vector<1x1x1xf32>
    %cst_119 = arith.constant 9.765625E-4 : f32
    %137 = arith.mulf %136, %cst_119 : f32
    %cst_120 = arith.constant 9.99999974E-6 : f32
    %138 = arith.addf %137, %cst_120 : f32
    %139 = math.rsqrt %138 : f32
    %140 = vector.broadcast %139 : f32 to vector<64x16xf32>
    %141 = arith.mulf %131, %140 : vector<64x16xf32>
    %142 = vector.broadcast %6 : vector<1x16xf32> to vector<64x16xf32>
    %143 = arith.mulf %141, %142 : vector<64x16xf32>
    %144 = vector.broadcast %7 : vector<1x16xf32> to vector<64x16xf32>
    %145 = arith.addf %143, %144 : vector<64x16xf32>
    %cst_121 = arith.constant 0.000000e+00 : f32
    %146 = vector.broadcast %cst_121 : f32 to vector<64x16xf32>
    %147 = arith.maximumf %145, %146 : vector<64x16xf32>
    %148 = arith.truncf %147 : vector<64x16xf32> to vector<64x16xbf16>
    %cst_122 = arith.constant dense<0.000000e+00> : vector<64x64xf32>
    %149 = tpu.matmul %148, %3, %cst_122 {dimension_numbers = #tpu.dot_dimension_numbers<[1], [0], [0], [1], [0, 0, 1, 1], [], []>} : vector<64x16xbf16>, vector<16x64xbf16>, vector<64x64xf32> -> vector<64x64xf32>
    %150 = vector.shape_cast %149 : vector<64x64xf32> to vector<1x64x64xf32>
    %cst_123 = arith.constant dense<0.000000e+00> : vector<1xf32>
    %151 = vector.multi_reduction <add>, %150, %cst_123 [1, 2] : vector<1x64x64xf32> to vector<1xf32>
    %152 = vector.shape_cast %151 : vector<1xf32> to vector<1x1x1xf32>
    %153 = vector.extract %152[0, 0, 0] : f32 from vector<1x1x1xf32>
    %cst_124 = arith.constant 2.44140625E-4 : f32
    %154 = arith.mulf %153, %cst_124 : f32
    %155 = vector.broadcast %154 : f32 to vector<64x64xf32>
    %156 = arith.subf %149, %155 : vector<64x64xf32>
    %157 = arith.mulf %156, %156 : vector<64x64xf32>
    %158 = vector.shape_cast %157 : vector<64x64xf32> to vector<1x64x64xf32>
    %cst_125 = arith.constant dense<0.000000e+00> : vector<1xf32>
    %159 = vector.multi_reduction <add>, %158, %cst_125 [1, 2] : vector<1x64x64xf32> to vector<1xf32>
    %160 = vector.shape_cast %159 : vector<1xf32> to vector<1x1x1xf32>
    %161 = vector.extract %160[0, 0, 0] : f32 from vector<1x1x1xf32>
    %cst_126 = arith.constant 2.44140625E-4 : f32
    %162 = arith.mulf %161, %cst_126 : f32
    %cst_127 = arith.constant 9.99999974E-6 : f32
    %163 = arith.addf %162, %cst_127 : f32
    %164 = math.rsqrt %163 : f32
    %165 = vector.broadcast %164 : f32 to vector<64x64xf32>
    %166 = arith.mulf %156, %165 : vector<64x64xf32>
    %167 = vector.broadcast %8 : vector<1x64xf32> to vector<64x64xf32>
    %168 = arith.mulf %166, %167 : vector<64x64xf32>
    %169 = vector.broadcast %9 : vector<1x64xf32> to vector<64x64xf32>
    %170 = arith.addf %168, %169 : vector<64x64xf32>
    %c0_128 = arith.constant 0 : index
    %c192 = arith.constant 192 : index
    %c0_129 = arith.constant 0 : index
    %171 = vector.load %arg1[%c0_128, %c192, %c0_129] : memref<1x256x32xbf16, #tpu.memory_space<vmem>>, vector<1x64x32xbf16>
    %172 = vector.shape_cast %171 : vector<1x64x32xbf16> to vector<64x32xbf16>
    %cst_130 = arith.constant dense<0.000000e+00> : vector<64x64xf32>
    %173 = tpu.matmul %172, %28, %cst_130 {dimension_numbers = #tpu.dot_dimension_numbers<[1], [0], [0], [1], [0, 0, 1, 1], [], []>} : vector<64x32xbf16>, vector<32x64xbf16>, vector<64x64xf32> -> vector<64x64xf32>
    %174 = vector.shape_cast %173 : vector<64x64xf32> to vector<1x64x64xf32>
    %cst_131 = arith.constant dense<0.000000e+00> : vector<1xf32>
    %175 = vector.multi_reduction <add>, %174, %cst_131 [1, 2] : vector<1x64x64xf32> to vector<1xf32>
    %176 = vector.shape_cast %175 : vector<1xf32> to vector<1x1x1xf32>
    %177 = vector.extract %176[0, 0, 0] : f32 from vector<1x1x1xf32>
    %cst_132 = arith.constant 2.44140625E-4 : f32
    %178 = arith.mulf %177, %cst_132 : f32
    %179 = vector.broadcast %178 : f32 to vector<64x64xf32>
    %180 = arith.subf %173, %179 : vector<64x64xf32>
    %181 = arith.mulf %180, %180 : vector<64x64xf32>
    %182 = vector.shape_cast %181 : vector<64x64xf32> to vector<1x64x64xf32>
    %cst_133 = arith.constant dense<0.000000e+00> : vector<1xf32>
    %183 = vector.multi_reduction <add>, %182, %cst_133 [1, 2] : vector<1x64x64xf32> to vector<1xf32>
    %184 = vector.shape_cast %183 : vector<1xf32> to vector<1x1x1xf32>
    %185 = vector.extract %184[0, 0, 0] : f32 from vector<1x1x1xf32>
    %cst_134 = arith.constant 2.44140625E-4 : f32
    %186 = arith.mulf %185, %cst_134 : f32
    %cst_135 = arith.constant 9.99999974E-6 : f32
    %187 = arith.addf %186, %cst_135 : f32
    %188 = math.rsqrt %187 : f32
    %189 = vector.broadcast %188 : f32 to vector<64x64xf32>
    %190 = arith.mulf %180, %189 : vector<64x64xf32>
    %191 = vector.broadcast %29 : vector<1x64xf32> to vector<64x64xf32>
    %192 = arith.mulf %190, %191 : vector<64x64xf32>
    %193 = vector.broadcast %30 : vector<1x64xf32> to vector<64x64xf32>
    %194 = arith.addf %192, %193 : vector<64x64xf32>
    %195 = arith.addf %170, %194 : vector<64x64xf32>
    %cst_136 = arith.constant 0.000000e+00 : f32
    %196 = vector.broadcast %cst_136 : f32 to vector<64x64xf32>
    %197 = arith.maximumf %195, %196 : vector<64x64xf32>
    %198 = arith.truncf %197 : vector<64x64xf32> to vector<64x64xbf16>
    %c0_137 = arith.constant 0 : index
    %c0_138 = arith.constant 0 : index
    %c0_139 = arith.constant 0 : index
    %199 = vector.load %arg14[%c0_137, %c0_138, %c0_139] : memref<1x64x64xbf16, #tpu.memory_space<vmem>>, vector<1x64x64xbf16>
    %200 = vector.shape_cast %199 : vector<1x64x64xbf16> to vector<64x64xbf16>
    %201 = vector.shape_cast %198 : vector<64x64xbf16> to vector<1x64x64xbf16>
    tpu.vector_store %arg14[%c0_137, %c0_138, %c0_139], %201 {strides = array<i32>} : memref<1x64x64xbf16, #tpu.memory_space<vmem>>, vector<1x64x64xbf16>,
    return
  }
  func.func @transform_0(%arg0: i32) -> (i32, i32, i32) {
    %c0_i32 = arith.constant 0 : i32
    %c0_i32_0 = arith.constant 0 : i32
    %c0_i32_1 = arith.constant 0 : i32
    return %arg0, %c0_i32, %c0_i32_0 : i32, i32, i32
  }
  func.func @transform_1(%arg0: i32) -> (i32, i32) {
    %c0_i32 = arith.constant 0 : i32
    %c0_i32_0 = arith.constant 0 : i32
    %c0_i32_1 = arith.constant 0 : i32
    return %c0_i32, %c0_i32_0 : i32, i32
  }
  func.func @transform_2(%arg0: i32) -> (i32, i32) {
    %c0_i32 = arith.constant 0 : i32
    %c0_i32_0 = arith.constant 0 : i32
    %c0_i32_1 = arith.constant 0 : i32
    return %c0_i32, %c0_i32_0 : i32, i32
  }
  func.func @transform_3(%arg0: i32) -> (i32, i32) {
    %c0_i32 = arith.constant 0 : i32
    %c0_i32_0 = arith.constant 0 : i32
    %c0_i32_1 = arith.constant 0 : i32
    return %c0_i32, %c0_i32_0 : i32, i32
  }
  func.func @transform_4(%arg0: i32) -> (i32, i32, i32) {
    %c0_i32 = arith.constant 0 : i32
    %c0_i32_0 = arith.constant 0 : i32
    %c0_i32_1 = arith.constant 0 : i32
    %c0_i32_2 = arith.constant 0 : i32
    return %c0_i32, %c0_i32_0, %c0_i32_1 : i32, i32, i32
  }
  func.func @transform_5(%arg0: i32) -> (i32, i32) {
    %c0_i32 = arith.constant 0 : i32
    %c0_i32_0 = arith.constant 0 : i32
    %c0_i32_1 = arith.constant 0 : i32
    return %c0_i32, %c0_i32_0 : i32, i32
  }
  func.func @transform_6(%arg0: i32) -> (i32, i32) {
    %c0_i32 = arith.constant 0 : i32
    %c0_i32_0 = arith.constant 0 : i32
    %c0_i32_1 = arith.constant 0 : i32
    return %c0_i32, %c0_i32_0 : i32, i32
  }
  func.func @transform_7(%arg0: i32) -> (i32, i32) {
    %c0_i32 = arith.constant 0 : i32
    %c0_i32_0 = arith.constant 0 : i32
    %c0_i32_1 = arith.constant 0 : i32
    return %c0_i32, %c0_i32_0 : i32, i32
  }
  func.func @transform_8(%arg0: i32) -> (i32, i32) {
    %c0_i32 = arith.constant 0 : i32
    %c0_i32_0 = arith.constant 0 : i32
    %c0_i32_1 = arith.constant 0 : i32
    return %c0_i32, %c0_i32_0 : i32, i32
  }
  func.func @transform_9(%arg0: i32) -> (i32, i32) {
    %c0_i32 = arith.constant 0 : i32
    %c0_i32_0 = arith.constant 0 : i32
    %c0_i32_1 = arith.constant 0 : i32
    return %c0_i32, %c0_i32_0 : i32, i32
  }
  func.func @transform_10(%arg0: i32) -> (i32, i32) {
    %c0_i32 = arith.constant 0 : i32
    %c0_i32_0 = arith.constant 0 : i32
    %c0_i32_1 = arith.constant 0 : i32
    return %c0_i32, %c0_i32_0 : i32, i32
  }
  func.func @transform_11(%arg0: i32) -> (i32, i32) {
    %c0_i32 = arith.constant 0 : i32
    %c0_i32_0 = arith.constant 0 : i32
    %c0_i32_1 = arith.constant 0 : i32
    return %c0_i32, %c0_i32_0 : i32, i32
  }
  func.func @transform_12(%arg0: i32) -> (i32, i32) {
    %c0_i32 = arith.constant 0 : i32
    %c0_i32_0 = arith.constant 0 : i32
    %c0_i32_1 = arith.constant 0 : i32
    return %c0_i32, %c0_i32_0 : i32, i32
  }
  func.func @transform_13(%arg0: i32) -> (i32, i32, i32) {
    %c0_i32 = arith.constant 0 : i32
    %c0_i32_0 = arith.constant 0 : i32
    %c0_i32_1 = arith.constant 0 : i32
    return %arg0, %c0_i32, %c0_i32_0 : i32, i32, i32
  }
}

</mosaic_0001>

<llo_original>
// kernel: bottleneck_forward.1
$region0: #{bottleneck_forward.1}
  #allocation0 [shape = 'u32[]', space=smem, size = 0x4, offset = 0x4, fixed_abs, tag = 'smem constant byte address 0x4 - core index']
  #allocation1 [shape = 'u32[72,128]{1,0:T(1,128)}', space=vmem, size = 0x9000, scoped, tag = 'internal scratch']
  #allocation2 [shape = 'bf16[4,9,16,16]{3,2,1,0:T(8,128)(2,1)}', space=vmem, size = 0x24000, scoped, tag = 'scratch operand']
  %s0 = inlined_call_operand.vmem [shape: bf16[2,256,32], index: 0, kind: input, shape index: {}]
  %s1 = inlined_call_operand.vmem [shape: bf16[32,16], index: 1, kind: input, shape index: {}]
  %s2 = inlined_call_operand.vmem [shape: f32[1,16], index: 2, kind: input, shape index: {}]
  %s3 = inlined_call_operand.vmem [shape: f32[1,16], index: 3, kind: input, shape index: {}]
  %s4 = inlined_call_operand.vmem [shape: bf16[9,16,16], index: 4, kind: input, shape index: {}]
  %s5 = inlined_call_operand.vmem [shape: f32[1,16], index: 5, kind: input, shape index: {}]
  %s6 = inlined_call_operand.vmem [shape: f32[1,16], index: 6, kind: input, shape index: {}]
  %s7 = inlined_call_operand.vmem [shape: bf16[16,64], index: 7, kind: input, shape index: {}]
  %s8 = inlined_call_operand.vmem [shape: f32[1,64], index: 8, kind: input, shape index: {}]
  %s9 = inlined_call_operand.vmem [shape: f32[1,64], index: 9, kind: input, shape index: {}]
  %s10 = inlined_call_operand.vmem [shape: bf16[32,64], index: 10, kind: input, shape index: {}]
  %s11 = inlined_call_operand.vmem [shape: f32[1,64], index: 11, kind: input, shape index: {}]
  %s12 = inlined_call_operand.vmem [shape: f32[1,64], index: 12, kind: input, shape index: {}]
  %s13 = inlined_call_operand.hbm [shape: bf16[2,64,64], index: 13, kind: output, shape index: {}]
  %s14 = sld [smem:[#allocation0]]
  $region85: #{bottleneck_forward.1} parent=0
    _
  %s16 = ssub.s32 1, %s14
  %s17 = scalar_select 0, %s16, %s14
  $region1: #{bottleneck_forward.1} parent=0
    #allocation3 [shape = 'u8[32768]{0}', space=vmem, size = 0x8000, scoped, tag = 'output window, operand 0']
    #allocation4 [shape = 's32[2]{0}', space=sflag, size = 0x8, scoped, tag = 'scoped memory for bottleneck_forward.1']
    %18 = vsyncpa [#allocation4], 0
    %s19 = scalar_lea.sflag [#allocation4], 1
    %20 = vsyncpa %s19, 0
    loop: start=0, step=1, limit=4
    $region2: #{bottleneck_forward.1} parent=1 // loop_pre_header
      _
    $region3: #{bottleneck_forward.1} parent=1 // loop_header
      %s22 = sphi 0, %s26
      %p23 = scmp.ge.s32.totalorder %s22, 4
      %s32 = sphi 0, %s34
      %s35 = sphi 0, %s32
      %s36 = sphi 0, %s35
      %s52 = sphi 0, %s36
      %s56 = sphi 0, %s56
      %s58 = sphi 0, %s56
      %s59 = sphi 0, %s58
      %s73 = sphi 0, %s59
      %s77 = sphi 0, %s77
      %s79 = sphi 0, %s77
      %s80 = sphi 0, %s79
      %s94 = sphi 0, %s80
      %s98 = sphi 0, %s98
      %s100 = sphi 0, %s98
      %s101 = sphi 0, %s100
      %s115 = sphi 0, %s101
      %s119 = sphi 0, %s119
      %s121 = sphi 0, %s119
      %s122 = sphi 0, %s121
      %s136 = sphi 0, %s122
      %s140 = sphi 0, %s140
      %s142 = sphi 0, %s140
      %s143 = sphi 0, %s142
      %s157 = sphi 0, %s143
      %s161 = sphi 0, %s161
      %s163 = sphi 0, %s161
      %s164 = sphi 0, %s163
      %s178 = sphi 0, %s164
      %s182 = sphi 0, %s182
      %s184 = sphi 0, %s182
      %s185 = sphi 0, %s184
      %s199 = sphi 0, %s185
      %s203 = sphi 0, %s203
      %s205 = sphi 0, %s203
      %s206 = sphi 0, %s205
      %s220 = sphi 0, %s206
      %s224 = sphi 0, %s224
      %s226 = sphi 0, %s224
      %s227 = sphi 0, %s226
      %s241 = sphi 0, %s227
      %s245 = sphi 0, %s245
      %s247 = sphi 0, %s245
      %s248 = sphi 0, %s247
      %s262 = sphi 0, %s248
      %s266 = sphi 0, %s266
      %s268 = sphi 0, %s266
      %s269 = sphi 0, %s268
      %s283 = sphi 0, %s269
      %s287 = sphi 0, %s287
      %s289 = sphi 0, %s287
      %s290 = sphi 0, %s289
      %s304 = sphi 0, %s290
      %s310 = sphi 0, %s312
      %s313 = sphi 0, %s310
      %s314 = sphi 0, %s313
      %s330 = sphi 0, %s314
    $region4: #{bottleneck_forward.1} parent=1 // loop_header_branch
      %25 = sbr.rel (%p23) target = $region8
    $region5: #{bottleneck_forward.1} parent=1 // loop_body
      %s27 = ssub.s32 %s22, 1
      %s28 = ssub.s32 %s22, 2
      %s29 = sadd.s32 %s22, 1
      %s30 = ssub.s32 %s22, %s29
      %p31 = scmp.eq.s32.totalorder %s30, 0
      %s33 = sadd.s32 %s32, 1
      %s34 = scalar_select %p31, %s32, %s33
      %p37 = pneg %p31
      %p38 = scmp.eq.s32.totalorder %s22, 1
      %p39 = por %p37, %p38
      %p40 = scmp.ne.s32.totalorder %s32, %s35
      %p41 = scmp.eq.s32.totalorder %s22, 0
      %p42 = por %p40, %p41
      %p43 = scmp.ne.s32.totalorder %s32, %s35
      %p44 = scmp.eq.s32.totalorder %s27, 1
      %p45 = por %p43, %p44
      %p46 = scmp.ne.s32.totalorder %s35, %s36
      %p47 = scmp.eq.s32.totalorder %s27, 0
      %p48 = por %p46, %p47
      %p49 = scmp.ne.s32.totalorder %s35, %s36
      %p50 = scmp.eq.s32.totalorder %s28, 1
      %p51 = por %p49, %p50
      %p53 = scmp.ne.s32.totalorder %s36, %s52
      %p54 = scmp.eq.s32.totalorder %s28, 0
      %p55 = por %p53, %p54
      %s57 = sadd.s32 %s56, 1
      %p60 = scmp.eq.s32.totalorder %s22, 1
      %p61 = scmp.ne.s32.totalorder %s56, %s58
      %p62 = scmp.eq.s32.totalorder %s22, 0
      %p63 = por %p61, %p62
      %p64 = scmp.ne.s32.totalorder %s56, %s58
      %p65 = scmp.eq.s32.totalorder %s27, 1
      %p66 = por %p64, %p65
      %p67 = scmp.ne.s32.totalorder %s58, %s59
      %p68 = scmp.eq.s32.totalorder %s27, 0
      %p69 = por %p67, %p68
      %p70 = scmp.ne.s32.totalorder %s58, %s59
      %p71 = scmp.eq.s32.totalorder %s28, 1
      %p72 = por %p70, %p71
      %p74 = scmp.ne.s32.totalorder %s59, %s73
      %p75 = scmp.eq.s32.totalorder %s28, 0
      %p76 = por %p74, %p75
      %s78 = sadd.s32 %s77, 1
      %p81 = scmp.eq.s32.totalorder %s22, 1
      %p82 = scmp.ne.s32.totalorder %s77, %s79
      %p83 = scmp.eq.s32.totalorder %s22, 0
      %p84 = por %p82, %p83
      %p85 = scmp.ne.s32.totalorder %s77, %s79
      %p86 = scmp.eq.s32.totalorder %s27, 1
      %p87 = por %p85, %p86
      %p88 = scmp.ne.s32.totalorder %s79, %s80
      %p89 = scmp.eq.s32.totalorder %s27, 0
      %p90 = por %p88, %p89
      %p91 = scmp.ne.s32.totalorder %s79, %s80
      %p92 = scmp.eq.s32.totalorder %s28, 1
      %p93 = por %p91, %p92
      %p95 = scmp.ne.s32.totalorder %s80, %s94
      %p96 = scmp.eq.s32.totalorder %s28, 0
      %p97 = por %p95, %p96
      %s99 = sadd.s32 %s98, 1
      %p102 = scmp.eq.s32.totalorder %s22, 1
      %p103 = scmp.ne.s32.totalorder %s98, %s100
      %p104 = scmp.eq.s32.totalorder %s22, 0
      %p105 = por %p103, %p104
      %p106 = scmp.ne.s32.totalorder %s98, %s100
      %p107 = scmp.eq.s32.totalorder %s27, 1
      %p108 = por %p106, %p107
      %p109 = scmp.ne.s32.totalorder %s100, %s101
      %p110 = scmp.eq.s32.totalorder %s27, 0
      %p111 = por %p109, %p110
      %p112 = scmp.ne.s32.totalorder %s100, %s101
      %p113 = scmp.eq.s32.totalorder %s28, 1
      %p114 = por %p112, %p113
      %p116 = scmp.ne.s32.totalorder %s101, %s115
      %p117 = scmp.eq.s32.totalorder %s28, 0
      %p118 = por %p116, %p117
      %s120 = sadd.s32 %s119, 1
      %p123 = scmp.eq.s32.totalorder %s22, 1
      %p124 = scmp.ne.s32.totalorder %s119, %s121
      %p125 = scmp.eq.s32.totalorder %s22, 0
      %p126 = por %p124, %p125
      %p127 = scmp.ne.s32.totalorder %s119, %s121
      %p128 = scmp.eq.s32.totalorder %s27, 1
      %p129 = por %p127, %p128
      %p130 = scmp.ne.s32.totalorder %s121, %s122
      %p131 = scmp.eq.s32.totalorder %s27, 0
      %p132 = por %p130, %p131
      %p133 = scmp.ne.s32.totalorder %s121, %s122
      %p134 = scmp.eq.s32.totalorder %s28, 1
      %p135 = por %p133, %p134
      %p137 = scmp.ne.s32.totalorder %s122, %s136
      %p138 = scmp.eq.s32.totalorder %s28, 0
      %p139 = por %p137, %p138
      %s141 = sadd.s32 %s140, 1
      %p144 = scmp.eq.s32.totalorder %s22, 1
      %p145 = scmp.ne.s32.totalorder %s140, %s142
      %p146 = scmp.eq.s32.totalorder %s22, 0
      %p147 = por %p145, %p146
      %p148 = scmp.ne.s32.totalorder %s140, %s142
      %p149 = scmp.eq.s32.totalorder %s27, 1
      %p150 = por %p148, %p149
      %p151 = scmp.ne.s32.totalorder %s142, %s143
      %p152 = scmp.eq.s32.totalorder %s27, 0
      %p153 = por %p151, %p152
      %p154 = scmp.ne.s32.totalorder %s142, %s143
      %p155 = scmp.eq.s32.totalorder %s28, 1
      %p156 = por %p154, %p155
      %p158 = scmp.ne.s32.totalorder %s143, %s157
      %p159 = scmp.eq.s32.totalorder %s28, 0
      %p160 = por %p158, %p159
      %s162 = sadd.s32 %s161, 1
      %p165 = scmp.eq.s32.totalorder %s22, 1
      %p166 = scmp.ne.s32.totalorder %s161, %s163
      %p167 = scmp.eq.s32.totalorder %s22, 0
      %p168 = por %p166, %p167
      %p169 = scmp.ne.s32.totalorder %s161, %s163
      %p170 = scmp.eq.s32.totalorder %s27, 1
      %p171 = por %p169, %p170
      %p172 = scmp.ne.s32.totalorder %s163, %s164
      %p173 = scmp.eq.s32.totalorder %s27, 0
      %p174 = por %p172, %p173
      %p175 = scmp.ne.s32.totalorder %s163, %s164
      %p176 = scmp.eq.s32.totalorder %s28, 1
      %p177 = por %p175, %p176
      %p179 = scmp.ne.s32.totalorder %s164, %s178
      %p180 = scmp.eq.s32.totalorder %s28, 0
      %p181 = por %p179, %p180
      %s183 = sadd.s32 %s182, 1
      %p186 = scmp.eq.s32.totalorder %s22, 1
      %p187 = scmp.ne.s32.totalorder %s182, %s184
      %p188 = scmp.eq.s32.totalorder %s22, 0
      %p189 = por %p187, %p188
      %p190 = scmp.ne.s32.totalorder %s182, %s184
      %p191 = scmp.eq.s32.totalorder %s27, 1
      %p192 = por %p190, %p191
      %p193 = scmp.ne.s32.totalorder %s184, %s185
      %p194 = scmp.eq.s32.totalorder %s27, 0
      %p195 = por %p193, %p194
      %p196 = scmp.ne.s32.totalorder %s184, %s185
      %p197 = scmp.eq.s32.totalorder %s28, 1
      %p198 = por %p196, %p197
      %p200 = scmp.ne.s32.totalorder %s185, %s199
      %p201 = scmp.eq.s32.totalorder %s28, 0
      %p202 = por %p200, %p201
      %s204 = sadd.s32 %s203, 1
      %p207 = scmp.eq.s32.totalorder %s22, 1
      %p208 = scmp.ne.s32.totalorder %s203, %s205
      %p209 = scmp.eq.s32.totalorder %s22, 0
      %p210 = por %p208, %p209
      %p211 = scmp.ne.s32.totalorder %s203, %s205
      %p212 = scmp.eq.s32.totalorder %s27, 1
      %p213 = por %p211, %p212
      %p214 = scmp.ne.s32.totalorder %s205, %s206
      %p215 = scmp.eq.s32.totalorder %s27, 0
      %p216 = por %p214, %p215
      %p217 = scmp.ne.s32.totalorder %s205, %s206
      %p218 = scmp.eq.s32.totalorder %s28, 1
      %p219 = por %p217, %p218
      %p221 = scmp.ne.s32.totalorder %s206, %s220
      %p222 = scmp.eq.s32.totalorder %s28, 0
      %p223 = por %p221, %p222
      %s225 = sadd.s32 %s224, 1
      %p228 = scmp.eq.s32.totalorder %s22, 1
      %p229 = scmp.ne.s32.totalorder %s224, %s226
      %p230 = scmp.eq.s32.totalorder %s22, 0
      %p231 = por %p229, %p230
      %p232 = scmp.ne.s32.totalorder %s224, %s226
      %p233 = scmp.eq.s32.totalorder %s27, 1
      %p234 = por %p232, %p233
      %p235 = scmp.ne.s32.totalorder %s226, %s227
      %p236 = scmp.eq.s32.totalorder %s27, 0
      %p237 = por %p235, %p236
      %p238 = scmp.ne.s32.totalorder %s226, %s227
      %p239 = scmp.eq.s32.totalorder %s28, 1
      %p240 = por %p238, %p239
      %p242 = scmp.ne.s32.totalorder %s227, %s241
      %p243 = scmp.eq.s32.totalorder %s28, 0
      %p244 = por %p242, %p243
      %s246 = sadd.s32 %s245, 1
      %p249 = scmp.eq.s32.totalorder %s22, 1
      %p250 = scmp.ne.s32.totalorder %s245, %s247
      %p251 = scmp.eq.s32.totalorder %s22, 0
      %p252 = por %p250, %p251
      %p253 = scmp.ne.s32.totalorder %s245, %s247
      %p254 = scmp.eq.s32.totalorder %s27, 1
      %p255 = por %p253, %p254
      %p256 = scmp.ne.s32.totalorder %s247, %s248
      %p257 = scmp.eq.s32.totalorder %s27, 0
      %p258 = por %p256, %p257
      %p259 = scmp.ne.s32.totalorder %s247, %s248
      %p260 = scmp.eq.s32.totalorder %s28, 1
      %p261 = por %p259, %p260
      %p263 = scmp.ne.s32.totalorder %s248, %s262
      %p264 = scmp.eq.s32.totalorder %s28, 0
      %p265 = por %p263, %p264
      %s267 = sadd.s32 %s266, 1
      %p270 = scmp.eq.s32.totalorder %s22, 1
      %p271 = scmp.ne.s32.totalorder %s266, %s268
      %p272 = scmp.eq.s32.totalorder %s22, 0
      %p273 = por %p271, %p272
      %p274 = scmp.ne.s32.totalorder %s266, %s268
      %p275 = scmp.eq.s32.totalorder %s27, 1
      %p276 = por %p274, %p275
      %p277 = scmp.ne.s32.totalorder %s268, %s269
      %p278 = scmp.eq.s32.totalorder %s27, 0
      %p279 = por %p277, %p278
      %p280 = scmp.ne.s32.totalorder %s268, %s269
      %p281 = scmp.eq.s32.totalorder %s28, 1
      %p282 = por %p280, %p281
      %p284 = scmp.ne.s32.totalorder %s269, %s283
      %p285 = scmp.eq.s32.totalorder %s28, 0
      %p286 = por %p284, %p285
      %s288 = sadd.s32 %s287, 1
      %p291 = scmp.eq.s32.totalorder %s22, 1
      %p292 = scmp.ne.s32.totalorder %s287, %s289
      %p293 = scmp.eq.s32.totalorder %s22, 0
      %p294 = por %p292, %p293
      %p295 = scmp.ne.s32.totalorder %s287, %s289
      %p296 = scmp.eq.s32.totalorder %s27, 1
      %p297 = por %p295, %p296
      %p298 = scmp.ne.s32.totalorder %s289, %s290
      %p299 = scmp.eq.s32.totalorder %s27, 0
      %p300 = por %p298, %p299
      %p301 = scmp.ne.s32.totalorder %s289, %s290
      %p302 = scmp.eq.s32.totalorder %s28, 1
      %p303 = por %p301, %p302
      %p305 = scmp.ne.s32.totalorder %s290, %s304
      %p306 = scmp.eq.s32.totalorder %s28, 0
      %p307 = por %p305, %p306
      %s308 = ssub.s32 %s22, %s29
      %p309 = scmp.eq.s32.totalorder %s308, 0
      %s311 = sadd.s32 %s310, 1
      %s312 = scalar_select %p309, %s310, %s311
      %p315 = pneg %p309
      %p316 = scmp.eq.s32.totalorder %s22, 1
      %p317 = por %p315, %p316
      %p318 = scmp.ne.s32.totalorder %s310, %s313
      %p319 = scmp.eq.s32.totalorder %s22, 0
      %p320 = por %p318, %p319
      %p321 = scmp.ne.s32.totalorder %s310, %s313
      %p322 = scmp.eq.s32.totalorder %s27, 1
      %p323 = por %p321, %p322
      %p324 = scmp.ne.s32.totalorder %s313, %s314
      %p325 = scmp.eq.s32.totalorder %s27, 0
      %p326 = por %p324, %p325
      %p327 = scmp.ne.s32.totalorder %s313, %s314
      %p328 = scmp.eq.s32.totalorder %s28, 1
      %p329 = por %p327, %p328
      %p331 = scmp.ne.s32.totalorder %s314, %s330
      %p332 = scmp.eq.s32.totalorder %s28, 0
      %p333 = por %p331, %p332
      %p334 = scmp.le.s32.totalorder 1, %s22
      %p335 = scmp.lt.s32.totalorder %s22, 3
      %p336 = pnand %p334, %p335
      %p337 = pneg %p336
      // Predicated region
      $region9: #{bottleneck_forward.1} parent=5 // pred_check
        _
      $region10: #{bottleneck_forward.1} parent=5 // pred_check_branch
        %339 = sbr.rel (%p336) target = $region12
      $region11: #{bottleneck_forward.1} parent=5 // pred_region
        %s340 = ssub.s32 %s22, 1
        // Predicated region
        $region13: #{bottleneck_forward.1} parent=11 // pred_check
          %p341 = pneg %p69
        $region14: #{bottleneck_forward.1} parent=11 // pred_check_branch
          %343 = sbr.rel (%p341) target = $region16
        $region15: #{bottleneck_forward.1} parent=11 // pred_region
          _
        $region16: #{bottleneck_forward.1} parent=11 // pred_fallthru
          _
        // Predicated region
        $region17: #{bottleneck_forward.1} parent=11 // pred_check
          %p344 = pneg %p90
        $region18: #{bottleneck_forward.1} parent=11 // pred_check_branch
          %346 = sbr.rel (%p344) target = $region20
        $region19: #{bottleneck_forward.1} parent=11 // pred_region
          _
        $region20: #{bottleneck_forward.1} parent=11 // pred_fallthru
          _
        // Predicated region
        $region21: #{bottleneck_forward.1} parent=11 // pred_check
          %p347 = pneg %p111
        $region22: #{bottleneck_forward.1} parent=11 // pred_check_branch
          %349 = sbr.rel (%p347) target = $region24
        $region23: #{bottleneck_forward.1} parent=11 // pred_region
          _
        $region24: #{bottleneck_forward.1} parent=11 // pred_fallthru
          _
        // Predicated region
        $region25: #{bottleneck_forward.1} parent=11 // pred_check
          %p350 = pneg %p132
        $region26: #{bottleneck_forward.1} parent=11 // pred_check_branch
          %352 = sbr.rel (%p350) target = $region28
        $region27: #{bottleneck_forward.1} parent=11 // pred_region
          _
        $region28: #{bottleneck_forward.1} parent=11 // pred_fallthru
          _
        // Predicated region
        $region29: #{bottleneck_forward.1} parent=11 // pred_check
          %p353 = pneg %p153
        $region30: #{bottleneck_forward.1} parent=11 // pred_check_branch
          %355 = sbr.rel (%p353) target = $region32
        $region31: #{bottleneck_forward.1} parent=11 // pred_region
          _
        $region32: #{bottleneck_forward.1} parent=11 // pred_fallthru
          _
        // Predicated region
        $region33: #{bottleneck_forward.1} parent=11 // pred_check
          %p356 = pneg %p174
        $region34: #{bottleneck_forward.1} parent=11 // pred_check_branch
          %358 = sbr.rel (%p356) target = $region36
        $region35: #{bottleneck_forward.1} parent=11 // pred_region
          _
        $region36: #{bottleneck_forward.1} parent=11 // pred_fallthru
          _
        // Predicated region
        $region37: #{bottleneck_forward.1} parent=11 // pred_check
          %p359 = pneg %p195
        $region38: #{bottleneck_forward.1} parent=11 // pred_check_branch
          %361 = sbr.rel (%p359) target = $region40
        $region39: #{bottleneck_forward.1} parent=11 // pred_region
          _
        $region40: #{bottleneck_forward.1} parent=11 // pred_fallthru
          _
        // Predicated region
        $region41: #{bottleneck_forward.1} parent=11 // pred_check
          %p362 = pneg %p216
        $region42: #{bottleneck_forward.1} parent=11 // pred_check_branch
          %364 = sbr.rel (%p362) target = $region44
        $region43: #{bottleneck_forward.1} parent=11 // pred_region
          _
        $region44: #{bottleneck_forward.1} parent=11 // pred_fallthru
          _
        // Predicated region
        $region45: #{bottleneck_forward.1} parent=11 // pred_check
          %p365 = pneg %p237
        $region46: #{bottleneck_forward.1} parent=11 // pred_check_branch
          %367 = sbr.rel (%p365) target = $region48
        $region47: #{bottleneck_forward.1} parent=11 // pred_region
          _
        $region48: #{bottleneck_forward.1} parent=11 // pred_fallthru
          _
        // Predicated region
        $region49: #{bottleneck_forward.1} parent=11 // pred_check
          %p368 = pneg %p258
        $region50: #{bottleneck_forward.1} parent=11 // pred_check_branch
          %370 = sbr.rel (%p368) target = $region52
        $region51: #{bottleneck_forward.1} parent=11 // pred_region
          _
        $region52: #{bottleneck_forward.1} parent=11 // pred_fallthru
          _
        // Predicated region
        $region53: #{bottleneck_forward.1} parent=11 // pred_check
          %p371 = pneg %p279
        $region54: #{bottleneck_forward.1} parent=11 // pred_check_branch
          %373 = sbr.rel (%p371) target = $region56
        $region55: #{bottleneck_forward.1} parent=11 // pred_region
          _
        $region56: #{bottleneck_forward.1} parent=11 // pred_fallthru
          _
        // Predicated region
        $region57: #{bottleneck_forward.1} parent=11 // pred_check
          %p374 = pneg %p300
        $region58: #{bottleneck_forward.1} parent=11 // pred_check_branch
          %376 = sbr.rel (%p374) target = $region60
        $region59: #{bottleneck_forward.1} parent=11 // pred_region
          _
        $region60: #{bottleneck_forward.1} parent=11 // pred_fallthru
          _
      $region12: #{bottleneck_forward.1} parent=5 // pred_fallthru
        _
      %p377 = scmp.lt.s32.totalorder %s22, 2
      // Predicated region
      $region61: #{bottleneck_forward.1} parent=5 // pred_check
        %p378 = pneg %p377
      $region62: #{bottleneck_forward.1} parent=5 // pred_check_branch
        %380 = sbr.rel (%p378) target = $region64
      $region63: #{bottleneck_forward.1} parent=5 // pred_region
        // Predicated region
        $region65: #{bottleneck_forward.1} parent=63 // pred_check
          %p381 = pneg %p42
        $region66: #{bottleneck_forward.1} parent=63 // pred_check_branch
          %383 = sbr.rel (%p381) target = $region68
        $region67: #{bottleneck_forward.1} parent=63 // pred_region
          %p384 = scmp.lt.s32.totalorder %s22, 1
          %s385 = scalar_select %p384, %s22, 1
          %s386 = smul.addr %s385, 32
          %s387 = smul.addr %s386, 4
          %s388 = scalar_lea.vmem %s0, %s387
        $region68: #{bottleneck_forward.1} parent=63 // pred_fallthru
          _
      $region64: #{bottleneck_forward.1} parent=5 // pred_fallthru
        _
      %p389 = scmp.le.s32.totalorder 1, %s22
      %p390 = scmp.lt.s32.totalorder %s22, 3
      %p391 = pnand %p389, %p390
      %p392 = pneg %p391
      // Predicated region
      $region69: #{bottleneck_forward.1} parent=5 // pred_check
        _
      $region70: #{bottleneck_forward.1} parent=5 // pred_check_branch
        %394 = sbr.rel (%p391) target = $region72
      $region71: #{bottleneck_forward.1} parent=5 // pred_region
        %s395 = ssub.s32 %s22, 1
        %p396 = scmp.lt.s32.totalorder %s27, 1
        %s397 = scalar_select %p396, %s27, 1
        %s398 = smul.addr %s397, 32
        %s399 = smul.addr %s398, 4
        %s400 = scalar_lea.vmem %s0, %s399
        %p401 = pneg %p48
        %p402 = pneg %p45
        %p403 = pneg %p69
        %p404 = pneg %p66
        %p405 = pneg %p90
        %p406 = pneg %p87
        %p407 = pneg %p111
        %p408 = pneg %p108
        %p409 = pneg %p132
        %p410 = pneg %p129
        %p411 = pneg %p153
        %p412 = pneg %p150
        %p413 = pneg %p174
        %p414 = pneg %p171
        %p415 = pneg %p195
        %p416 = pneg %p192
        %p417 = pneg %p216
        %p418 = pneg %p213
        %p419 = pneg %p237
        %p420 = pneg %p234
        %p421 = pneg %p258
        %p422 = pneg %p255
        %p423 = pneg %p279
        %p424 = pneg %p276
        %p425 = pneg %p300
        %p426 = pneg %p297
        %p427 = pneg %p326
        %p428 = pneg %p323
        %s429 = sand.u32 %s313, 1
        %s430 = scalar_lea.sflag [#allocation4], %s429
        %s431 = sand.u32 %s313, 1
        %s432 = smul.addr %s431, 32
        %s433 = scalar_lea.vmem [#allocation3], %s432
        %p434 = scmp.lt.s32.totalorder %s27, 1
        %s435 = scalar_select %p434, %s27, 1
        %s436 = smul.addr %s435, 32
        %s437 = smul.addr %s436, 4
        %s438 = scalar_lea.vmem %s0, %s437
        %vm440 = vcmask 125952
        %441 = vst.msk [vmem:[#allocation2] sm:$0xf] %vm440, 0
        %442 = vst.msk [vmem:[#allocation2 + $0x4] sm:$0xf] %vm440, 0
        %443 = vst.msk [vmem:[#allocation2 + $0x8] sm:$0xf] %vm440, 0
        %444 = vst.msk [vmem:[#allocation2 + $0xc] sm:$0xf] %vm440, 0
        %445 = vst.msk [vmem:[#allocation2 + $0x10] sm:$0xf] %vm440, 0
        %446 = vst.msk [vmem:[#allocation2 + $0x14] sm:$0xf] %vm440, 0
        %447 = vst.msk [vmem:[#allocation2 + $0x18] sm:$0xf] %vm440, 0
        %448 = vst.msk [vmem:[#allocation2 + $0x1c] sm:$0xf] %vm440, 0
        %449 = vst.msk [vmem:[#allocation2 + $0x20] sm:$0xf] %vm440, 0
        %450 = vst.msk [vmem:[#allocation2 + $0x24] sm:$0xf] %vm440, 0
        %451 = vst.msk [vmem:[#allocation2 + $0x28] sm:$0xf] %vm440, 0
        %452 = vst.msk [vmem:[#allocation2 + $0x2c] sm:$0xf] %vm440, 0
        %453 = vst.msk [vmem:[#allocation2 + $0x30] sm:$0xf] %vm440, 0
        %454 = vst.msk [vmem:[#allocation2 + $0x34] sm:$0xf] %vm440, 0
        %455 = vst.msk [vmem:[#allocation2 + $0x38] sm:$0xf] %vm440, 0
        %456 = vst.msk [vmem:[#allocation2 + $0x3c] sm:$0xf] %vm440, 0
        %457 = vst.msk [vmem:[#allocation2 + $0x40] sm:$0xf] %vm440, 0
        %458 = vst.msk [vmem:[#allocation2 + $0x44] sm:$0xf] %vm440, 0
        %459 = vst.msk [vmem:[#allocation2 + $0x48] sm:$0xf] %vm440, 0
        %460 = vst.msk [vmem:[#allocation2 + $0x4c] sm:$0xf] %vm440, 0
        %461 = vst.msk [vmem:[#allocation2 + $0x50] sm:$0xf] %vm440, 0
        %462 = vst.msk [vmem:[#allocation2 + $0x54] sm:$0xf] %vm440, 0
        %463 = vst.msk [vmem:[#allocation2 + $0x58] sm:$0xf] %vm440, 0
        %464 = vst.msk [vmem:[#allocation2 + $0x5c] sm:$0xf] %vm440, 0
        %465 = vst.msk [vmem:[#allocation2 + $0x60] sm:$0xf] %vm440, 0
        %466 = vst.msk [vmem:[#allocation2 + $0x64] sm:$0xf] %vm440, 0
        %467 = vst.msk [vmem:[#allocation2 + $0x68] sm:$0xf] %vm440, 0
        %468 = vst.msk [vmem:[#allocation2 + $0x6c] sm:$0xf] %vm440, 0
        %469 = vst.msk [vmem:[#allocation2 + $0x70] sm:$0xf] %vm440, 0
        %470 = vst.msk [vmem:[#allocation2 + $0x74] sm:$0xf] %vm440, 0
        %471 = vst.msk [vmem:[#allocation2 + $0x78] sm:$0xf] %vm440, 0
        %472 = vst.msk [vmem:[#allocation2 + $0x7c] sm:$0xf] %vm440, 0
        %473 = vst.msk [vmem:[#allocation2 + $0x80] sm:$0xf] %vm440, 0
        %474 = vst.msk [vmem:[#allocation2 + $0x84] sm:$0xf] %vm440, 0
        %475 = vst.msk [vmem:[#allocation2 + $0x88] sm:$0xf] %vm440, 0
        %476 = vst.msk [vmem:[#allocation2 + $0x8c] sm:$0xf] %vm440, 0
        %477 = vst.msk [vmem:[#allocation2 + $0x90] sm:$0xf] %vm440, 0
        %478 = vst.msk [vmem:[#allocation2 + $0x94] sm:$0xf] %vm440, 0
        %479 = vst.msk [vmem:[#allocation2 + $0x98] sm:$0xf] %vm440, 0
        %480 = vst.msk [vmem:[#allocation2 + $0x9c] sm:$0xf] %vm440, 0
        %481 = vst.msk [vmem:[#allocation2 + $0xa0] sm:$0xf] %vm440, 0
        %482 = vst.msk [vmem:[#allocation2 + $0xa4] sm:$0xf] %vm440, 0
        %483 = vst.msk [vmem:[#allocation2 + $0xa8] sm:$0xf] %vm440, 0
        %484 = vst.msk [vmem:[#allocation2 + $0xac] sm:$0xf] %vm440, 0
        %485 = vst.msk [vmem:[#allocation2 + $0xb0] sm:$0xf] %vm440, 0
        %486 = vst.msk [vmem:[#allocation2 + $0xb4] sm:$0xf] %vm440, 0
        %487 = vst.msk [vmem:[#allocation2 + $0xb8] sm:$0xf] %vm440, 0
        %488 = vst.msk [vmem:[#allocation2 + $0xbc] sm:$0xf] %vm440, 0
        %489 = vst.msk [vmem:[#allocation2 + $0xc0] sm:$0xf] %vm440, 0
        %490 = vst.msk [vmem:[#allocation2 + $0xc4] sm:$0xf] %vm440, 0
        %491 = vst.msk [vmem:[#allocation2 + $0xc8] sm:$0xf] %vm440, 0
        %492 = vst.msk [vmem:[#allocation2 + $0xcc] sm:$0xf] %vm440, 0
        %493 = vst.msk [vmem:[#allocation2 + $0xd0] sm:$0xf] %vm440, 0
        %494 = vst.msk [vmem:[#allocation2 + $0xd4] sm:$0xf] %vm440, 0
        %495 = vst.msk [vmem:[#allocation2 + $0xd8] sm:$0xf] %vm440, 0
        %496 = vst.msk [vmem:[#allocation2 + $0xdc] sm:$0xf] %vm440, 0
        %497 = vst.msk [vmem:[#allocation2 + $0xe0] sm:$0xf] %vm440, 0
        %498 = vst.msk [vmem:[#allocation2 + $0xe4] sm:$0xf] %vm440, 0
        %499 = vst.msk [vmem:[#allocation2 + $0xe8] sm:$0xf] %vm440, 0
        %500 = vst.msk [vmem:[#allocation2 + $0xec] sm:$0xf] %vm440, 0
        %501 = vst.msk [vmem:[#allocation2 + $0xf0] sm:$0xf] %vm440, 0
        %502 = vst.msk [vmem:[#allocation2 + $0xf4] sm:$0xf] %vm440, 0
        %503 = vst.msk [vmem:[#allocation2 + $0xf8] sm:$0xf] %vm440, 0
        %504 = vst.msk [vmem:[#allocation2 + $0xfc] sm:$0xf] %vm440, 0
        %505 = vst.msk [vmem:[#allocation2 + $0x100] sm:$0xf] %vm440, 0
        %506 = vst.msk [vmem:[#allocation2 + $0x104] sm:$0xf] %vm440, 0
        %507 = vst.msk [vmem:[#allocation2 + $0x108] sm:$0xf] %vm440, 0
        %508 = vst.msk [vmem:[#allocation2 + $0x10c] sm:$0xf] %vm440, 0
        %509 = vst.msk [vmem:[#allocation2 + $0x110] sm:$0xf] %vm440, 0
        %510 = vst.msk [vmem:[#allocation2 + $0x114] sm:$0xf] %vm440, 0
        %511 = vst.msk [vmem:[#allocation2 + $0x118] sm:$0xf] %vm440, 0
        %512 = vst.msk [vmem:[#allocation2 + $0x11c] sm:$0xf] %vm440, 0
        %v513 = vld [vmem:[%s1] sm:$0xf]
        %v514 = vld [vmem:[%s1 + $0x4] sm:$0xf]
        %v515 = vld [vmem:[%s1 + $0x8] sm:$0xf]
        %v516 = vld [vmem:[%s1 + $0xc] sm:$0xf]
        %v517 = vld [vmem:[%s7] sm:$0xf]
        %v518 = vld [vmem:[%s7 + $0x4] sm:$0xf]
        %v519 = vld [vmem:[%s2] sm:$0x1]
        %v520 = vld [vmem:[%s3] sm:$0x1]
        %v521 = vld [vmem:[%s5] sm:$0x1]
        %v522 = vld [vmem:[%s6] sm:$0x1]
        %v523 = vld [vmem:[%s8] sm:$0x1]
        %v524 = vld [vmem:[%s9] sm:$0x1]
        %v525 = vld [vmem:[%s4] sm:$0xf]
        %v526 = vld [vmem:[%s4 + $0x4] sm:$0xf]
        %s527 = scalar_lea.vmem %s4, 8
        %v528 = vld [vmem:[%s527] sm:$0xf]
        %v529 = vld [vmem:[%s527 + $0x4] sm:$0xf]
        %s530 = scalar_lea.vmem %s4, 16
        %v531 = vld [vmem:[%s530] sm:$0xf]
        %v532 = vld [vmem:[%s530 + $0x4] sm:$0xf]
        %s533 = scalar_lea.vmem %s4, 24
        %v534 = vld [vmem:[%s533] sm:$0xf]
        %v535 = vld [vmem:[%s533 + $0x4] sm:$0xf]
        %s536 = scalar_lea.vmem %s4, 32
        %v537 = vld [vmem:[%s536] sm:$0xf]
        %v538 = vld [vmem:[%s536 + $0x4] sm:$0xf]
        %s539 = scalar_lea.vmem %s4, 40
        %v540 = vld [vmem:[%s539] sm:$0xf]
        %v541 = vld [vmem:[%s539 + $0x4] sm:$0xf]
        %s542 = scalar_lea.vmem %s4, 48
        %v543 = vld [vmem:[%s542] sm:$0xf]
        %v544 = vld [vmem:[%s542 + $0x4] sm:$0xf]
        %s545 = scalar_lea.vmem %s4, 56
        %v546 = vld [vmem:[%s545] sm:$0xf]
        %v547 = vld [vmem:[%s545 + $0x4] sm:$0xf]
        %s548 = scalar_lea.vmem %s4, 64
        %v549 = vld [vmem:[%s548] sm:$0xf]
        %v550 = vld [vmem:[%s548 + $0x4] sm:$0xf]
        %v551 = vld [vmem:[%s10] sm:$0xf]
        %v552 = vld [vmem:[%s10 + $0x4] sm:$0xf]
        %v553 = vld [vmem:[%s10 + $0x8] sm:$0xf]
        %v554 = vld [vmem:[%s10 + $0xc] sm:$0xf]
        %v555 = vld [vmem:[%s11] sm:$0x1]
        %v556 = vld [vmem:[%s12] sm:$0x1]
        %v557 = vld [vmem:[%s438] sm:$0xf]
        %v558 = vld [vmem:[%s438 + $0x4] sm:$0xf]
        %v559 = vld [vmem:[%s438 + $0x8] sm:$0xf]
        %v560 = vld [vmem:[%s438 + $0xc] sm:$0xf]
        %v561 = vld [vmem:[%s438 + $0x10] sm:$0xf]
        %v562 = vld [vmem:[%s438 + $0x14] sm:$0xf]
        %v563 = vld [vmem:[%s438 + $0x18] sm:$0xf]
        %v564 = vld [vmem:[%s438 + $0x1c] sm:$0xf]
        %v565 = vld [vmem:[%s438 + $0x20] sm:$0xf]
        %v566 = vld [vmem:[%s438 + $0x24] sm:$0xf]
        %v567 = vld [vmem:[%s438 + $0x28] sm:$0xf]
        %v568 = vld [vmem:[%s438 + $0x2c] sm:$0xf]
        %v569 = vld [vmem:[%s438 + $0x30] sm:$0xf]
        %v570 = vld [vmem:[%s438 + $0x34] sm:$0xf]
        %v571 = vld [vmem:[%s438 + $0x38] sm:$0xf]
        %v572 = vld [vmem:[%s438 + $0x3c] sm:$0xf]
        %v573 = vld [vmem:[%s438 + $0x40] sm:$0xf]
        %v574 = vld [vmem:[%s438 + $0x44] sm:$0xf]
        %v575 = vld [vmem:[%s438 + $0x48] sm:$0xf]
        %v576 = vld [vmem:[%s438 + $0x4c] sm:$0xf]
        %v577 = vld [vmem:[%s438 + $0x50] sm:$0xf]
        %v578 = vld [vmem:[%s438 + $0x54] sm:$0xf]
        %v579 = vld [vmem:[%s438 + $0x58] sm:$0xf]
        %v580 = vld [vmem:[%s438 + $0x5c] sm:$0xf]
        %v581 = vld [vmem:[%s438 + $0x60] sm:$0xf]
        %v582 = vld [vmem:[%s438 + $0x64] sm:$0xf]
        %v583 = vld [vmem:[%s438 + $0x68] sm:$0xf]
        %v584 = vld [vmem:[%s438 + $0x6c] sm:$0xf]
        %v585 = vld [vmem:[%s438 + $0x70] sm:$0xf]
        %v586 = vld [vmem:[%s438 + $0x74] sm:$0xf]
        %v587 = vld [vmem:[%s438 + $0x78] sm:$0xf]
        %v588 = vld [vmem:[%s438 + $0x7c] sm:$0xf]
        %v621 = vunpack.c.l.b16 %v557
        %v622 = vunpack.c.l.b16 %v558
        %v623 = vunpack.c.l.b16 %v559
        %v624 = vunpack.c.l.b16 %v560
        %v625 = vunpack.c.l.b16 %v561
        %v626 = vunpack.c.l.b16 %v562
        %v627 = vunpack.c.l.b16 %v563
        %v628 = vunpack.c.l.b16 %v564
        %v629 = vunpack.c.l.b16 %v565
        %v630 = vunpack.c.l.b16 %v566
        %v631 = vunpack.c.l.b16 %v567
        %v632 = vunpack.c.l.b16 %v568
        %v633 = vunpack.c.l.b16 %v569
        %v634 = vunpack.c.l.b16 %v570
        %v635 = vunpack.c.l.b16 %v571
        %v636 = vunpack.c.l.b16 %v572
        %v637 = vunpack.c.l.b16 %v573
        %v638 = vunpack.c.l.b16 %v574
        %v639 = vunpack.c.l.b16 %v575
        %v640 = vunpack.c.l.b16 %v576
        %v641 = vunpack.c.l.b16 %v577
        %v642 = vunpack.c.l.b16 %v578
        %v643 = vunpack.c.l.b16 %v579
        %v644 = vunpack.c.l.b16 %v580
        %v645 = vunpack.c.l.b16 %v581
        %v646 = vunpack.c.l.b16 %v582
        %v647 = vunpack.c.l.b16 %v583
        %v648 = vunpack.c.l.b16 %v584
        %v649 = vunpack.c.l.b16 %v585
        %v650 = vunpack.c.l.b16 %v586
        %v651 = vunpack.c.l.b16 %v587
        %v652 = vunpack.c.l.b16 %v588
        %v653 = vpack.c.b16 %v622, %v621
        %v654 = vpack.c.b16 %v624, %v623
        %v655 = vpack.c.b16 %v626, %v625
        %v656 = vpack.c.b16 %v628, %v627
        %v657 = vpack.c.b16 %v630, %v629
        %v658 = vpack.c.b16 %v632, %v631
        %v659 = vpack.c.b16 %v634, %v633
        %v660 = vpack.c.b16 %v636, %v635
        %v661 = vpack.c.b16 %v638, %v637
        %v662 = vpack.c.b16 %v640, %v639
        %v663 = vpack.c.b16 %v642, %v641
        %v664 = vpack.c.b16 %v644, %v643
        %v665 = vpack.c.b16 %v646, %v645
        %v666 = vpack.c.b16 %v648, %v647
        %v667 = vpack.c.b16 %v650, %v649
        %v668 = vpack.c.b16 %v652, %v651
        %v673 = vunpack.c.l.b16 %v513
        %v674 = vunpack.c.l.b16 %v514
        %v675 = vunpack.c.l.b16 %v515
        %v676 = vunpack.c.l.b16 %v516
        %v677 = vpack.c.b16 %v674, %v673
        %v678 = vpack.c.b16 %v676, %v675
        %vm681 = vcmask 261120
        %v683 = vsel %vm681, %v653, 0
        %v686 = vsel %vm681, %v654, 0
        %v689 = vsel %vm681, %v655, 0
        %v692 = vsel %vm681, %v656, 0
        %v695 = vsel %vm681, %v657, 0
        %v698 = vsel %vm681, %v658, 0
        %v701 = vsel %vm681, %v659, 0
        %v704 = vsel %vm681, %v660, 0
        %v707 = vsel %vm681, %v661, 0
        %v710 = vsel %vm681, %v662, 0
        %v713 = vsel %vm681, %v663, 0
        %v716 = vsel %vm681, %v664, 0
        %v719 = vsel %vm681, %v665, 0
        %v722 = vsel %vm681, %v666, 0
        %v725 = vsel %vm681, %v667, 0
        %v728 = vsel %vm681, %v668, 0
        %730 = vmatpush.bf16.msra.mxu0 0
        %731 = vmatpush.bf16.msra.mxu0 0
        %732 = vmatpush.bf16.msra.mxu0 0
        %733 = vmatpush.bf16.msra.mxu0 0
        %734 = vmatpush.bf16.msra.mxu0 0
        %735 = vmatpush.bf16.msra.mxu0 0
        %736 = vmatpush.bf16.msra.mxu0 %v678
        %737 = vmatpush.bf16.msra.mxu0 %v677
        %738 = vmatmul.bf16.gmra.mxu0 %v683
        %v739 = vpop.f32.mrf.mxu0
        %v740 = vadd.f32 0.0, %v739
        %v741 = vpop.f32.mrf.mxu0
        %v742 = vadd.f32 0.0, %v741
        %743 = vmatmul.bf16.gmra.mxu0 %v686
        %v744 = vpop.f32.mrf.mxu0
        %v745 = vadd.f32 0.0, %v744
        %v746 = vpop.f32.mrf.mxu0
        %v747 = vadd.f32 0.0, %v746
        %748 = vmatmul.bf16.gmra.mxu0 %v689
        %v749 = vpop.f32.mrf.mxu0
        %v750 = vadd.f32 0.0, %v749
        %v751 = vpop.f32.mrf.mxu0
        %v752 = vadd.f32 0.0, %v751
        %753 = vmatmul.bf16.gmra.mxu0 %v692
        %v754 = vpop.f32.mrf.mxu0
        %v755 = vadd.f32 0.0, %v754
        %v756 = vpop.f32.mrf.mxu0
        %v757 = vadd.f32 0.0, %v756
        %758 = vmatmul.bf16.gmra.mxu0 %v695
        %v759 = vpop.f32.mrf.mxu0
        %v760 = vadd.f32 0.0, %v759
        %v761 = vpop.f32.mrf.mxu0
        %v762 = vadd.f32 0.0, %v761
        %763 = vmatmul.bf16.gmra.mxu0 %v698
        %v764 = vpop.f32.mrf.mxu0
        %v765 = vadd.f32 0.0, %v764
        %v766 = vpop.f32.mrf.mxu0
        %v767 = vadd.f32 0.0, %v766
        %768 = vmatmul.bf16.gmra.mxu0 %v701
        %v769 = vpop.f32.mrf.mxu0
        %v770 = vadd.f32 0.0, %v769
        %v771 = vpop.f32.mrf.mxu0
        %v772 = vadd.f32 0.0, %v771
        %773 = vmatmul.bf16.gmra.mxu0 %v704
        %v774 = vpop.f32.mrf.mxu0
        %v775 = vadd.f32 0.0, %v774
        %v776 = vpop.f32.mrf.mxu0
        %v777 = vadd.f32 0.0, %v776
        %778 = vmatmul.bf16.gmra.mxu0 %v707
        %v779 = vpop.f32.mrf.mxu0
        %v780 = vadd.f32 0.0, %v779
        %v781 = vpop.f32.mrf.mxu0
        %v782 = vadd.f32 0.0, %v781
        %783 = vmatmul.bf16.gmra.mxu0 %v710
        %v784 = vpop.f32.mrf.mxu0
        %v785 = vadd.f32 0.0, %v784
        %v786 = vpop.f32.mrf.mxu0
        %v787 = vadd.f32 0.0, %v786
        %788 = vmatmul.bf16.gmra.mxu0 %v713
        %v789 = vpop.f32.mrf.mxu0
        %v790 = vadd.f32 0.0, %v789
        %v791 = vpop.f32.mrf.mxu0
        %v792 = vadd.f32 0.0, %v791
        %793 = vmatmul.bf16.gmra.mxu0 %v716
        %v794 = vpop.f32.mrf.mxu0
        %v795 = vadd.f32 0.0, %v794
        %v796 = vpop.f32.mrf.mxu0
        %v797 = vadd.f32 0.0, %v796
        %798 = vmatmul.bf16.gmra.mxu0 %v719
        %v799 = vpop.f32.mrf.mxu0
        %v800 = vadd.f32 0.0, %v799
        %v801 = vpop.f32.mrf.mxu0
        %v802 = vadd.f32 0.0, %v801
        %803 = vmatmul.bf16.gmra.mxu0 %v722
        %v804 = vpop.f32.mrf.mxu0
        %v805 = vadd.f32 0.0, %v804
        %v806 = vpop.f32.mrf.mxu0
        %v807 = vadd.f32 0.0, %v806
        %808 = vmatmul.bf16.gmra.mxu0 %v725
        %v809 = vpop.f32.mrf.mxu0
        %v810 = vadd.f32 0.0, %v809
        %v811 = vpop.f32.mrf.mxu0
        %v812 = vadd.f32 0.0, %v811
        %813 = vmatmul.bf16.gmra.mxu0 %v728
        %v814 = vpop.f32.mrf.mxu0
        %v815 = vadd.f32 0.0, %v814
        %v816 = vpop.f32.mrf.mxu0
        %v817 = vadd.f32 0.0, %v816
        %818 = vdwg.mxu0
        %vm819 = vcmask 130048
        %v820 = vsel %vm819, %v740, 0.0
        %v821 = vsel %vm819, %v742, 0.0
        %v822 = vadd.f32 %v820, %v821
        %v823 = vsel %vm819, %v745, 0.0
        %v824 = vadd.f32 %v822, %v823
        %v825 = vsel %vm819, %v747, 0.0
        %v826 = vadd.f32 %v824, %v825
        %v827 = vsel %vm819, %v750, 0.0
        %v828 = vadd.f32 %v826, %v827
        %v829 = vsel %vm819, %v752, 0.0
        %v830 = vadd.f32 %v828, %v829
        %v831 = vsel %vm819, %v755, 0.0
        %v832 = vadd.f32 %v830, %v831
        %v833 = vsel %vm819, %v757, 0.0
        %v834 = vadd.f32 %v832, %v833
        %v835 = vsel %vm819, %v760, 0.0
        %v836 = vadd.f32 %v834, %v835
        %v837 = vsel %vm819, %v762, 0.0
        %v838 = vadd.f32 %v836, %v837
        %v839 = vsel %vm819, %v765, 0.0
        %v840 = vadd.f32 %v838, %v839
        %v841 = vsel %vm819, %v767, 0.0
        %v842 = vadd.f32 %v840, %v841
        %v843 = vsel %vm819, %v770, 0.0
        %v844 = vadd.f32 %v842, %v843
        %v845 = vsel %vm819, %v772, 0.0
        %v846 = vadd.f32 %v844, %v845
        %v847 = vsel %vm819, %v775, 0.0
        %v848 = vadd.f32 %v846, %v847
        %v849 = vsel %vm819, %v777, 0.0
        %v850 = vadd.f32 %v848, %v849
        %v851 = vsel %vm819, %v780, 0.0
        %v852 = vadd.f32 %v850, %v851
        %v853 = vsel %vm819, %v782, 0.0
        %v854 = vadd.f32 %v852, %v853
        %v855 = vsel %vm819, %v785, 0.0
        %v856 = vadd.f32 %v854, %v855
        %v857 = vsel %vm819, %v787, 0.0
        %v858 = vadd.f32 %v856, %v857
        %v859 = vsel %vm819, %v790, 0.0
        %v860 = vadd.f32 %v858, %v859
        %v861 = vsel %vm819, %v792, 0.0
        %v862 = vadd.f32 %v860, %v861
        %v863 = vsel %vm819, %v795, 0.0
        %v864 = vadd.f32 %v862, %v863
        %v865 = vsel %vm819, %v797, 0.0
        %v866 = vadd.f32 %v864, %v865
        %v867 = vsel %vm819, %v800, 0.0
        %v868 = vadd.f32 %v866, %v867
        %v869 = vsel %vm819, %v802, 0.0
        %v870 = vadd.f32 %v868, %v869
        %v871 = vsel %vm819, %v805, 0.0
        %v872 = vadd.f32 %v870, %v871
        %v873 = vsel %vm819, %v807, 0.0
        %v874 = vadd.f32 %v872, %v873
        %v875 = vsel %vm819, %v810, 0.0
        %v876 = vadd.f32 %v874, %v875
        %v877 = vsel %vm819, %v812, 0.0
        %v878 = vadd.f32 %v876, %v877
        %v879 = vsel %vm819, %v815, 0.0
        %v880 = vadd.f32 %v878, %v879
        %v881 = vsel %vm819, %v817, 0.0
        %v882 = vadd.f32 %v880, %v881
        %883 = vadd.xlane.f32.xlu0 %v882
        %v884 = vpop.xlane.xlu0 %883
        %v885 = vrot.slane %v884, 4
        %v886 = vadd.f32 %v884, %v885
        %v887 = vrot.slane %v886, 2
        %v888 = vadd.f32 %v886, %v887
        %v889 = vrot.slane %v888, 1
        %v890 = vadd.f32 %v888, %v889
        %s891 = vtos %v890
        %s892 = smul.f32 %s891, 0.00024414063
        %v893 = vstv %s892
        %v894 = vsub.f32 %v740, %v893
        %v895 = vsub.f32 %v742, %v893
        %v896 = vsub.f32 %v745, %v893
        %v897 = vsub.f32 %v747, %v893
        %v898 = vsub.f32 %v750, %v893
        %v899 = vsub.f32 %v752, %v893
        %v900 = vsub.f32 %v755, %v893
        %v901 = vsub.f32 %v757, %v893
        %v902 = vsub.f32 %v760, %v893
        %v903 = vsub.f32 %v762, %v893
        %v904 = vsub.f32 %v765, %v893
        %v905 = vsub.f32 %v767, %v893
        %v906 = vsub.f32 %v770, %v893
        %v907 = vsub.f32 %v772, %v893
        %v908 = vsub.f32 %v775, %v893
        %v909 = vsub.f32 %v777, %v893
        %v910 = vsub.f32 %v780, %v893
        %v911 = vsub.f32 %v782, %v893
        %v912 = vsub.f32 %v785, %v893
        %v913 = vsub.f32 %v787, %v893
        %v914 = vsub.f32 %v790, %v893
        %v915 = vsub.f32 %v792, %v893
        %v916 = vsub.f32 %v795, %v893
        %v917 = vsub.f32 %v797, %v893
        %v918 = vsub.f32 %v800, %v893
        %v919 = vsub.f32 %v802, %v893
        %v920 = vsub.f32 %v805, %v893
        %v921 = vsub.f32 %v807, %v893
        %v922 = vsub.f32 %v810, %v893
        %v923 = vsub.f32 %v812, %v893
        %v924 = vsub.f32 %v815, %v893
        %v925 = vsub.f32 %v817, %v893
        %v926 = vmul.f32 %v894, %v894
        %v927 = vmul.f32 %v895, %v895
        %v928 = vmul.f32 %v896, %v896
        %v929 = vmul.f32 %v897, %v897
        %v930 = vmul.f32 %v898, %v898
        %v931 = vmul.f32 %v899, %v899
        %v932 = vmul.f32 %v900, %v900
        %v933 = vmul.f32 %v901, %v901
        %v934 = vmul.f32 %v902, %v902
        %v935 = vmul.f32 %v903, %v903
        %v936 = vmul.f32 %v904, %v904
        %v937 = vmul.f32 %v905, %v905
        %v938 = vmul.f32 %v906, %v906
        %v939 = vmul.f32 %v907, %v907
        %v940 = vmul.f32 %v908, %v908
        %v941 = vmul.f32 %v909, %v909
        %v942 = vmul.f32 %v910, %v910
        %v943 = vmul.f32 %v911, %v911
        %v944 = vmul.f32 %v912, %v912
        %v945 = vmul.f32 %v913, %v913
        %v946 = vmul.f32 %v914, %v914
        %v947 = vmul.f32 %v915, %v915
        %v948 = vmul.f32 %v916, %v916
        %v949 = vmul.f32 %v917, %v917
        %v950 = vmul.f32 %v918, %v918
        %v951 = vmul.f32 %v919, %v919
        %v952 = vmul.f32 %v920, %v920
        %v953 = vmul.f32 %v921, %v921
        %v954 = vmul.f32 %v922, %v922
        %v955 = vmul.f32 %v923, %v923
        %v956 = vmul.f32 %v924, %v924
        %v957 = vmul.f32 %v925, %v925
        %v958 = vsel %vm819, %v926, 0.0
        %v959 = vsel %vm819, %v927, 0.0
        %v960 = vadd.f32 %v958, %v959
        %v961 = vsel %vm819, %v928, 0.0
        %v962 = vadd.f32 %v960, %v961
        %v963 = vsel %vm819, %v929, 0.0
        %v964 = vadd.f32 %v962, %v963
        %v965 = vsel %vm819, %v930, 0.0
        %v966 = vadd.f32 %v964, %v965
        %v967 = vsel %vm819, %v931, 0.0
        %v968 = vadd.f32 %v966, %v967
        %v969 = vsel %vm819, %v932, 0.0
        %v970 = vadd.f32 %v968, %v969
        %v971 = vsel %vm819, %v933, 0.0
        %v972 = vadd.f32 %v970, %v971
        %v973 = vsel %vm819, %v934, 0.0
        %v974 = vadd.f32 %v972, %v973
        %v975 = vsel %vm819, %v935, 0.0
        %v976 = vadd.f32 %v974, %v975
        %v977 = vsel %vm819, %v936, 0.0
        %v978 = vadd.f32 %v976, %v977
        %v979 = vsel %vm819, %v937, 0.0
        %v980 = vadd.f32 %v978, %v979
        %v981 = vsel %vm819, %v938, 0.0
        %v982 = vadd.f32 %v980, %v981
        %v983 = vsel %vm819, %v939, 0.0
        %v984 = vadd.f32 %v982, %v983
        %v985 = vsel %vm819, %v940, 0.0
        %v986 = vadd.f32 %v984, %v985
        %v987 = vsel %vm819, %v941, 0.0
        %v988 = vadd.f32 %v986, %v987
        %v989 = vsel %vm819, %v942, 0.0
        %v990 = vadd.f32 %v988, %v989
        %v991 = vsel %vm819, %v943, 0.0
        %v992 = vadd.f32 %v990, %v991
        %v993 = vsel %vm819, %v944, 0.0
        %v994 = vadd.f32 %v992, %v993
        %v995 = vsel %vm819, %v945, 0.0
        %v996 = vadd.f32 %v994, %v995
        %v997 = vsel %vm819, %v946, 0.0
        %v998 = vadd.f32 %v996, %v997
        %v999 = vsel %vm819, %v947, 0.0
        %v1000 = vadd.f32 %v998, %v999
        %v1001 = vsel %vm819, %v948, 0.0
        %v1002 = vadd.f32 %v1000, %v1001
        %v1003 = vsel %vm819, %v949, 0.0
        %v1004 = vadd.f32 %v1002, %v1003
        %v1005 = vsel %vm819, %v950, 0.0
        %v1006 = vadd.f32 %v1004, %v1005
        %v1007 = vsel %vm819, %v951, 0.0
        %v1008 = vadd.f32 %v1006, %v1007
        %v1009 = vsel %vm819, %v952, 0.0
        %v1010 = vadd.f32 %v1008, %v1009
        %v1011 = vsel %vm819, %v953, 0.0
        %v1012 = vadd.f32 %v1010, %v1011
        %v1013 = vsel %vm819, %v954, 0.0
        %v1014 = vadd.f32 %v1012, %v1013
        %v1015 = vsel %vm819, %v955, 0.0
        %v1016 = vadd.f32 %v1014, %v1015
        %v1017 = vsel %vm819, %v956, 0.0
        %v1018 = vadd.f32 %v1016, %v1017
        %v1019 = vsel %vm819, %v957, 0.0
        %v1020 = vadd.f32 %v1018, %v1019
        %1021 = vadd.xlane.f32.xlu0 %v1020
        %v1022 = vpop.xlane.xlu0 %1021
        %v1023 = vrot.slane %v1022, 4
        %v1024 = vadd.f32 %v1022, %v1023
        %v1025 = vrot.slane %v1024, 2
        %v1026 = vadd.f32 %v1024, %v1025
        %v1027 = vrot.slane %v1026, 1
        %v1028 = vadd.f32 %v1026, %v1027
        %s1029 = vtos %v1028
        %s1030 = smul.f32 %s1029, 0.00024414063
        %s1031 = sadd.f32 %s1030, 1e-05
        %v1032 = vstv %s1031
        %v1033 = vrsqrt.pop %v1032
        %v1034 = vmul.f32 %v1033, %v1032
        %v1035 = vmul.f32 %v1034, %v1033
        %v1036 = vmul.f32 0.5, %v1035
        %v1037 = vsub.f32 1.5, %v1036
        %v1038 = vmul.f32 %v1033, %v1037
        %vm1039 = vweird.f32 %v1032
        %vm1040 = vweird.f32 %v1033
        %vm1041 = vmor %vm1039, %vm1040
        %v1042 = vsel %vm1041, %v1033, %v1038
        %s1043 = vtos %v1042
        %v1044 = vstv %s1043
        %v1045 = vmul.f32 %v894, %v1044
        %v1046 = vmul.f32 %v895, %v1044
        %v1047 = vmul.f32 %v896, %v1044
        %v1048 = vmul.f32 %v897, %v1044
        %v1049 = vmul.f32 %v898, %v1044
        %v1050 = vmul.f32 %v899, %v1044
        %v1051 = vmul.f32 %v900, %v1044
        %v1052 = vmul.f32 %v901, %v1044
        %v1053 = vmul.f32 %v902, %v1044
        %v1054 = vmul.f32 %v903, %v1044
        %v1055 = vmul.f32 %v904, %v1044
        %v1056 = vmul.f32 %v905, %v1044
        %v1057 = vmul.f32 %v906, %v1044
        %v1058 = vmul.f32 %v907, %v1044
        %v1059 = vmul.f32 %v908, %v1044
        %v1060 = vmul.f32 %v909, %v1044
        %v1061 = vmul.f32 %v910, %v1044
        %v1062 = vmul.f32 %v911, %v1044
        %v1063 = vmul.f32 %v912, %v1044
        %v1064 = vmul.f32 %v913, %v1044
        %v1065 = vmul.f32 %v914, %v1044
        %v1066 = vmul.f32 %v915, %v1044
        %v1067 = vmul.f32 %v916, %v1044
        %v1068 = vmul.f32 %v917, %v1044
        %v1069 = vmul.f32 %v918, %v1044
        %v1070 = vmul.f32 %v919, %v1044
        %v1071 = vmul.f32 %v920, %v1044
        %v1072 = vmul.f32 %v921, %v1044
        %v1073 = vmul.f32 %v922, %v1044
        %v1074 = vmul.f32 %v923, %v1044
        %v1075 = vmul.f32 %v924, %v1044
        %v1076 = vmul.f32 %v925, %v1044
        %v1078 = vperm.slane %v519, 0
        %v1080 = vmul.f32 %v1045, %v1078
        %v1081 = vmul.f32 %v1046, %v1078
        %v1082 = vmul.f32 %v1047, %v1078
        %v1083 = vmul.f32 %v1048, %v1078
        %v1084 = vmul.f32 %v1049, %v1078
        %v1085 = vmul.f32 %v1050, %v1078
        %v1086 = vmul.f32 %v1051, %v1078
        %v1087 = vmul.f32 %v1052, %v1078
        %v1088 = vmul.f32 %v1053, %v1078
        %v1089 = vmul.f32 %v1054, %v1078
        %v1090 = vmul.f32 %v1055, %v1078
        %v1091 = vmul.f32 %v1056, %v1078
        %v1092 = vmul.f32 %v1057, %v1078
        %v1093 = vmul.f32 %v1058, %v1078
        %v1094 = vmul.f32 %v1059, %v1078
        %v1095 = vmul.f32 %v1060, %v1078
        %v1096 = vmul.f32 %v1061, %v1078
        %v1097 = vmul.f32 %v1062, %v1078
        %v1098 = vmul.f32 %v1063, %v1078
        %v1099 = vmul.f32 %v1064, %v1078
        %v1100 = vmul.f32 %v1065, %v1078
        %v1101 = vmul.f32 %v1066, %v1078
        %v1102 = vmul.f32 %v1067, %v1078
        %v1103 = vmul.f32 %v1068, %v1078
        %v1104 = vmul.f32 %v1069, %v1078
        %v1105 = vmul.f32 %v1070, %v1078
        %v1106 = vmul.f32 %v1071, %v1078
        %v1107 = vmul.f32 %v1072, %v1078
        %v1108 = vmul.f32 %v1073, %v1078
        %v1109 = vmul.f32 %v1074, %v1078
        %v1110 = vmul.f32 %v1075, %v1078
        %v1111 = vmul.f32 %v1076, %v1078
        %v1113 = vperm.slane %v520, 0
        %v1115 = vadd.f32 %v1080, %v1113
        %v1116 = vadd.f32 %v1081, %v1113
        %v1117 = vadd.f32 %v1082, %v1113
        %v1118 = vadd.f32 %v1083, %v1113
        %v1119 = vadd.f32 %v1084, %v1113
        %v1120 = vadd.f32 %v1085, %v1113
        %v1121 = vadd.f32 %v1086, %v1113
        %v1122 = vadd.f32 %v1087, %v1113
        %v1123 = vadd.f32 %v1088, %v1113
        %v1124 = vadd.f32 %v1089, %v1113
        %v1125 = vadd.f32 %v1090, %v1113
        %v1126 = vadd.f32 %v1091, %v1113
        %v1127 = vadd.f32 %v1092, %v1113
        %v1128 = vadd.f32 %v1093, %v1113
        %v1129 = vadd.f32 %v1094, %v1113
        %v1130 = vadd.f32 %v1095, %v1113
        %v1131 = vadd.f32 %v1096, %v1113
        %v1132 = vadd.f32 %v1097, %v1113
        %v1133 = vadd.f32 %v1098, %v1113
        %v1134 = vadd.f32 %v1099, %v1113
        %v1135 = vadd.f32 %v1100, %v1113
        %v1136 = vadd.f32 %v1101, %v1113
        %v1137 = vadd.f32 %v1102, %v1113
        %v1138 = vadd.f32 %v1103, %v1113
        %v1139 = vadd.f32 %v1104, %v1113
        %v1140 = vadd.f32 %v1105, %v1113
        %v1141 = vadd.f32 %v1106, %v1113
        %v1142 = vadd.f32 %v1107, %v1113
        %v1143 = vadd.f32 %v1108, %v1113
        %v1144 = vadd.f32 %v1109, %v1113
        %v1145 = vadd.f32 %v1110, %v1113
        %v1146 = vadd.f32 %v1111, %v1113
        %v1147 = vmax.f32 %v1115, 0.0
        %v1148 = vmax.f32 %v1116, 0.0
        %v1149 = vmax.f32 %v1117, 0.0
        %v1150 = vmax.f32 %v1118, 0.0
        %v1151 = vmax.f32 %v1119, 0.0
        %v1152 = vmax.f32 %v1120, 0.0
        %v1153 = vmax.f32 %v1121, 0.0
        %v1154 = vmax.f32 %v1122, 0.0
        %v1155 = vmax.f32 %v1123, 0.0
        %v1156 = vmax.f32 %v1124, 0.0
        %v1157 = vmax.f32 %v1125, 0.0
        %v1158 = vmax.f32 %v1126, 0.0
        %v1159 = vmax.f32 %v1127, 0.0
        %v1160 = vmax.f32 %v1128, 0.0
        %v1161 = vmax.f32 %v1129, 0.0
        %v1162 = vmax.f32 %v1130, 0.0
        %v1163 = vmax.f32 %v1131, 0.0
        %v1164 = vmax.f32 %v1132, 0.0
        %v1165 = vmax.f32 %v1133, 0.0
        %v1166 = vmax.f32 %v1134, 0.0
        %v1167 = vmax.f32 %v1135, 0.0
        %v1168 = vmax.f32 %v1136, 0.0
        %v1169 = vmax.f32 %v1137, 0.0
        %v1170 = vmax.f32 %v1138, 0.0
        %v1171 = vmax.f32 %v1139, 0.0
        %v1172 = vmax.f32 %v1140, 0.0
        %v1173 = vmax.f32 %v1141, 0.0
        %v1174 = vmax.f32 %v1142, 0.0
        %v1175 = vmax.f32 %v1143, 0.0
        %v1176 = vmax.f32 %v1144, 0.0
        %v1177 = vmax.f32 %v1145, 0.0
        %v1178 = vmax.f32 %v1146, 0.0
        %v1179 = vpack.c.bf16 %v1147, %v1147
        %v1180 = vpack.c.bf16 %v1148, %v1148
        %v1181 = vpack.c.bf16 %v1149, %v1149
        %v1182 = vpack.c.bf16 %v1150, %v1150
        %v1183 = vpack.c.bf16 %v1151, %v1151
        %v1184 = vpack.c.bf16 %v1152, %v1152
        %v1185 = vpack.c.bf16 %v1153, %v1153
        %v1186 = vpack.c.bf16 %v1154, %v1154
        %v1187 = vpack.c.bf16 %v1155, %v1155
        %v1188 = vpack.c.bf16 %v1156, %v1156
        %v1189 = vpack.c.bf16 %v1157, %v1157
        %v1190 = vpack.c.bf16 %v1158, %v1158
        %v1191 = vpack.c.bf16 %v1159, %v1159
        %v1192 = vpack.c.bf16 %v1160, %v1160
        %v1193 = vpack.c.bf16 %v1161, %v1161
        %v1194 = vpack.c.bf16 %v1162, %v1162
        %v1195 = vpack.c.bf16 %v1163, %v1163
        %v1196 = vpack.c.bf16 %v1164, %v1164
        %v1197 = vpack.c.bf16 %v1165, %v1165
        %v1198 = vpack.c.bf16 %v1166, %v1166
        %v1199 = vpack.c.bf16 %v1167, %v1167
        %v1200 = vpack.c.bf16 %v1168, %v1168
        %v1201 = vpack.c.bf16 %v1169, %v1169
        %v1202 = vpack.c.bf16 %v1170, %v1170
        %v1203 = vpack.c.bf16 %v1171, %v1171
        %v1204 = vpack.c.bf16 %v1172, %v1172
        %v1205 = vpack.c.bf16 %v1173, %v1173
        %v1206 = vpack.c.bf16 %v1174, %v1174
        %v1207 = vpack.c.bf16 %v1175, %v1175
        %v1208 = vpack.c.bf16 %v1176, %v1176
        %v1209 = vpack.c.bf16 %v1177, %v1177
        %v1210 = vpack.c.bf16 %v1178, %v1178
        %s1211 = scalar_lea.vmem [#allocation2], 8
        %1212 = vst.msk [vmem:[%s1211 + $0x4] sm:$0xf] %vm440, %v1179
        %1213 = vst.msk [vmem:[%s1211 + $0xc] sm:$0xf] %vm440, %v1180
        %1214 = vst.msk [vmem:[%s1211 + $0x14] sm:$0xf] %vm440, %v1181
        %1215 = vst.msk [vmem:[%s1211 + $0x1c] sm:$0xf] %vm440, %v1182
        %1216 = vst.msk [vmem:[%s1211 + $0x24] sm:$0xf] %vm440, %v1183
        %1217 = vst.msk [vmem:[%s1211 + $0x2c] sm:$0xf] %vm440, %v1184
        %1218 = vst.msk [vmem:[%s1211 + $0x34] sm:$0xf] %vm440, %v1185
        %1219 = vst.msk [vmem:[%s1211 + $0x3c] sm:$0xf] %vm440, %v1186
        %s1220 = scalar_lea.vmem [#allocation2], 80
        %1221 = vst.msk [vmem:[%s1220] sm:$0xf] %vm440, %v1187
        %1222 = vst.msk [vmem:[%s1220 + $0x8] sm:$0xf] %vm440, %v1188
        %1223 = vst.msk [vmem:[%s1220 + $0x10] sm:$0xf] %vm440, %v1189
        %1224 = vst.msk [vmem:[%s1220 + $0x18] sm:$0xf] %vm440, %v1190
        %1225 = vst.msk [vmem:[%s1220 + $0x20] sm:$0xf] %vm440, %v1191
        %1226 = vst.msk [vmem:[%s1220 + $0x28] sm:$0xf] %vm440, %v1192
        %1227 = vst.msk [vmem:[%s1220 + $0x30] sm:$0xf] %vm440, %v1193
        %1228 = vst.msk [vmem:[%s1220 + $0x38] sm:$0xf] %vm440, %v1194
        %s1229 = scalar_lea.vmem [#allocation2], 144
        %1230 = vst.msk [vmem:[%s1229 + $0x4] sm:$0xf] %vm440, %v1195
        %1231 = vst.msk [vmem:[%s1229 + $0xc] sm:$0xf] %vm440, %v1196
        %1232 = vst.msk [vmem:[%s1229 + $0x14] sm:$0xf] %vm440, %v1197
        %1233 = vst.msk [vmem:[%s1229 + $0x1c] sm:$0xf] %vm440, %v1198
        %1234 = vst.msk [vmem:[%s1229 + $0x24] sm:$0xf] %vm440, %v1199
        %1235 = vst.msk [vmem:[%s1229 + $0x2c] sm:$0xf] %vm440, %v1200
        %1236 = vst.msk [vmem:[%s1229 + $0x34] sm:$0xf] %vm440, %v1201
        %1237 = vst.msk [vmem:[%s1229 + $0x3c] sm:$0xf] %vm440, %v1202
        %s1238 = scalar_lea.vmem [#allocation2], 216
        %1239 = vst.msk [vmem:[%s1238] sm:$0xf] %vm440, %v1203
        %1240 = vst.msk [vmem:[%s1238 + $0x8] sm:$0xf] %vm440, %v1204
        %1241 = vst.msk [vmem:[%s1238 + $0x10] sm:$0xf] %vm440, %v1205
        %1242 = vst.msk [vmem:[%s1238 + $0x18] sm:$0xf] %vm440, %v1206
        %1243 = vst.msk [vmem:[%s1238 + $0x20] sm:$0xf] %vm440, %v1207
        %1244 = vst.msk [vmem:[%s1238 + $0x28] sm:$0xf] %vm440, %v1208
        %1245 = vst.msk [vmem:[%s1238 + $0x30] sm:$0xf] %vm440, %v1209
        %1246 = vst.msk [vmem:[%s1238 + $0x38] sm:$0xf] %vm440, %v1210
        %v1247 = vld [vmem:[#allocation2] sm:$0x8]
        %v1248 = vld [vmem:[#allocation2 + $0x4] sm:$0xf]
        %v1249 = vld [vmem:[#allocation2 + $0x8] sm:$0x8]
        %v1250 = vld [vmem:[#allocation2 + $0xc] sm:$0xf]
        %v1251 = vld [vmem:[#allocation2 + $0x10] sm:$0x8]
        %v1252 = vld [vmem:[#allocation2 + $0x14] sm:$0xf]
        %v1253 = vld [vmem:[#allocation2 + $0x18] sm:$0x8]
        %v1254 = vld [vmem:[#allocation2 + $0x1c] sm:$0xf]
        %v1255 = vld [vmem:[#allocation2 + $0x20] sm:$0x8]
        %v1256 = vld [vmem:[#allocation2 + $0x24] sm:$0xf]
        %v1257 = vld [vmem:[#allocation2 + $0x28] sm:$0x8]
        %v1258 = vld [vmem:[#allocation2 + $0x2c] sm:$0xf]
        %v1259 = vld [vmem:[#allocation2 + $0x30] sm:$0x8]
        %v1260 = vld [vmem:[#allocation2 + $0x34] sm:$0xf]
        %v1261 = vld [vmem:[#allocation2 + $0x38] sm:$0x8]
        %v1262 = vld [vmem:[#allocation2 + $0x3c] sm:$0xf]
        %vm1263 = vsmask.f32 256
        %vm1264 = vsmask.f32 4368
        %vm1265 = vmor %vm1263, %vm1264
        %v1267 = vshrl.u32 %v1247, 16
        %v1269 = vrot.slane %v1267, 7
        %v1270 = vrot.slane %v1269, 4
        %v1272 = vshrl.u32 %v1248, 16
        %v1274 = vrot.slane %v1272, 7
        %v1275 = vshll.u32 %v1248, 16
        %v1277 = vor.u32 %v1274, %v1275
        %v1278 = vsel %vm1265, %v1270, %v1277
        %v1280 = vshrl.u32 %v1249, 16
        %v1282 = vrot.slane %v1280, 7
        %v1283 = vrot.slane %v1282, 4
        %v1285 = vshrl.u32 %v1250, 16
        %v1287 = vrot.slane %v1285, 7
        %v1288 = vshll.u32 %v1250, 16
        %v1290 = vor.u32 %v1287, %v1288
        %v1291 = vsel %vm1265, %v1283, %v1290
        %v1293 = vshrl.u32 %v1251, 16
        %v1295 = vrot.slane %v1293, 7
        %v1296 = vrot.slane %v1295, 4
        %v1298 = vshrl.u32 %v1252, 16
        %v1300 = vrot.slane %v1298, 7
        %v1301 = vshll.u32 %v1252, 16
        %v1303 = vor.u32 %v1300, %v1301
        %v1304 = vsel %vm1265, %v1296, %v1303
        %v1306 = vshrl.u32 %v1253, 16
        %v1308 = vrot.slane %v1306, 7
        %v1309 = vrot.slane %v1308, 4
        %v1311 = vshrl.u32 %v1254, 16
        %v1313 = vrot.slane %v1311, 7
        %v1314 = vshll.u32 %v1254, 16
        %v1316 = vor.u32 %v1313, %v1314
        %v1317 = vsel %vm1265, %v1309, %v1316
        %v1319 = vshrl.u32 %v1255, 16
        %v1321 = vrot.slane %v1319, 7
        %v1322 = vrot.slane %v1321, 4
        %v1324 = vshrl.u32 %v1256, 16
        %v1326 = vrot.slane %v1324, 7
        %v1327 = vshll.u32 %v1256, 16
        %v1329 = vor.u32 %v1326, %v1327
        %v1330 = vsel %vm1265, %v1322, %v1329
        %v1332 = vshrl.u32 %v1257, 16
        %v1334 = vrot.slane %v1332, 7
        %v1335 = vrot.slane %v1334, 4
        %v1337 = vshrl.u32 %v1258, 16
        %v1339 = vrot.slane %v1337, 7
        %v1340 = vshll.u32 %v1258, 16
        %v1342 = vor.u32 %v1339, %v1340
        %v1343 = vsel %vm1265, %v1335, %v1342
        %v1345 = vshrl.u32 %v1259, 16
        %v1347 = vrot.slane %v1345, 7
        %v1348 = vrot.slane %v1347, 4
        %v1350 = vshrl.u32 %v1260, 16
        %v1352 = vrot.slane %v1350, 7
        %v1353 = vshll.u32 %v1260, 16
        %v1355 = vor.u32 %v1352, %v1353
        %v1356 = vsel %vm1265, %v1348, %v1355
        %v1358 = vshrl.u32 %v1261, 16
        %v1360 = vrot.slane %v1358, 7
        %v1361 = vrot.slane %v1360, 4
        %v1363 = vshrl.u32 %v1262, 16
        %v1365 = vrot.slane %v1363, 7
        %v1366 = vshll.u32 %v1262, 16
        %v1368 = vor.u32 %v1365, %v1366
        %v1369 = vsel %vm1265, %v1361, %v1368
        %s1370 = scalar_lea.vmem [#allocation2], 72
        %v1371 = vld [vmem:[%s1370] sm:$0xf]
        %v1372 = vld [vmem:[%s1370 + $0x8] sm:$0xf]
        %v1373 = vld [vmem:[%s1370 + $0x10] sm:$0xf]
        %v1374 = vld [vmem:[%s1370 + $0x18] sm:$0xf]
        %v1375 = vld [vmem:[%s1370 + $0x20] sm:$0xf]
        %v1376 = vld [vmem:[%s1370 + $0x28] sm:$0xf]
        %v1377 = vld [vmem:[%s1370 + $0x30] sm:$0xf]
        %v1378 = vld [vmem:[%s1370 + $0x38] sm:$0xf]
        %v1387 = vunpack.c.l.b16 %v1371
        %v1388 = vunpack.c.l.b16 %v1372
        %v1389 = vunpack.c.l.b16 %v1373
        %v1390 = vunpack.c.l.b16 %v1374
        %v1391 = vunpack.c.l.b16 %v1375
        %v1392 = vunpack.c.l.b16 %v1376
        %v1393 = vunpack.c.l.b16 %v1377
        %v1394 = vunpack.c.l.b16 %v1378
        %v1395 = vpack.c.b16 %v1388, %v1387
        %v1396 = vpack.c.b16 %v1390, %v1389
        %v1397 = vpack.c.b16 %v1392, %v1391
        %v1398 = vpack.c.b16 %v1394, %v1393
        %v1401 = vunpack.c.l.b16 %v528
        %v1402 = vunpack.c.l.b16 %v529
        %v1403 = vpack.c.b16 %v1402, %v1401
        %v1406 = vsel %vm819, %v1395, 0
        %v1409 = vsel %vm819, %v1396, 0
        %v1412 = vsel %vm819, %v1397, 0
        %v1415 = vsel %vm819, %v1398, 0
        %1417 = vmatpush.bf16.msra.mxu0 0
        %1418 = vmatpush.bf16.msra.mxu0 0
        %1419 = vmatpush.bf16.msra.mxu0 0
        %1420 = vmatpush.bf16.msra.mxu0 0
        %1421 = vmatpush.bf16.msra.mxu0 0
        %1422 = vmatpush.bf16.msra.mxu0 0
        %1423 = vmatpush.bf16.msra.mxu0 0
        %1424 = vmatpush.bf16.msra.mxu0 %v1403
        %1425 = vmatmul.bf16.gmra.mxu0 %v1406
        %v1426 = vpop.f32.mrf.mxu0
        %v1427 = vadd.f32 0.0, %v1426
        %v1428 = vpop.f32.mrf.mxu0
        %v1429 = vadd.f32 0.0, %v1428
        %1430 = vmatmul.bf16.gmra.mxu0 %v1409
        %v1431 = vpop.f32.mrf.mxu0
        %v1432 = vadd.f32 0.0, %v1431
        %v1433 = vpop.f32.mrf.mxu0
        %v1434 = vadd.f32 0.0, %v1433
        %1435 = vmatmul.bf16.gmra.mxu0 %v1412
        %v1436 = vpop.f32.mrf.mxu0
        %v1437 = vadd.f32 0.0, %v1436
        %v1438 = vpop.f32.mrf.mxu0
        %v1439 = vadd.f32 0.0, %v1438
        %1440 = vmatmul.bf16.gmra.mxu0 %v1415
        %v1441 = vpop.f32.mrf.mxu0
        %v1442 = vadd.f32 0.0, %v1441
        %v1443 = vpop.f32.mrf.mxu0
        %v1444 = vadd.f32 0.0, %v1443
        %1445 = vdwg.mxu0
        %v1446 = vunpack.c.l.b16 %v1278
        %v1447 = vunpack.c.l.b16 %v1291
        %v1448 = vunpack.c.l.b16 %v1304
        %v1449 = vunpack.c.l.b16 %v1317
        %v1450 = vunpack.c.l.b16 %v1330
        %v1451 = vunpack.c.l.b16 %v1343
        %v1452 = vunpack.c.l.b16 %v1356
        %v1453 = vunpack.c.l.b16 %v1369
        %v1454 = vpack.c.b16 %v1447, %v1446
        %v1455 = vpack.c.b16 %v1449, %v1448
        %v1456 = vpack.c.b16 %v1451, %v1450
        %v1457 = vpack.c.b16 %v1453, %v1452
        %v1460 = vunpack.c.l.b16 %v525
        %v1461 = vunpack.c.l.b16 %v526
        %v1462 = vpack.c.b16 %v1461, %v1460
        %v1465 = vsel %vm819, %v1454, 0
        %v1468 = vsel %vm819, %v1455, 0
        %v1471 = vsel %vm819, %v1456, 0
        %v1474 = vsel %vm819, %v1457, 0
        %1476 = vmatpush.bf16.msra.mxu0 0
        %1477 = vmatpush.bf16.msra.mxu0 0
        %1478 = vmatpush.bf16.msra.mxu0 0
        %1479 = vmatpush.bf16.msra.mxu0 0
        %1480 = vmatpush.bf16.msra.mxu0 0
        %1481 = vmatpush.bf16.msra.mxu0 0
        %1482 = vmatpush.bf16.msra.mxu0 0
        %1483 = vmatpush.bf16.msra.mxu0 %v1462
        %1484 = vmatmul.bf16.gmra.mxu0 %v1465
        %v1485 = vpop.f32.mrf.mxu0
        %v1486 = vadd.f32 %v1427, %v1485
        %v1487 = vpop.f32.mrf.mxu0
        %v1488 = vadd.f32 %v1429, %v1487
        %1489 = vmatmul.bf16.gmra.mxu0 %v1468
        %v1490 = vpop.f32.mrf.mxu0
        %v1491 = vadd.f32 %v1432, %v1490
        %v1492 = vpop.f32.mrf.mxu0
        %v1493 = vadd.f32 %v1434, %v1492
        %1494 = vmatmul.bf16.gmra.mxu0 %v1471
        %v1495 = vpop.f32.mrf.mxu0
        %v1496 = vadd.f32 %v1437, %v1495
        %v1497 = vpop.f32.mrf.mxu0
        %v1498 = vadd.f32 %v1439, %v1497
        %1499 = vmatmul.bf16.gmra.mxu0 %v1474
        %v1500 = vpop.f32.mrf.mxu0
        %v1501 = vadd.f32 %v1442, %v1500
        %v1502 = vpop.f32.mrf.mxu0
        %v1503 = vadd.f32 %v1444, %v1502
        %1504 = vdwg.mxu0
        %v1513 = vunpack.c.l.b16 %v1248
        %v1514 = vunpack.c.l.b16 %v1250
        %v1515 = vunpack.c.l.b16 %v1252
        %v1516 = vunpack.c.l.b16 %v1254
        %v1517 = vunpack.c.l.b16 %v1256
        %v1518 = vunpack.c.l.b16 %v1258
        %v1519 = vunpack.c.l.b16 %v1260
        %v1520 = vunpack.c.l.b16 %v1262
        %v1521 = vpack.c.b16 %v1514, %v1513
        %v1522 = vpack.c.b16 %v1516, %v1515
        %v1523 = vpack.c.b16 %v1518, %v1517
        %v1524 = vpack.c.b16 %v1520, %v1519
        %v1527 = vunpack.c.l.b16 %v531
        %v1528 = vunpack.c.l.b16 %v532
        %v1529 = vpack.c.b16 %v1528, %v1527
        %v1532 = vsel %vm819, %v1521, 0
        %v1535 = vsel %vm819, %v1522, 0
        %v1538 = vsel %vm819, %v1523, 0
        %v1541 = vsel %vm819, %v1524, 0
        %1543 = vmatpush.bf16.msra.mxu0 0
        %1544 = vmatpush.bf16.msra.mxu0 0
        %1545 = vmatpush.bf16.msra.mxu0 0
        %1546 = vmatpush.bf16.msra.mxu0 0
        %1547 = vmatpush.bf16.msra.mxu0 0
        %1548 = vmatpush.bf16.msra.mxu0 0
        %1549 = vmatpush.bf16.msra.mxu0 0
        %1550 = vmatpush.bf16.msra.mxu0 %v1529
        %1551 = vmatmul.bf16.gmra.mxu0 %v1532
        %v1552 = vpop.f32.mrf.mxu0
        %v1553 = vadd.f32 0.0, %v1552
        %v1554 = vpop.f32.mrf.mxu0
        %v1555 = vadd.f32 0.0, %v1554
        %1556 = vmatmul.bf16.gmra.mxu0 %v1535
        %v1557 = vpop.f32.mrf.mxu0
        %v1558 = vadd.f32 0.0, %v1557
        %v1559 = vpop.f32.mrf.mxu0
        %v1560 = vadd.f32 0.0, %v1559
        %1561 = vmatmul.bf16.gmra.mxu0 %v1538
        %v1562 = vpop.f32.mrf.mxu0
        %v1563 = vadd.f32 0.0, %v1562
        %v1564 = vpop.f32.mrf.mxu0
        %v1565 = vadd.f32 0.0, %v1564
        %1566 = vmatmul.bf16.gmra.mxu0 %v1541
        %v1567 = vpop.f32.mrf.mxu0
        %v1568 = vadd.f32 0.0, %v1567
        %v1569 = vpop.f32.mrf.mxu0
        %v1570 = vadd.f32 0.0, %v1569
        %1571 = vdwg.mxu0
        %v1572 = vadd.f32 %v1486, %v1553
        %v1573 = vadd.f32 %v1488, %v1555
        %v1574 = vadd.f32 %v1491, %v1558
        %v1575 = vadd.f32 %v1493, %v1560
        %v1576 = vadd.f32 %v1496, %v1563
        %v1577 = vadd.f32 %v1498, %v1565
        %v1578 = vadd.f32 %v1501, %v1568
        %v1579 = vadd.f32 %v1503, %v1570
        %v1580 = vld [vmem:[%s1229] sm:$0x8]
        %v1581 = vld [vmem:[%s1229 + $0x4] sm:$0xf]
        %v1582 = vld [vmem:[%s1229 + $0x8] sm:$0x8]
        %v1583 = vld [vmem:[%s1229 + $0xc] sm:$0xf]
        %v1584 = vld [vmem:[%s1229 + $0x10] sm:$0x8]
        %v1585 = vld [vmem:[%s1229 + $0x14] sm:$0xf]
        %v1586 = vld [vmem:[%s1229 + $0x18] sm:$0x8]
        %v1587 = vld [vmem:[%s1229 + $0x1c] sm:$0xf]
        %v1588 = vld [vmem:[%s1229 + $0x20] sm:$0x8]
        %v1589 = vld [vmem:[%s1229 + $0x24] sm:$0xf]
        %v1590 = vld [vmem:[%s1229 + $0x28] sm:$0x8]
        %v1591 = vld [vmem:[%s1229 + $0x2c] sm:$0xf]
        %v1592 = vld [vmem:[%s1229 + $0x30] sm:$0x8]
        %v1593 = vld [vmem:[%s1229 + $0x34] sm:$0xf]
        %v1594 = vld [vmem:[%s1229 + $0x38] sm:$0x8]
        %v1595 = vld [vmem:[%s1229 + $0x3c] sm:$0xf]
        %v1597 = vshrl.u32 %v1580, 16
        %v1599 = vrot.slane %v1597, 7
        %v1600 = vrot.slane %v1599, 4
        %v1602 = vshrl.u32 %v1581, 16
        %v1604 = vrot.slane %v1602, 7
        %v1605 = vshll.u32 %v1581, 16
        %v1607 = vor.u32 %v1604, %v1605
        %v1608 = vsel %vm1265, %v1600, %v1607
        %v1610 = vshrl.u32 %v1582, 16
        %v1612 = vrot.slane %v1610, 7
        %v1613 = vrot.slane %v1612, 4
        %v1615 = vshrl.u32 %v1583, 16
        %v1617 = vrot.slane %v1615, 7
        %v1618 = vshll.u32 %v1583, 16
        %v1620 = vor.u32 %v1617, %v1618
        %v1621 = vsel %vm1265, %v1613, %v1620
        %v1623 = vshrl.u32 %v1584, 16
        %v1625 = vrot.slane %v1623, 7
        %v1626 = vrot.slane %v1625, 4
        %v1628 = vshrl.u32 %v1585, 16
        %v1630 = vrot.slane %v1628, 7
        %v1631 = vshll.u32 %v1585, 16
        %v1633 = vor.u32 %v1630, %v1631
        %v1634 = vsel %vm1265, %v1626, %v1633
        %v1636 = vshrl.u32 %v1586, 16
        %v1638 = vrot.slane %v1636, 7
        %v1639 = vrot.slane %v1638, 4
        %v1641 = vshrl.u32 %v1587, 16
        %v1643 = vrot.slane %v1641, 7
        %v1644 = vshll.u32 %v1587, 16
        %v1646 = vor.u32 %v1643, %v1644
        %v1647 = vsel %vm1265, %v1639, %v1646
        %v1649 = vshrl.u32 %v1588, 16
        %v1651 = vrot.slane %v1649, 7
        %v1652 = vrot.slane %v1651, 4
        %v1654 = vshrl.u32 %v1589, 16
        %v1656 = vrot.slane %v1654, 7
        %v1657 = vshll.u32 %v1589, 16
        %v1659 = vor.u32 %v1656, %v1657
        %v1660 = vsel %vm1265, %v1652, %v1659
        %v1662 = vshrl.u32 %v1590, 16
        %v1664 = vrot.slane %v1662, 7
        %v1665 = vrot.slane %v1664, 4
        %v1667 = vshrl.u32 %v1591, 16
        %v1669 = vrot.slane %v1667, 7
        %v1670 = vshll.u32 %v1591, 16
        %v1672 = vor.u32 %v1669, %v1670
        %v1673 = vsel %vm1265, %v1665, %v1672
        %v1675 = vshrl.u32 %v1592, 16
        %v1677 = vrot.slane %v1675, 7
        %v1678 = vrot.slane %v1677, 4
        %v1680 = vshrl.u32 %v1593, 16
        %v1682 = vrot.slane %v1680, 7
        %v1683 = vshll.u32 %v1593, 16
        %v1685 = vor.u32 %v1682, %v1683
        %v1686 = vsel %vm1265, %v1678, %v1685
        %v1688 = vshrl.u32 %v1594, 16
        %v1690 = vrot.slane %v1688, 7
        %v1691 = vrot.slane %v1690, 4
        %v1693 = vshrl.u32 %v1595, 16
        %v1695 = vrot.slane %v1693, 7
        %v1696 = vshll.u32 %v1595, 16
        %v1698 = vor.u32 %v1695, %v1696
        %v1699 = vsel %vm1265, %v1691, %v1698
        %v1700 = vunpack.c.l.b16 %v1608
        %v1701 = vunpack.c.l.b16 %v1621
        %v1702 = vunpack.c.l.b16 %v1634
        %v1703 = vunpack.c.l.b16 %v1647
        %v1704 = vunpack.c.l.b16 %v1660
        %v1705 = vunpack.c.l.b16 %v1673
        %v1706 = vunpack.c.l.b16 %v1686
        %v1707 = vunpack.c.l.b16 %v1699
        %v1708 = vpack.c.b16 %v1701, %v1700
        %v1709 = vpack.c.b16 %v1703, %v1702
        %v1710 = vpack.c.b16 %v1705, %v1704
        %v1711 = vpack.c.b16 %v1707, %v1706
        %v1714 = vunpack.c.l.b16 %v534
        %v1715 = vunpack.c.l.b16 %v535
        %v1716 = vpack.c.b16 %v1715, %v1714
        %v1719 = vsel %vm819, %v1708, 0
        %v1722 = vsel %vm819, %v1709, 0
        %v1725 = vsel %vm819, %v1710, 0
        %v1728 = vsel %vm819, %v1711, 0
        %1730 = vmatpush.bf16.msra.mxu0 0
        %1731 = vmatpush.bf16.msra.mxu0 0
        %1732 = vmatpush.bf16.msra.mxu0 0
        %1733 = vmatpush.bf16.msra.mxu0 0
        %1734 = vmatpush.bf16.msra.mxu0 0
        %1735 = vmatpush.bf16.msra.mxu0 0
        %1736 = vmatpush.bf16.msra.mxu0 0
        %1737 = vmatpush.bf16.msra.mxu0 %v1716
        %1738 = vmatmul.bf16.gmra.mxu0 %v1719
        %v1739 = vpop.f32.mrf.mxu0
        %v1740 = vadd.f32 0.0, %v1739
        %v1741 = vpop.f32.mrf.mxu0
        %v1742 = vadd.f32 0.0, %v1741
        %1743 = vmatmul.bf16.gmra.mxu0 %v1722
        %v1744 = vpop.f32.mrf.mxu0
        %v1745 = vadd.f32 0.0, %v1744
        %v1746 = vpop.f32.mrf.mxu0
        %v1747 = vadd.f32 0.0, %v1746
        %1748 = vmatmul.bf16.gmra.mxu0 %v1725
        %v1749 = vpop.f32.mrf.mxu0
        %v1750 = vadd.f32 0.0, %v1749
        %v1751 = vpop.f32.mrf.mxu0
        %v1752 = vadd.f32 0.0, %v1751
        %1753 = vmatmul.bf16.gmra.mxu0 %v1728
        %v1754 = vpop.f32.mrf.mxu0
        %v1755 = vadd.f32 0.0, %v1754
        %v1756 = vpop.f32.mrf.mxu0
        %v1757 = vadd.f32 0.0, %v1756
        %1758 = vdwg.mxu0
        %v1759 = vadd.f32 %v1572, %v1740
        %v1760 = vadd.f32 %v1573, %v1742
        %v1761 = vadd.f32 %v1574, %v1745
        %v1762 = vadd.f32 %v1575, %v1747
        %v1763 = vadd.f32 %v1576, %v1750
        %v1764 = vadd.f32 %v1577, %v1752
        %v1765 = vadd.f32 %v1578, %v1755
        %v1766 = vadd.f32 %v1579, %v1757
        %v1767 = vld [vmem:[%s1238] sm:$0xf]
        %v1768 = vld [vmem:[%s1238 + $0x8] sm:$0xf]
        %v1769 = vld [vmem:[%s1238 + $0x10] sm:$0xf]
        %v1770 = vld [vmem:[%s1238 + $0x18] sm:$0xf]
        %v1771 = vld [vmem:[%s1238 + $0x20] sm:$0xf]
        %v1772 = vld [vmem:[%s1238 + $0x28] sm:$0xf]
        %v1773 = vld [vmem:[%s1238 + $0x30] sm:$0xf]
        %v1774 = vld [vmem:[%s1238 + $0x38] sm:$0xf]
        %v1783 = vunpack.c.l.b16 %v1767
        %v1784 = vunpack.c.l.b16 %v1768
        %v1785 = vunpack.c.l.b16 %v1769
        %v1786 = vunpack.c.l.b16 %v1770
        %v1787 = vunpack.c.l.b16 %v1771
        %v1788 = vunpack.c.l.b16 %v1772
        %v1789 = vunpack.c.l.b16 %v1773
        %v1790 = vunpack.c.l.b16 %v1774
        %v1791 = vpack.c.b16 %v1784, %v1783
        %v1792 = vpack.c.b16 %v1786, %v1785
        %v1793 = vpack.c.b16 %v1788, %v1787
        %v1794 = vpack.c.b16 %v1790, %v1789
        %v1797 = vunpack.c.l.b16 %v537
        %v1798 = vunpack.c.l.b16 %v538
        %v1799 = vpack.c.b16 %v1798, %v1797
        %v1802 = vsel %vm819, %v1791, 0
        %v1805 = vsel %vm819, %v1792, 0
        %v1808 = vsel %vm819, %v1793, 0
        %v1811 = vsel %vm819, %v1794, 0
        %1813 = vmatpush.bf16.msra.mxu0 0
        %1814 = vmatpush.bf16.msra.mxu0 0
        %1815 = vmatpush.bf16.msra.mxu0 0
        %1816 = vmatpush.bf16.msra.mxu0 0
        %1817 = vmatpush.bf16.msra.mxu0 0
        %1818 = vmatpush.bf16.msra.mxu0 0
        %1819 = vmatpush.bf16.msra.mxu0 0
        %1820 = vmatpush.bf16.msra.mxu0 %v1799
        %1821 = vmatmul.bf16.gmra.mxu0 %v1802
        %v1822 = vpop.f32.mrf.mxu0
        %v1823 = vadd.f32 0.0, %v1822
        %v1824 = vpop.f32.mrf.mxu0
        %v1825 = vadd.f32 0.0, %v1824
        %1826 = vmatmul.bf16.gmra.mxu0 %v1805
        %v1827 = vpop.f32.mrf.mxu0
        %v1828 = vadd.f32 0.0, %v1827
        %v1829 = vpop.f32.mrf.mxu0
        %v1830 = vadd.f32 0.0, %v1829
        %1831 = vmatmul.bf16.gmra.mxu0 %v1808
        %v1832 = vpop.f32.mrf.mxu0
        %v1833 = vadd.f32 0.0, %v1832
        %v1834 = vpop.f32.mrf.mxu0
        %v1835 = vadd.f32 0.0, %v1834
        %1836 = vmatmul.bf16.gmra.mxu0 %v1811
        %v1837 = vpop.f32.mrf.mxu0
        %v1838 = vadd.f32 0.0, %v1837
        %v1839 = vpop.f32.mrf.mxu0
        %v1840 = vadd.f32 0.0, %v1839
        %1841 = vdwg.mxu0
        %v1842 = vadd.f32 %v1759, %v1823
        %v1843 = vadd.f32 %v1760, %v1825
        %v1844 = vadd.f32 %v1761, %v1828
        %v1845 = vadd.f32 %v1762, %v1830
        %v1846 = vadd.f32 %v1763, %v1833
        %v1847 = vadd.f32 %v1764, %v1835
        %v1848 = vadd.f32 %v1765, %v1838
        %v1849 = vadd.f32 %v1766, %v1840
        %v1858 = vunpack.c.l.b16 %v1581
        %v1859 = vunpack.c.l.b16 %v1583
        %v1860 = vunpack.c.l.b16 %v1585
        %v1861 = vunpack.c.l.b16 %v1587
        %v1862 = vunpack.c.l.b16 %v1589
        %v1863 = vunpack.c.l.b16 %v1591
        %v1864 = vunpack.c.l.b16 %v1593
        %v1865 = vunpack.c.l.b16 %v1595
        %v1866 = vpack.c.b16 %v1859, %v1858
        %v1867 = vpack.c.b16 %v1861, %v1860
        %v1868 = vpack.c.b16 %v1863, %v1862
        %v1869 = vpack.c.b16 %v1865, %v1864
        %v1872 = vunpack.c.l.b16 %v540
        %v1873 = vunpack.c.l.b16 %v541
        %v1874 = vpack.c.b16 %v1873, %v1872
        %v1877 = vsel %vm819, %v1866, 0
        %v1880 = vsel %vm819, %v1867, 0
        %v1883 = vsel %vm819, %v1868, 0
        %v1886 = vsel %vm819, %v1869, 0
        %1888 = vmatpush.bf16.msra.mxu0 0
        %1889 = vmatpush.bf16.msra.mxu0 0
        %1890 = vmatpush.bf16.msra.mxu0 0
        %1891 = vmatpush.bf16.msra.mxu0 0
        %1892 = vmatpush.bf16.msra.mxu0 0
        %1893 = vmatpush.bf16.msra.mxu0 0
        %1894 = vmatpush.bf16.msra.mxu0 0
        %1895 = vmatpush.bf16.msra.mxu0 %v1874
        %1896 = vmatmul.bf16.gmra.mxu0 %v1877
        %v1897 = vpop.f32.mrf.mxu0
        %v1898 = vadd.f32 0.0, %v1897
        %v1899 = vpop.f32.mrf.mxu0
        %v1900 = vadd.f32 0.0, %v1899
        %1901 = vmatmul.bf16.gmra.mxu0 %v1880
        %v1902 = vpop.f32.mrf.mxu0
        %v1903 = vadd.f32 0.0, %v1902
        %v1904 = vpop.f32.mrf.mxu0
        %v1905 = vadd.f32 0.0, %v1904
        %1906 = vmatmul.bf16.gmra.mxu0 %v1883
        %v1907 = vpop.f32.mrf.mxu0
        %v1908 = vadd.f32 0.0, %v1907
        %v1909 = vpop.f32.mrf.mxu0
        %v1910 = vadd.f32 0.0, %v1909
        %1911 = vmatmul.bf16.gmra.mxu0 %v1886
        %v1912 = vpop.f32.mrf.mxu0
        %v1913 = vadd.f32 0.0, %v1912
        %v1914 = vpop.f32.mrf.mxu0
        %v1915 = vadd.f32 0.0, %v1914
        %1916 = vdwg.mxu0
        %v1917 = vadd.f32 %v1842, %v1898
        %v1918 = vadd.f32 %v1843, %v1900
        %v1919 = vadd.f32 %v1844, %v1903
        %v1920 = vadd.f32 %v1845, %v1905
        %v1921 = vadd.f32 %v1846, %v1908
        %v1922 = vadd.f32 %v1847, %v1910
        %v1923 = vadd.f32 %v1848, %v1913
        %v1924 = vadd.f32 %v1849, %v1915
        %v1925 = vld [vmem:[%s1211] sm:$0x8]
        %v1926 = vld [vmem:[%s1211 + $0x4] sm:$0xf]
        %v1927 = vld [vmem:[%s1211 + $0x8] sm:$0x8]
        %v1928 = vld [vmem:[%s1211 + $0xc] sm:$0xf]
        %v1929 = vld [vmem:[%s1211 + $0x10] sm:$0x8]
        %v1930 = vld [vmem:[%s1211 + $0x14] sm:$0xf]
        %v1931 = vld [vmem:[%s1211 + $0x18] sm:$0x8]
        %v1932 = vld [vmem:[%s1211 + $0x1c] sm:$0xf]
        %v1933 = vld [vmem:[%s1211 + $0x20] sm:$0x8]
        %v1934 = vld [vmem:[%s1211 + $0x24] sm:$0xf]
        %v1935 = vld [vmem:[%s1211 + $0x28] sm:$0x8]
        %v1936 = vld [vmem:[%s1211 + $0x2c] sm:$0xf]
        %v1937 = vld [vmem:[%s1211 + $0x30] sm:$0x8]
        %v1938 = vld [vmem:[%s1211 + $0x34] sm:$0xf]
        %v1939 = vld [vmem:[%s1211 + $0x38] sm:$0x8]
        %v1940 = vld [vmem:[%s1211 + $0x3c] sm:$0xf]
        %v1942 = vshrl.u32 %v1925, 16
        %v1944 = vrot.slane %v1942, 7
        %v1945 = vrot.slane %v1944, 4
        %v1947 = vshrl.u32 %v1926, 16
        %v1949 = vrot.slane %v1947, 7
        %v1950 = vshll.u32 %v1926, 16
        %v1952 = vor.u32 %v1949, %v1950
        %v1953 = vsel %vm1265, %v1945, %v1952
        %v1955 = vshrl.u32 %v1927, 16
        %v1957 = vrot.slane %v1955, 7
        %v1958 = vrot.slane %v1957, 4
        %v1960 = vshrl.u32 %v1928, 16
        %v1962 = vrot.slane %v1960, 7
        %v1963 = vshll.u32 %v1928, 16
        %v1965 = vor.u32 %v1962, %v1963
        %v1966 = vsel %vm1265, %v1958, %v1965
        %v1968 = vshrl.u32 %v1929, 16
        %v1970 = vrot.slane %v1968, 7
        %v1971 = vrot.slane %v1970, 4
        %v1973 = vshrl.u32 %v1930, 16
        %v1975 = vrot.slane %v1973, 7
        %v1976 = vshll.u32 %v1930, 16
        %v1978 = vor.u32 %v1975, %v1976
        %v1979 = vsel %vm1265, %v1971, %v1978
        %v1981 = vshrl.u32 %v1931, 16
        %v1983 = vrot.slane %v1981, 7
        %v1984 = vrot.slane %v1983, 4
        %v1986 = vshrl.u32 %v1932, 16
        %v1988 = vrot.slane %v1986, 7
        %v1989 = vshll.u32 %v1932, 16
        %v1991 = vor.u32 %v1988, %v1989
        %v1992 = vsel %vm1265, %v1984, %v1991
        %v1994 = vshrl.u32 %v1933, 16
        %v1996 = vrot.slane %v1994, 7
        %v1997 = vrot.slane %v1996, 4
        %v1999 = vshrl.u32 %v1934, 16
        %v2001 = vrot.slane %v1999, 7
        %v2002 = vshll.u32 %v1934, 16
        %v2004 = vor.u32 %v2001, %v2002
        %v2005 = vsel %vm1265, %v1997, %v2004
        %v2007 = vshrl.u32 %v1935, 16
        %v2009 = vrot.slane %v2007, 7
        %v2010 = vrot.slane %v2009, 4
        %v2012 = vshrl.u32 %v1936, 16
        %v2014 = vrot.slane %v2012, 7
        %v2015 = vshll.u32 %v1936, 16
        %v2017 = vor.u32 %v2014, %v2015
        %v2018 = vsel %vm1265, %v2010, %v2017
        %v2020 = vshrl.u32 %v1937, 16
        %v2022 = vrot.slane %v2020, 7
        %v2023 = vrot.slane %v2022, 4
        %v2025 = vshrl.u32 %v1938, 16
        %v2027 = vrot.slane %v2025, 7
        %v2028 = vshll.u32 %v1938, 16
        %v2030 = vor.u32 %v2027, %v2028
        %v2031 = vsel %vm1265, %v2023, %v2030
        %v2033 = vshrl.u32 %v1939, 16
        %v2035 = vrot.slane %v2033, 7
        %v2036 = vrot.slane %v2035, 4
        %v2038 = vshrl.u32 %v1940, 16
        %v2040 = vrot.slane %v2038, 7
        %v2041 = vshll.u32 %v1940, 16
        %v2043 = vor.u32 %v2040, %v2041
        %v2044 = vsel %vm1265, %v2036, %v2043
        %v2045 = vunpack.c.l.b16 %v1953
        %v2046 = vunpack.c.l.b16 %v1966
        %v2047 = vunpack.c.l.b16 %v1979
        %v2048 = vunpack.c.l.b16 %v1992
        %v2049 = vunpack.c.l.b16 %v2005
        %v2050 = vunpack.c.l.b16 %v2018
        %v2051 = vunpack.c.l.b16 %v2031
        %v2052 = vunpack.c.l.b16 %v2044
        %v2053 = vpack.c.b16 %v2046, %v2045
        %v2054 = vpack.c.b16 %v2048, %v2047
        %v2055 = vpack.c.b16 %v2050, %v2049
        %v2056 = vpack.c.b16 %v2052, %v2051
        %v2059 = vunpack.c.l.b16 %v543
        %v2060 = vunpack.c.l.b16 %v544
        %v2061 = vpack.c.b16 %v2060, %v2059
        %v2064 = vsel %vm819, %v2053, 0
        %v2067 = vsel %vm819, %v2054, 0
        %v2070 = vsel %vm819, %v2055, 0
        %v2073 = vsel %vm819, %v2056, 0
        %2075 = vmatpush.bf16.msra.mxu0 0
        %2076 = vmatpush.bf16.msra.mxu0 0
        %2077 = vmatpush.bf16.msra.mxu0 0
        %2078 = vmatpush.bf16.msra.mxu0 0
        %2079 = vmatpush.bf16.msra.mxu0 0
        %2080 = vmatpush.bf16.msra.mxu0 0
        %2081 = vmatpush.bf16.msra.mxu0 0
        %2082 = vmatpush.bf16.msra.mxu0 %v2061
        %2083 = vmatmul.bf16.gmra.mxu0 %v2064
        %v2084 = vpop.f32.mrf.mxu0
        %v2085 = vadd.f32 0.0, %v2084
        %v2086 = vpop.f32.mrf.mxu0
        %v2087 = vadd.f32 0.0, %v2086
        %2088 = vmatmul.bf16.gmra.mxu0 %v2067
        %v2089 = vpop.f32.mrf.mxu0
        %v2090 = vadd.f32 0.0, %v2089
        %v2091 = vpop.f32.mrf.mxu0
        %v2092 = vadd.f32 0.0, %v2091
        %2093 = vmatmul.bf16.gmra.mxu0 %v2070
        %v2094 = vpop.f32.mrf.mxu0
        %v2095 = vadd.f32 0.0, %v2094
        %v2096 = vpop.f32.mrf.mxu0
        %v2097 = vadd.f32 0.0, %v2096
        %2098 = vmatmul.bf16.gmra.mxu0 %v2073
        %v2099 = vpop.f32.mrf.mxu0
        %v2100 = vadd.f32 0.0, %v2099
        %v2101 = vpop.f32.mrf.mxu0
        %v2102 = vadd.f32 0.0, %v2101
        %2103 = vdwg.mxu0
        %v2104 = vadd.f32 %v1917, %v2085
        %v2105 = vadd.f32 %v1918, %v2087
        %v2106 = vadd.f32 %v1919, %v2090
        %v2107 = vadd.f32 %v1920, %v2092
        %v2108 = vadd.f32 %v1921, %v2095
        %v2109 = vadd.f32 %v1922, %v2097
        %v2110 = vadd.f32 %v1923, %v2100
        %v2111 = vadd.f32 %v1924, %v2102
        %v2112 = vld [vmem:[%s1220] sm:$0xf]
        %v2113 = vld [vmem:[%s1220 + $0x8] sm:$0xf]
        %v2114 = vld [vmem:[%s1220 + $0x10] sm:$0xf]
        %v2115 = vld [vmem:[%s1220 + $0x18] sm:$0xf]
        %v2116 = vld [vmem:[%s1220 + $0x20] sm:$0xf]
        %v2117 = vld [vmem:[%s1220 + $0x28] sm:$0xf]
        %v2118 = vld [vmem:[%s1220 + $0x30] sm:$0xf]
        %v2119 = vld [vmem:[%s1220 + $0x38] sm:$0xf]
        %v2128 = vunpack.c.l.b16 %v2112
        %v2129 = vunpack.c.l.b16 %v2113
        %v2130 = vunpack.c.l.b16 %v2114
        %v2131 = vunpack.c.l.b16 %v2115
        %v2132 = vunpack.c.l.b16 %v2116
        %v2133 = vunpack.c.l.b16 %v2117
        %v2134 = vunpack.c.l.b16 %v2118
        %v2135 = vunpack.c.l.b16 %v2119
        %v2136 = vpack.c.b16 %v2129, %v2128
        %v2137 = vpack.c.b16 %v2131, %v2130
        %v2138 = vpack.c.b16 %v2133, %v2132
        %v2139 = vpack.c.b16 %v2135, %v2134
        %v2142 = vunpack.c.l.b16 %v546
        %v2143 = vunpack.c.l.b16 %v547
        %v2144 = vpack.c.b16 %v2143, %v2142
        %v2147 = vsel %vm819, %v2136, 0
        %v2150 = vsel %vm819, %v2137, 0
        %v2153 = vsel %vm819, %v2138, 0
        %v2156 = vsel %vm819, %v2139, 0
        %2158 = vmatpush.bf16.msra.mxu0 0
        %2159 = vmatpush.bf16.msra.mxu0 0
        %2160 = vmatpush.bf16.msra.mxu0 0
        %2161 = vmatpush.bf16.msra.mxu0 0
        %2162 = vmatpush.bf16.msra.mxu0 0
        %2163 = vmatpush.bf16.msra.mxu0 0
        %2164 = vmatpush.bf16.msra.mxu0 0
        %2165 = vmatpush.bf16.msra.mxu0 %v2144
        %2166 = vmatmul.bf16.gmra.mxu0 %v2147
        %v2167 = vpop.f32.mrf.mxu0
        %v2168 = vadd.f32 0.0, %v2167
        %v2169 = vpop.f32.mrf.mxu0
        %v2170 = vadd.f32 0.0, %v2169
        %2171 = vmatmul.bf16.gmra.mxu0 %v2150
        %v2172 = vpop.f32.mrf.mxu0
        %v2173 = vadd.f32 0.0, %v2172
        %v2174 = vpop.f32.mrf.mxu0
        %v2175 = vadd.f32 0.0, %v2174
        %2176 = vmatmul.bf16.gmra.mxu0 %v2153
        %v2177 = vpop.f32.mrf.mxu0
        %v2178 = vadd.f32 0.0, %v2177
        %v2179 = vpop.f32.mrf.mxu0
        %v2180 = vadd.f32 0.0, %v2179
        %2181 = vmatmul.bf16.gmra.mxu0 %v2156
        %v2182 = vpop.f32.mrf.mxu0
        %v2183 = vadd.f32 0.0, %v2182
        %v2184 = vpop.f32.mrf.mxu0
        %v2185 = vadd.f32 0.0, %v2184
        %2186 = vdwg.mxu0
        %v2187 = vadd.f32 %v2104, %v2168
        %v2188 = vadd.f32 %v2105, %v2170
        %v2189 = vadd.f32 %v2106, %v2173
        %v2190 = vadd.f32 %v2107, %v2175
        %v2191 = vadd.f32 %v2108, %v2178
        %v2192 = vadd.f32 %v2109, %v2180
        %v2193 = vadd.f32 %v2110, %v2183
        %v2194 = vadd.f32 %v2111, %v2185
        %v2203 = vunpack.c.l.b16 %v1926
        %v2204 = vunpack.c.l.b16 %v1928
        %v2205 = vunpack.c.l.b16 %v1930
        %v2206 = vunpack.c.l.b16 %v1932
        %v2207 = vunpack.c.l.b16 %v1934
        %v2208 = vunpack.c.l.b16 %v1936
        %v2209 = vunpack.c.l.b16 %v1938
        %v2210 = vunpack.c.l.b16 %v1940
        %v2211 = vpack.c.b16 %v2204, %v2203
        %v2212 = vpack.c.b16 %v2206, %v2205
        %v2213 = vpack.c.b16 %v2208, %v2207
        %v2214 = vpack.c.b16 %v2210, %v2209
        %v2217 = vunpack.c.l.b16 %v549
        %v2218 = vunpack.c.l.b16 %v550
        %v2219 = vpack.c.b16 %v2218, %v2217
        %v2222 = vsel %vm819, %v2211, 0
        %v2225 = vsel %vm819, %v2212, 0
        %v2228 = vsel %vm819, %v2213, 0
        %v2231 = vsel %vm819, %v2214, 0
        %2233 = vmatpush.bf16.msra.mxu0 0
        %2234 = vmatpush.bf16.msra.mxu0 0
        %2235 = vmatpush.bf16.msra.mxu0 0
        %2236 = vmatpush.bf16.msra.mxu0 0
        %2237 = vmatpush.bf16.msra.mxu0 0
        %2238 = vmatpush.bf16.msra.mxu0 0
        %2239 = vmatpush.bf16.msra.mxu0 0
        %2240 = vmatpush.bf16.msra.mxu0 %v2219
        %2241 = vmatmul.bf16.gmra.mxu0 %v2222
        %v2242 = vpop.f32.mrf.mxu0
        %v2243 = vadd.f32 0.0, %v2242
        %v2244 = vpop.f32.mrf.mxu0
        %v2245 = vadd.f32 0.0, %v2244
        %2246 = vmatmul.bf16.gmra.mxu0 %v2225
        %v2247 = vpop.f32.mrf.mxu0
        %v2248 = vadd.f32 0.0, %v2247
        %v2249 = vpop.f32.mrf.mxu0
        %v2250 = vadd.f32 0.0, %v2249
        %2251 = vmatmul.bf16.gmra.mxu0 %v2228
        %v2252 = vpop.f32.mrf.mxu0
        %v2253 = vadd.f32 0.0, %v2252
        %v2254 = vpop.f32.mrf.mxu0
        %v2255 = vadd.f32 0.0, %v2254
        %2256 = vmatmul.bf16.gmra.mxu0 %v2231
        %v2257 = vpop.f32.mrf.mxu0
        %v2258 = vadd.f32 0.0, %v2257
        %v2259 = vpop.f32.mrf.mxu0
        %v2260 = vadd.f32 0.0, %v2259
        %2261 = vdwg.mxu0
        %v2262 = vadd.f32 %v2187, %v2243
        %v2263 = vadd.f32 %v2188, %v2245
        %v2264 = vadd.f32 %v2189, %v2248
        %v2265 = vadd.f32 %v2190, %v2250
        %v2266 = vadd.f32 %v2191, %v2253
        %v2267 = vadd.f32 %v2192, %v2255
        %v2268 = vadd.f32 %v2193, %v2258
        %v2269 = vadd.f32 %v2194, %v2260
        %v2270 = vsel %vm819, %v2262, 0.0
        %v2271 = vsel %vm819, %v2263, 0.0
        %v2272 = vadd.f32 %v2270, %v2271
        %v2273 = vsel %vm819, %v2264, 0.0
        %v2274 = vadd.f32 %v2272, %v2273
        %v2275 = vsel %vm819, %v2265, 0.0
        %v2276 = vadd.f32 %v2274, %v2275
        %v2277 = vsel %vm819, %v2266, 0.0
        %v2278 = vadd.f32 %v2276, %v2277
        %v2279 = vsel %vm819, %v2267, 0.0
        %v2280 = vadd.f32 %v2278, %v2279
        %v2281 = vsel %vm819, %v2268, 0.0
        %v2282 = vadd.f32 %v2280, %v2281
        %v2283 = vsel %vm819, %v2269, 0.0
        %v2284 = vadd.f32 %v2282, %v2283
        %2285 = vadd.xlane.f32.xlu0 %v2284
        %v2286 = vpop.xlane.xlu0 %2285
        %v2287 = vrot.slane %v2286, 4
        %v2288 = vadd.f32 %v2286, %v2287
        %v2289 = vrot.slane %v2288, 2
        %v2290 = vadd.f32 %v2288, %v2289
        %v2291 = vrot.slane %v2290, 1
        %v2292 = vadd.f32 %v2290, %v2291
        %s2293 = vtos %v2292
        %s2294 = smul.f32 %s2293, 0.0009765625
        %v2295 = vstv %s2294
        %v2296 = vsub.f32 %v2262, %v2295
        %v2297 = vsub.f32 %v2263, %v2295
        %v2298 = vsub.f32 %v2264, %v2295
        %v2299 = vsub.f32 %v2265, %v2295
        %v2300 = vsub.f32 %v2266, %v2295
        %v2301 = vsub.f32 %v2267, %v2295
        %v2302 = vsub.f32 %v2268, %v2295
        %v2303 = vsub.f32 %v2269, %v2295
        %v2304 = vmul.f32 %v2296, %v2296
        %v2305 = vmul.f32 %v2297, %v2297
        %v2306 = vmul.f32 %v2298, %v2298
        %v2307 = vmul.f32 %v2299, %v2299
        %v2308 = vmul.f32 %v2300, %v2300
        %v2309 = vmul.f32 %v2301, %v2301
        %v2310 = vmul.f32 %v2302, %v2302
        %v2311 = vmul.f32 %v2303, %v2303
        %v2312 = vsel %vm819, %v2304, 0.0
        %v2313 = vsel %vm819, %v2305, 0.0
        %v2314 = vadd.f32 %v2312, %v2313
        %v2315 = vsel %vm819, %v2306, 0.0
        %v2316 = vadd.f32 %v2314, %v2315
        %v2317 = vsel %vm819, %v2307, 0.0
        %v2318 = vadd.f32 %v2316, %v2317
        %v2319 = vsel %vm819, %v2308, 0.0
        %v2320 = vadd.f32 %v2318, %v2319
        %v2321 = vsel %vm819, %v2309, 0.0
        %v2322 = vadd.f32 %v2320, %v2321
        %v2323 = vsel %vm819, %v2310, 0.0
        %v2324 = vadd.f32 %v2322, %v2323
        %v2325 = vsel %vm819, %v2311, 0.0
        %v2326 = vadd.f32 %v2324, %v2325
        %2327 = vadd.xlane.f32.xlu0 %v2326
        %v2328 = vpop.xlane.xlu0 %2327
        %v2329 = vrot.slane %v2328, 4
        %v2330 = vadd.f32 %v2328, %v2329
        %v2331 = vrot.slane %v2330, 2
        %v2332 = vadd.f32 %v2330, %v2331
        %v2333 = vrot.slane %v2332, 1
        %v2334 = vadd.f32 %v2332, %v2333
        %s2335 = vtos %v2334
        %s2336 = smul.f32 %s2335, 0.0009765625
        %s2337 = sadd.f32 %s2336, 1e-05
        %v2338 = vstv %s2337
        %v2339 = vrsqrt.pop %v2338
        %v2340 = vmul.f32 %v2339, %v2338
        %v2341 = vmul.f32 %v2340, %v2339
        %v2342 = vmul.f32 0.5, %v2341
        %v2343 = vsub.f32 1.5, %v2342
        %v2344 = vmul.f32 %v2339, %v2343
        %vm2345 = vweird.f32 %v2338
        %vm2346 = vweird.f32 %v2339
        %vm2347 = vmor %vm2345, %vm2346
        %v2348 = vsel %vm2347, %v2339, %v2344
        %s2349 = vtos %v2348
        %v2350 = vstv %s2349
        %v2351 = vmul.f32 %v2296, %v2350
        %v2352 = vmul.f32 %v2297, %v2350
        %v2353 = vmul.f32 %v2298, %v2350
        %v2354 = vmul.f32 %v2299, %v2350
        %v2355 = vmul.f32 %v2300, %v2350
        %v2356 = vmul.f32 %v2301, %v2350
        %v2357 = vmul.f32 %v2302, %v2350
        %v2358 = vmul.f32 %v2303, %v2350
        %v2360 = vperm.slane %v521, 0
        %v2362 = vmul.f32 %v2351, %v2360
        %v2363 = vmul.f32 %v2352, %v2360
        %v2364 = vmul.f32 %v2353, %v2360
        %v2365 = vmul.f32 %v2354, %v2360
        %v2366 = vmul.f32 %v2355, %v2360
        %v2367 = vmul.f32 %v2356, %v2360
        %v2368 = vmul.f32 %v2357, %v2360
        %v2369 = vmul.f32 %v2358, %v2360
        %v2371 = vperm.slane %v522, 0
        %v2373 = vadd.f32 %v2362, %v2371
        %v2374 = vadd.f32 %v2363, %v2371
        %v2375 = vadd.f32 %v2364, %v2371
        %v2376 = vadd.f32 %v2365, %v2371
        %v2377 = vadd.f32 %v2366, %v2371
        %v2378 = vadd.f32 %v2367, %v2371
        %v2379 = vadd.f32 %v2368, %v2371
        %v2380 = vadd.f32 %v2369, %v2371
        %v2381 = vmax.f32 %v2373, 0.0
        %v2382 = vmax.f32 %v2374, 0.0
        %v2383 = vmax.f32 %v2375, 0.0
        %v2384 = vmax.f32 %v2376, 0.0
        %v2385 = vmax.f32 %v2377, 0.0
        %v2386 = vmax.f32 %v2378, 0.0
        %v2387 = vmax.f32 %v2379, 0.0
        %v2388 = vmax.f32 %v2380, 0.0
        %v2389 = vpack.c.bf16 %v2382, %v2381
        %v2390 = vpack.c.bf16 %v2384, %v2383
        %v2391 = vpack.c.bf16 %v2386, %v2385
        %v2392 = vpack.c.bf16 %v2388, %v2387
        %v2395 = vunpack.c.l.b16 %v517
        %v2396 = vunpack.c.l.b16 %v518
        %v2397 = vpack.c.b16 %v2396, %v2395
        %v2400 = vsel %vm819, %v2389, 0
        %v2403 = vsel %vm819, %v2390, 0
        %v2406 = vsel %vm819, %v2391, 0
        %v2409 = vsel %vm819, %v2392, 0
        %2411 = vmatpush.bf16.msra.mxu0 0
        %2412 = vmatpush.bf16.msra.mxu0 0
        %2413 = vmatpush.bf16.msra.mxu0 0
        %2414 = vmatpush.bf16.msra.mxu0 0
        %2415 = vmatpush.bf16.msra.mxu0 0
        %2416 = vmatpush.bf16.msra.mxu0 0
        %2417 = vmatpush.bf16.msra.mxu0 0
        %2418 = vmatpush.bf16.msra.mxu0 %v2397
        %2419 = vmatmul.bf16.gmra.mxu0 %v2400
        %v2420 = vpop.f32.mrf.mxu0
        %v2421 = vadd.f32 0.0, %v2420
        %v2422 = vpop.f32.mrf.mxu0
        %v2423 = vadd.f32 0.0, %v2422
        %2424 = vmatmul.bf16.gmra.mxu0 %v2403
        %v2425 = vpop.f32.mrf.mxu0
        %v2426 = vadd.f32 0.0, %v2425
        %v2427 = vpop.f32.mrf.mxu0
        %v2428 = vadd.f32 0.0, %v2427
        %2429 = vmatmul.bf16.gmra.mxu0 %v2406
        %v2430 = vpop.f32.mrf.mxu0
        %v2431 = vadd.f32 0.0, %v2430
        %v2432 = vpop.f32.mrf.mxu0
        %v2433 = vadd.f32 0.0, %v2432
        %2434 = vmatmul.bf16.gmra.mxu0 %v2409
        %v2435 = vpop.f32.mrf.mxu0
        %v2436 = vadd.f32 0.0, %v2435
        %v2437 = vpop.f32.mrf.mxu0
        %v2438 = vadd.f32 0.0, %v2437
        %2439 = vdwg.mxu0
        %vm2440 = vcmask 523264
        %v2441 = vsel %vm2440, %v2421, 0.0
        %v2442 = vsel %vm2440, %v2423, 0.0
        %v2443 = vadd.f32 %v2441, %v2442
        %v2444 = vsel %vm2440, %v2426, 0.0
        %v2445 = vadd.f32 %v2443, %v2444
        %v2446 = vsel %vm2440, %v2428, 0.0
        %v2447 = vadd.f32 %v2445, %v2446
        %v2448 = vsel %vm2440, %v2431, 0.0
        %v2449 = vadd.f32 %v2447, %v2448
        %v2450 = vsel %vm2440, %v2433, 0.0
        %v2451 = vadd.f32 %v2449, %v2450
        %v2452 = vsel %vm2440, %v2436, 0.0
        %v2453 = vadd.f32 %v2451, %v2452
        %v2454 = vsel %vm2440, %v2438, 0.0
        %v2455 = vadd.f32 %v2453, %v2454
        %2456 = vadd.xlane.f32.xlu0 %v2455
        %v2457 = vpop.xlane.xlu0 %2456
        %v2458 = vrot.slane %v2457, 4
        %v2459 = vadd.f32 %v2457, %v2458
        %v2460 = vrot.slane %v2459, 2
        %v2461 = vadd.f32 %v2459, %v2460
        %v2462 = vrot.slane %v2461, 1
        %v2463 = vadd.f32 %v2461, %v2462
        %s2464 = vtos %v2463
        %s2465 = smul.f32 %s2464, 0.00024414063
        %v2466 = vstv %s2465
        %v2467 = vsub.f32 %v2421, %v2466
        %v2468 = vsub.f32 %v2423, %v2466
        %v2469 = vsub.f32 %v2426, %v2466
        %v2470 = vsub.f32 %v2428, %v2466
        %v2471 = vsub.f32 %v2431, %v2466
        %v2472 = vsub.f32 %v2433, %v2466
        %v2473 = vsub.f32 %v2436, %v2466
        %v2474 = vsub.f32 %v2438, %v2466
        %v2475 = vmul.f32 %v2467, %v2467
        %v2476 = vmul.f32 %v2468, %v2468
        %v2477 = vmul.f32 %v2469, %v2469
        %v2478 = vmul.f32 %v2470, %v2470
        %v2479 = vmul.f32 %v2471, %v2471
        %v2480 = vmul.f32 %v2472, %v2472
        %v2481 = vmul.f32 %v2473, %v2473
        %v2482 = vmul.f32 %v2474, %v2474
        %v2483 = vsel %vm2440, %v2475, 0.0
        %v2484 = vsel %vm2440, %v2476, 0.0
        %v2485 = vadd.f32 %v2483, %v2484
        %v2486 = vsel %vm2440, %v2477, 0.0
        %v2487 = vadd.f32 %v2485, %v2486
        %v2488 = vsel %vm2440, %v2478, 0.0
        %v2489 = vadd.f32 %v2487, %v2488
        %v2490 = vsel %vm2440, %v2479, 0.0
        %v2491 = vadd.f32 %v2489, %v2490
        %v2492 = vsel %vm2440, %v2480, 0.0
        %v2493 = vadd.f32 %v2491, %v2492
        %v2494 = vsel %vm2440, %v2481, 0.0
        %v2495 = vadd.f32 %v2493, %v2494
        %v2496 = vsel %vm2440, %v2482, 0.0
        %v2497 = vadd.f32 %v2495, %v2496
        %2498 = vadd.xlane.f32.xlu0 %v2497
        %v2499 = vpop.xlane.xlu0 %2498
        %v2500 = vrot.slane %v2499, 4
        %v2501 = vadd.f32 %v2499, %v2500
        %v2502 = vrot.slane %v2501, 2
        %v2503 = vadd.f32 %v2501, %v2502
        %v2504 = vrot.slane %v2503, 1
        %v2505 = vadd.f32 %v2503, %v2504
        %s2506 = vtos %v2505
        %s2507 = smul.f32 %s2506, 0.00024414063
        %s2508 = sadd.f32 %s2507, 1e-05
        %v2509 = vstv %s2508
        %v2510 = vrsqrt.pop %v2509
        %v2511 = vmul.f32 %v2510, %v2509
        %v2512 = vmul.f32 %v2511, %v2510
        %v2513 = vmul.f32 0.5, %v2512
        %v2514 = vsub.f32 1.5, %v2513
        %v2515 = vmul.f32 %v2510, %v2514
        %vm2516 = vweird.f32 %v2509
        %vm2517 = vweird.f32 %v2510
        %vm2518 = vmor %vm2516, %vm2517
        %v2519 = vsel %vm2518, %v2510, %v2515
        %s2520 = vtos %v2519
        %v2521 = vstv %s2520
        %v2522 = vmul.f32 %v2467, %v2521
        %v2523 = vmul.f32 %v2468, %v2521
        %v2524 = vmul.f32 %v2469, %v2521
        %v2525 = vmul.f32 %v2470, %v2521
        %v2526 = vmul.f32 %v2471, %v2521
        %v2527 = vmul.f32 %v2472, %v2521
        %v2528 = vmul.f32 %v2473, %v2521
        %v2529 = vmul.f32 %v2474, %v2521
        %v2531 = vperm.slane %v523, 0
        %v2533 = vmul.f32 %v2522, %v2531
        %v2534 = vmul.f32 %v2523, %v2531
        %v2535 = vmul.f32 %v2524, %v2531
        %v2536 = vmul.f32 %v2525, %v2531
        %v2537 = vmul.f32 %v2526, %v2531
        %v2538 = vmul.f32 %v2527, %v2531
        %v2539 = vmul.f32 %v2528, %v2531
        %v2540 = vmul.f32 %v2529, %v2531
        %v2542 = vperm.slane %v524, 0
        %v2544 = vadd.f32 %v2533, %v2542
        %v2545 = vadd.f32 %v2534, %v2542
        %v2546 = vadd.f32 %v2535, %v2542
        %v2547 = vadd.f32 %v2536, %v2542
        %v2548 = vadd.f32 %v2537, %v2542
        %v2549 = vadd.f32 %v2538, %v2542
        %v2550 = vadd.f32 %v2539, %v2542
        %v2551 = vadd.f32 %v2540, %v2542
        %v2552 = vld [vmem:[%s438 + $0x60] sm:$0xf]
        %v2553 = vld [vmem:[%s438 + $0x64] sm:$0xf]
        %v2554 = vld [vmem:[%s438 + $0x68] sm:$0xf]
        %v2555 = vld [vmem:[%s438 + $0x6c] sm:$0xf]
        %v2556 = vld [vmem:[%s438 + $0x70] sm:$0xf]
        %v2557 = vld [vmem:[%s438 + $0x74] sm:$0xf]
        %v2558 = vld [vmem:[%s438 + $0x78] sm:$0xf]
        %v2559 = vld [vmem:[%s438 + $0x7c] sm:$0xf]
        %v2568 = vunpack.c.l.b16 %v2552
        %v2569 = vunpack.c.l.b16 %v2553
        %v2570 = vunpack.c.l.b16 %v2554
        %v2571 = vunpack.c.l.b16 %v2555
        %v2572 = vunpack.c.l.b16 %v2556
        %v2573 = vunpack.c.l.b16 %v2557
        %v2574 = vunpack.c.l.b16 %v2558
        %v2575 = vunpack.c.l.b16 %v2559
        %v2576 = vpack.c.b16 %v2569, %v2568
        %v2577 = vpack.c.b16 %v2571, %v2570
        %v2578 = vpack.c.b16 %v2573, %v2572
        %v2579 = vpack.c.b16 %v2575, %v2574
        %v2584 = vunpack.c.l.b16 %v551
        %v2585 = vunpack.c.l.b16 %v552
        %v2586 = vunpack.c.l.b16 %v553
        %v2587 = vunpack.c.l.b16 %v554
        %v2588 = vpack.c.b16 %v2585, %v2584
        %v2589 = vpack.c.b16 %v2587, %v2586
        %v2593 = vsel %vm681, %v2576, 0
        %v2596 = vsel %vm681, %v2577, 0
        %v2599 = vsel %vm681, %v2578, 0
        %v2602 = vsel %vm681, %v2579, 0
        %2604 = vmatpush.bf16.msra.mxu0 0
        %2605 = vmatpush.bf16.msra.mxu0 0
        %2606 = vmatpush.bf16.msra.mxu0 0
        %2607 = vmatpush.bf16.msra.mxu0 0
        %2608 = vmatpush.bf16.msra.mxu0 0
        %2609 = vmatpush.bf16.msra.mxu0 0
        %2610 = vmatpush.bf16.msra.mxu0 %v2589
        %2611 = vmatpush.bf16.msra.mxu0 %v2588
        %2612 = vmatmul.bf16.gmra.mxu0 %v2593
        %v2613 = vpop.f32.mrf.mxu0
        %v2614 = vadd.f32 0.0, %v2613
        %v2615 = vpop.f32.mrf.mxu0
        %v2616 = vadd.f32 0.0, %v2615
        %2617 = vmatmul.bf16.gmra.mxu0 %v2596
        %v2618 = vpop.f32.mrf.mxu0
        %v2619 = vadd.f32 0.0, %v2618
        %v2620 = vpop.f32.mrf.mxu0
        %v2621 = vadd.f32 0.0, %v2620
        %2622 = vmatmul.bf16.gmra.mxu0 %v2599
        %v2623 = vpop.f32.mrf.mxu0
        %v2624 = vadd.f32 0.0, %v2623
        %v2625 = vpop.f32.mrf.mxu0
        %v2626 = vadd.f32 0.0, %v2625
        %2627 = vmatmul.bf16.gmra.mxu0 %v2602
        %v2628 = vpop.f32.mrf.mxu0
        %v2629 = vadd.f32 0.0, %v2628
        %v2630 = vpop.f32.mrf.mxu0
        %v2631 = vadd.f32 0.0, %v2630
        %2632 = vdwg.mxu0
        %v2633 = vsel %vm2440, %v2614, 0.0
        %v2634 = vsel %vm2440, %v2616, 0.0
        %v2635 = vadd.f32 %v2633, %v2634
        %v2636 = vsel %vm2440, %v2619, 0.0
        %v2637 = vadd.f32 %v2635, %v2636
        %v2638 = vsel %vm2440, %v2621, 0.0
        %v2639 = vadd.f32 %v2637, %v2638
        %v2640 = vsel %vm2440, %v2624, 0.0
        %v2641 = vadd.f32 %v2639, %v2640
        %v2642 = vsel %vm2440, %v2626, 0.0
        %v2643 = vadd.f32 %v2641, %v2642
        %v2644 = vsel %vm2440, %v2629, 0.0
        %v2645 = vadd.f32 %v2643, %v2644
        %v2646 = vsel %vm2440, %v2631, 0.0
        %v2647 = vadd.f32 %v2645, %v2646
        %2648 = vadd.xlane.f32.xlu0 %v2647
        %v2649 = vpop.xlane.xlu0 %2648
        %v2650 = vrot.slane %v2649, 4
        %v2651 = vadd.f32 %v2649, %v2650
        %v2652 = vrot.slane %v2651, 2
        %v2653 = vadd.f32 %v2651, %v2652
        %v2654 = vrot.slane %v2653, 1
        %v2655 = vadd.f32 %v2653, %v2654
        %s2656 = vtos %v2655
        %s2657 = smul.f32 %s2656, 0.00024414063
        %v2658 = vstv %s2657
        %v2659 = vsub.f32 %v2614, %v2658
        %v2660 = vsub.f32 %v2616, %v2658
        %v2661 = vsub.f32 %v2619, %v2658
        %v2662 = vsub.f32 %v2621, %v2658
        %v2663 = vsub.f32 %v2624, %v2658
        %v2664 = vsub.f32 %v2626, %v2658
        %v2665 = vsub.f32 %v2629, %v2658
        %v2666 = vsub.f32 %v2631, %v2658
        %v2667 = vmul.f32 %v2659, %v2659
        %v2668 = vmul.f32 %v2660, %v2660
        %v2669 = vmul.f32 %v2661, %v2661
        %v2670 = vmul.f32 %v2662, %v2662
        %v2671 = vmul.f32 %v2663, %v2663
        %v2672 = vmul.f32 %v2664, %v2664
        %v2673 = vmul.f32 %v2665, %v2665
        %v2674 = vmul.f32 %v2666, %v2666
        %v2675 = vsel %vm2440, %v2667, 0.0
        %v2676 = vsel %vm2440, %v2668, 0.0
        %v2677 = vadd.f32 %v2675, %v2676
        %v2678 = vsel %vm2440, %v2669, 0.0
        %v2679 = vadd.f32 %v2677, %v2678
        %v2680 = vsel %vm2440, %v2670, 0.0
        %v2681 = vadd.f32 %v2679, %v2680
        %v2682 = vsel %vm2440, %v2671, 0.0
        %v2683 = vadd.f32 %v2681, %v2682
        %v2684 = vsel %vm2440, %v2672, 0.0
        %v2685 = vadd.f32 %v2683, %v2684
        %v2686 = vsel %vm2440, %v2673, 0.0
        %v2687 = vadd.f32 %v2685, %v2686
        %v2688 = vsel %vm2440, %v2674, 0.0
        %v2689 = vadd.f32 %v2687, %v2688
        %2690 = vadd.xlane.f32.xlu0 %v2689
        %v2691 = vpop.xlane.xlu0 %2690
        %v2692 = vrot.slane %v2691, 4
        %v2693 = vadd.f32 %v2691, %v2692
        %v2694 = vrot.slane %v2693, 2
        %v2695 = vadd.f32 %v2693, %v2694
        %v2696 = vrot.slane %v2695, 1
        %v2697 = vadd.f32 %v2695, %v2696
        %s2698 = vtos %v2697
        %s2699 = smul.f32 %s2698, 0.00024414063
        %s2700 = sadd.f32 %s2699, 1e-05
        %v2701 = vstv %s2700
        %v2702 = vrsqrt.pop %v2701
        %v2703 = vmul.f32 %v2702, %v2701
        %v2704 = vmul.f32 %v2703, %v2702
        %v2705 = vmul.f32 0.5, %v2704
        %v2706 = vsub.f32 1.5, %v2705
        %v2707 = vmul.f32 %v2702, %v2706
        %vm2708 = vweird.f32 %v2701
        %vm2709 = vweird.f32 %v2702
        %vm2710 = vmor %vm2708, %vm2709
        %v2711 = vsel %vm2710, %v2702, %v2707
        %s2712 = vtos %v2711
        %v2713 = vstv %s2712
        %v2714 = vmul.f32 %v2659, %v2713
        %v2715 = vmul.f32 %v2660, %v2713
        %v2716 = vmul.f32 %v2661, %v2713
        %v2717 = vmul.f32 %v2662, %v2713
        %v2718 = vmul.f32 %v2663, %v2713
        %v2719 = vmul.f32 %v2664, %v2713
        %v2720 = vmul.f32 %v2665, %v2713
        %v2721 = vmul.f32 %v2666, %v2713
        %v2723 = vperm.slane %v555, 0
        %v2725 = vmul.f32 %v2714, %v2723
        %v2726 = vmul.f32 %v2715, %v2723
        %v2727 = vmul.f32 %v2716, %v2723
        %v2728 = vmul.f32 %v2717, %v2723
        %v2729 = vmul.f32 %v2718, %v2723
        %v2730 = vmul.f32 %v2719, %v2723
        %v2731 = vmul.f32 %v2720, %v2723
        %v2732 = vmul.f32 %v2721, %v2723
        %v2734 = vperm.slane %v556, 0
        %v2736 = vadd.f32 %v2725, %v2734
        %v2737 = vadd.f32 %v2726, %v2734
        %v2738 = vadd.f32 %v2727, %v2734
        %v2739 = vadd.f32 %v2728, %v2734
        %v2740 = vadd.f32 %v2729, %v2734
        %v2741 = vadd.f32 %v2730, %v2734
        %v2742 = vadd.f32 %v2731, %v2734
        %v2743 = vadd.f32 %v2732, %v2734
        %v2744 = vadd.f32 %v2544, %v2736
        %v2745 = vadd.f32 %v2545, %v2737
        %v2746 = vadd.f32 %v2546, %v2738
        %v2747 = vadd.f32 %v2547, %v2739
        %v2748 = vadd.f32 %v2548, %v2740
        %v2749 = vadd.f32 %v2549, %v2741
        %v2750 = vadd.f32 %v2550, %v2742
        %v2751 = vadd.f32 %v2551, %v2743
        %v2752 = vmax.f32 %v2744, 0.0
        %v2753 = vmax.f32 %v2745, 0.0
        %v2754 = vmax.f32 %v2746, 0.0
        %v2755 = vmax.f32 %v2747, 0.0
        %v2756 = vmax.f32 %v2748, 0.0
        %v2757 = vmax.f32 %v2749, 0.0
        %v2758 = vmax.f32 %v2750, 0.0
        %v2759 = vmax.f32 %v2751, 0.0
        %v2760 = vpack.c.bf16 %v2752, %v2752
        %v2761 = vpack.c.bf16 %v2753, %v2753
        %v2762 = vpack.c.bf16 %v2754, %v2754
        %v2763 = vpack.c.bf16 %v2755, %v2755
        %v2764 = vpack.c.bf16 %v2756, %v2756
        %v2765 = vpack.c.bf16 %v2757, %v2757
        %v2766 = vpack.c.bf16 %v2758, %v2758
        %v2767 = vpack.c.bf16 %v2759, %v2759
        %vm2768 = vcmask 519168
        %2769 = vst.msk [vmem:[%s433] sm:$0xf] %vm2768, %v2760
        %2770 = vst.msk [vmem:[%s433 + $0x4] sm:$0xf] %vm2768, %v2761
        %2771 = vst.msk [vmem:[%s433 + $0x8] sm:$0xf] %vm2768, %v2762
        %2772 = vst.msk [vmem:[%s433 + $0xc] sm:$0xf] %vm2768, %v2763
        %2773 = vst.msk [vmem:[%s433 + $0x10] sm:$0xf] %vm2768, %v2764
        %2774 = vst.msk [vmem:[%s433 + $0x14] sm:$0xf] %vm2768, %v2765
        %2775 = vst.msk [vmem:[%s433 + $0x18] sm:$0xf] %vm2768, %v2766
        %2776 = vst.msk [vmem:[%s433 + $0x1c] sm:$0xf] %vm2768, %v2767
        %s2777 = sand.u32 %s313, 1
        %s2778 = scalar_lea.sflag [#allocation4], %s2777
        %s2779 = sand.u32 %s313, 1
        %s2780 = smul.addr %s2779, 32
        %s2781 = scalar_lea.vmem [#allocation3], %s2780
        // Predicated region
        $region73: #{bottleneck_forward.1} parent=71 // pred_check
          %p2782 = pneg %p323
        $region74: #{bottleneck_forward.1} parent=71 // pred_check_branch
          %2784 = sbr.rel (%p2782) target = $region76
        $region75: #{bottleneck_forward.1} parent=71 // pred_region
          %2786 = vsyncadd %s2778, 0
          %s2787 = smul.addr %s27, 8
          %s2788 = smul.addr %s2787, 4
          %s2789 = scalar_lea.hbm %s13, %s2788
          %s2790 = sshll.u32 %s2781, 4
          %s2791 = int_to_ptr.vmem [resolvable:$true] %s2790
          %s2792 = sshll.u32 %s2789, 4
          %s2793 = int_to_ptr.hbm [resolvable:$true] %s2792
          %2798 = dma.vmem_to_hbm [thread:$0]  %s2791, 512, %s2793, %s2778, 64, 64, 4
        $region76: #{bottleneck_forward.1} parent=71 // pred_fallthru
          _
      $region72: #{bottleneck_forward.1} parent=5 // pred_fallthru
        _
      %p2799 = scmp.le.s32.totalorder 2, %s22
      // Predicated region
      $region77: #{bottleneck_forward.1} parent=5 // pred_check
        %p2800 = pneg %p2799
      $region78: #{bottleneck_forward.1} parent=5 // pred_check_branch
        %2802 = sbr.rel (%p2800) target = $region80
      $region79: #{bottleneck_forward.1} parent=5 // pred_region
        %s2803 = ssub.s32 %s22, 2
        // Predicated region
        $region81: #{bottleneck_forward.1} parent=79 // pred_check
          %p2804 = pneg %p329
        $region82: #{bottleneck_forward.1} parent=79 // pred_check_branch
          %2806 = sbr.rel (%p2804) target = $region84
        $region83: #{bottleneck_forward.1} parent=79 // pred_region
          %s2807 = sand.u32 %s314, 1
          %s2808 = scalar_lea.sflag [#allocation4], %s2807
          %s2809 = sand.u32 %s314, 1
          %s2810 = smul.addr %s2809, 32
          %s2811 = scalar_lea.vmem [#allocation3], %s2810
          %2813 = dma.done %s2808, 512
        $region84: #{bottleneck_forward.1} parent=79 // pred_fallthru
          _
      $region80: #{bottleneck_forward.1} parent=5 // pred_fallthru
        _
    $region6: #{bottleneck_forward.1} parent=1 // loop_footer
      %s26 = sadd.s32 1, %s22
    $region7: #{bottleneck_forward.1} parent=1 // loop_footer_branch
      %21 = sbr.rel target = $region3
    $region8: #{bottleneck_forward.1} parent=1 // loop_exit
      _
    %2814 = vsyncpa [#allocation4], 1
    %s2815 = scalar_lea.sflag [#allocation4], 1
    %2816 = vsyncpa %s2815, 1

</llo_original>
